<compile_context>
chip_gen: v7x
topology: tpu7x:2x2x1
jax: 0.10.0
libtpu: 0.0.40
codegen_flags: <defaults>
</compile_context>

<pallas_src>
import functools
import math

import jax
import jax.numpy as jnp
from jax.experimental import pallas as pl
from jax.experimental.pallas import tpu as pltpu

# ----------------------- small synthetic BERT config -----------------------
VOCAB = 128            # must exceed mask_id_token=103
HIDDEN = 32
N_HEADS = 2
HEAD_DIM = HIDDEN // N_HEADS
N_LAYERS = 2
INTERMEDIATE = 64
NUM_NER_LABELS = 9     # dslim/bert-base-NER has 9 labels, label 0 == 'O'
CLS_PAD = 128          # classifier padded to a full 128-lane tile
MASK_ID = 103
SEQ = 8
BATCH = 2
LN_EPS = 1e-12
NEG_INF = -1e9
ATTN_SCALE = 1.0 / math.sqrt(HEAD_DIM)

LAYER_PARAM_NAMES = ("wq", "wk", "wv", "bq", "bk", "bv",
                     "o_w", "o_b", "ln1_g", "ln1_b",
                     "ff1_w", "ff1_b", "ff2_w", "ff2_b", "ln2_g", "ln2_b")


# ------------------------------ kernel helpers ------------------------------
def _layernorm(x, gamma, beta):
    mu = jnp.mean(x, axis=-1, keepdims=True)
    var = jnp.mean(jnp.square(x - mu), axis=-1, keepdims=True)
    inv = jax.lax.rsqrt(var + LN_EPS)
    return (x - mu) * inv * gamma + beta


def _layer_step(h, attn_bias, lrefs):
    """One transformer encoder layer on a (S, HIDDEN) f32 activation."""
    (wq, wk, wv, bq, bk, bv, o_w, o_b, ln1_g, ln1_b,
     ff1_w, ff1_b, ff2_w, ff2_b, ln2_g, ln2_b) = lrefs

    hb = h.astype(jnp.bfloat16)                       # bf16 MXU operands
    ctx_heads = []
    for hd in range(N_HEADS):
        # per-head projections: full-HIDDEN contraction, no lane slicing
        q = jnp.dot(hb, wq[hd], preferred_element_type=jnp.float32) + bq[hd]
        k = jnp.dot(hb, wk[hd], preferred_element_type=jnp.float32) + bk[hd]
        v = jnp.dot(hb, wv[hd], preferred_element_type=jnp.float32) + bv[hd]
        s = jax.lax.dot_general(q.astype(jnp.bfloat16), k.astype(jnp.bfloat16),
                                (((1,), (1,)), ((), ())),
                                preferred_element_type=jnp.float32) * ATTN_SCALE
        s = s + attn_bias                             # (S,S) + (1,S) key bias
        s = s - jnp.max(s, axis=-1, keepdims=True)
        p = jnp.exp(s)
        p = p * pl.reciprocal(jnp.sum(p, axis=-1, keepdims=True), approx=True)
        ctx_heads.append(jnp.dot(p.astype(jnp.bfloat16), v.astype(jnp.bfloat16),
                                 preferred_element_type=jnp.float32))
    ctx = jnp.concatenate(ctx_heads, axis=-1)         # (S, HIDDEN)

    # ONE output projection with full-HIDDEN contraction
    attn = (jnp.dot(ctx.astype(jnp.bfloat16), o_w[...],
                    preferred_element_type=jnp.float32) + o_b[...])
    h1 = _layernorm(attn + h, ln1_g[...], ln1_b[...])

    ff = (jnp.dot(h1.astype(jnp.bfloat16), ff1_w[...],
                  preferred_element_type=jnp.float32) + ff1_b[...])
    ff = jax.nn.gelu(ff, approximate=True)            # TODO(synk): erf GELU
    ff2 = (jnp.dot(ff.astype(jnp.bfloat16), ff2_w[...],
                   preferred_element_type=jnp.float32) + ff2_b[...])
    return _layernorm(ff2 + h1, ln2_g[...], ln2_b[...])


# ------------------------- fused NER BERT + NER head -------------------------
def _ner_bert_kernel(x_ref, bias_ref, src_ref, eg_ref, eb_ref, *rest):
    lrefs = rest[:16]
    cls_w_ref, cls_b_ref, out_ref, h_ref = rest[16:]
    layer = pl.program_id(1)

    @pl.when(layer == 0)
    def _():
        h_ref[...] = _layernorm(x_ref[...], eg_ref[...], eb_ref[...])

    h_new = _layer_step(h_ref[...], bias_ref[...], lrefs)
    h_ref[...] = h_new                               # single write per layer

    @pl.when(layer == N_LAYERS - 1)
    def _():
        # classifier (padded to 128 lanes) + first-occurrence argmax + [MASK]
        logits = (jnp.dot(h_new.astype(jnp.bfloat16), cls_w_ref[...],
                          preferred_element_type=jnp.float32) + cls_b_ref[...])
        mx = jnp.max(logits, axis=-1, keepdims=True)
        lbl = jax.lax.broadcasted_iota(jnp.int32, logits.shape, 1)
        ner = jnp.min(jnp.where(logits == mx, lbl, CLS_PAD),
                      axis=-1, keepdims=True)        # (S, 1) int32
        src = src_ref[...]                           # (S, 1) int32
        ner = jnp.where(src == 0, 0, ner)            # zero preds at padding
        out_ref[...] = jnp.where(ner != 0, MASK_ID, src)


# ------------------------- fused MLM BERT + MLM head -------------------------
def _mlm_bert_kernel(x_ref, bias_ref, eg_ref, eb_ref, *rest):
    lrefs = rest[:16]
    tw_ref, tb_ref, tg_ref, tbeta_ref, dw_ref, db_ref, out_ref, h_ref = rest[16:]
    layer = pl.program_id(1)

    @pl.when(layer == 0)
    def _():
        h_ref[...] = _layernorm(x_ref[...], eg_ref[...], eb_ref[...])

    h_new = _layer_step(h_ref[...], bias_ref[...], lrefs)
    h_ref[...] = h_new

    @pl.when(layer == N_LAYERS - 1)
    def _():
        t = (jnp.dot(h_new.astype(jnp.bfloat16), tw_ref[...],
                     preferred_element_type=jnp.float32) + tb_ref[...])
        t = jax.nn.gelu(t, approximate=True)         # TODO(synk): erf GELU
        t = _layernorm(t, tg_ref[...], tbeta_ref[...])
        out_ref[...] = (jnp.dot(t.astype(jnp.bfloat16), dw_ref[...],
                                preferred_element_type=jnp.float32) + db_ref[...])


# ------------------------------ spec helpers ---------------------------------
def _per_layer_spec(arr):
    nd = arr.ndim
    return pl.BlockSpec((None,) + arr.shape[1:],
                        lambda b, l, _nd=nd: (l,) + (0,) * (_nd - 1))


def _full_spec(arr):
    nd = arr.ndim
    return pl.BlockSpec(arr.shape, lambda b, l, _nd=nd: (0,) * _nd)


def _embed(enc, input_ids):
    B, S = input_ids.shape
    pos = jnp.arange(S)
    e = (enc["word_emb"][input_ids]
         + enc["pos_emb"][pos][None, :, :]
         + enc["type_emb"][0][None, None, :])
    return e.reshape(B * S, HIDDEN).astype(jnp.float32)


def _attn_bias(input_ids):
    B, S = input_ids.shape
    return jnp.where(input_ids != 0, 0.0, NEG_INF).astype(jnp.float32).reshape(B, 1, S)


_COMPILER_PARAMS = pltpu.CompilerParams(
    dimension_semantics=("parallel", "arbitrary"),
    vmem_limit_bytes=32 * 1024 * 1024)


# ------------------------------- model wrappers ------------------------------
def ner_model_forward(params, input_ids):
    """Fused NER BERT: encoder + classifier + argmax + [MASK] substitution."""
    B, S = input_ids.shape
    enc = params["encoder"]
    x = _embed(enc, input_ids)                       # (B*S, HIDDEN) f32
    bias = _attn_bias(input_ids)                     # (B, 1, S)   f32
    src3 = input_ids.astype(jnp.int32).reshape(B, S, 1)

    in_specs = [
        pl.BlockSpec((S, HIDDEN), lambda b, l: (b, 0)),       # embeddings
        pl.BlockSpec((None, 1, S), lambda b, l: (b, 0, 0)),   # key bias
        pl.BlockSpec((None, S, 1), lambda b, l: (b, 0, 0)),   # source tokens
        _full_spec(enc["emb_ln_g"]), _full_spec(enc["emb_ln_b"]),
        *[_per_layer_spec(enc[n]) for n in LAYER_PARAM_NAMES],
        _full_spec(params["cls_w"]), _full_spec(params["cls_b"]),
    ]
    out = pl.pallas_call(
        _ner_bert_kernel,
        out_shape=jax.ShapeDtypeStruct((B, S, 1), jnp.int32),
        grid=(B, N_LAYERS),
        in_specs=in_specs,
        out_specs=pl.BlockSpec((None, S, 1), lambda b, l: (b, 0, 0)),
        scratch_shapes=[pltpu.VMEM((S, HIDDEN), jnp.float32)],   # resident h
        compiler_params=_COMPILER_PARAMS,
    )(x, bias, src3, enc["emb_ln_g"], enc["emb_ln_b"],
      *[enc[n] for n in LAYER_PARAM_NAMES],
      params["cls_w"], params["cls_b"])
    return out.reshape(B, S)


def mlm_model_forward(params, input_ids):
    """Fused MLM BERT: encoder + transform + GELU + LN + decoder."""
    B, S = input_ids.shape
    enc = params["encoder"]
    x = _embed(enc, input_ids)
    bias = _attn_bias(input_ids)

    in_specs = [
        pl.BlockSpec((S, HIDDEN), lambda b, l: (b, 0)),
        pl.BlockSpec((None, 1, S), lambda b, l: (b, 0, 0)),
        _full_spec(enc["emb_ln_g"]), _full_spec(enc["emb_ln_b"]),
        *[_per_layer_spec(enc[n]) for n in LAYER_PARAM_NAMES],
        _full_spec(params["transform_w"]), _full_spec(params["transform_b"]),
        _full_spec(params["transform_ln_g"]), _full_spec(params["transform_ln_b"]),
        _full_spec(params["decoder_w"]), _full_spec(params["decoder_b"]),
    ]
    out = pl.pallas_call(
        _mlm_bert_kernel,
        out_shape=jax.ShapeDtypeStruct((B * S, VOCAB), jnp.float32),
        grid=(B, N_LAYERS),
        in_specs=in_specs,
        out_specs=pl.BlockSpec((S, VOCAB), lambda b, l: (b, 0)),
        scratch_shapes=[pltpu.VMEM((S, HIDDEN), jnp.float32)],
        compiler_params=_COMPILER_PARAMS,
    )(x, bias, enc["emb_ln_g"], enc["emb_ln_b"],
      *[enc[n] for n in LAYER_PARAM_NAMES],
      params["transform_w"], params["transform_b"],
      params["transform_ln_g"], params["transform_ln_b"],
      params["decoder_w"], params["decoder_b"])
    return out.reshape(B, S, VOCAB)


# --------------------------- parameter construction -------------------------
def _dense_w(key, shape):
    return 0.02 * jax.random.normal(key, shape, jnp.float32)


def init_bert_encoder(key):
    ks = jax.random.split(key, 9)
    bf = jnp.bfloat16
    return {
        "word_emb": _dense_w(ks[0], (VOCAB, HIDDEN)),
        "pos_emb": _dense_w(ks[1], (SEQ, HIDDEN)),
        "type_emb": _dense_w(ks[2], (2, HIDDEN)),
        "emb_ln_g": jnp.ones((1, HIDDEN), jnp.float32),
        "emb_ln_b": jnp.zeros((1, HIDDEN), jnp.float32),
        # per-layer weights stacked along a leading layer axis; MXU weights bf16
        "wq": _dense_w(ks[3], (N_LAYERS, N_HEADS, HIDDEN, HEAD_DIM)).astype(bf),
        "wk": _dense_w(ks[4], (N_LAYERS, N_HEADS, HIDDEN, HEAD_DIM)).astype(bf),
        "wv": _dense_w(ks[5], (N_LAYERS, N_HEADS, HIDDEN, HEAD_DIM)).astype(bf),
        "bq": jnp.zeros((N_LAYERS, N_HEADS, 1, HEAD_DIM), jnp.float32),
        "bk": jnp.zeros((N_LAYERS, N_HEADS, 1, HEAD_DIM), jnp.float32),
        "bv": jnp.zeros((N_LAYERS, N_HEADS, 1, HEAD_DIM), jnp.float32),
        "o_w": _dense_w(ks[6], (N_LAYERS, HIDDEN, HIDDEN)).astype(bf),
        "o_b": jnp.zeros((N_LAYERS, 1, HIDDEN), jnp.float32),
        "ln1_g": jnp.ones((N_LAYERS, 1, HIDDEN), jnp.float32),
        "ln1_b": jnp.zeros((N_LAYERS, 1, HIDDEN), jnp.float32),
        "ff1_w": _dense_w(ks[7], (N_LAYERS, HIDDEN, INTERMEDIATE)).astype(bf),
        "ff1_b": jnp.zeros((N_LAYERS, 1, INTERMEDIATE), jnp.float32),
        "ff2_w": _dense_w(ks[8], (N_LAYERS, INTERMEDIATE, HIDDEN)).astype(bf),
        "ff2_b": jnp.zeros((N_LAYERS, 1, HIDDEN), jnp.float32),
        "ln2_g": jnp.ones((N_LAYERS, 1, HIDDEN), jnp.float32),
        "ln2_b": jnp.zeros((N_LAYERS, 1, HIDDEN), jnp.float32),
    }


def init_ner_params(key):
    k_enc, k_cls = jax.random.split(key)
    cls_w = _dense_w(k_cls, (HIDDEN, NUM_NER_LABELS))
    cls_w_pad = jnp.zeros((HIDDEN, CLS_PAD), jnp.float32).at[:, :NUM_NER_LABELS].set(cls_w)
    cls_b_pad = jnp.full((1, CLS_PAD), NEG_INF, jnp.float32).at[:, :NUM_NER_LABELS].set(0.0)
    return {"encoder": init_bert_encoder(k_enc),
            "cls_w": cls_w_pad.astype(jnp.bfloat16),
            "cls_b": cls_b_pad}


def init_mlm_params(key):
    k_enc, k_t, k_d = jax.random.split(key, 3)
    return {"encoder": init_bert_encoder(k_enc),
            "transform_w": _dense_w(k_t, (HIDDEN, HIDDEN)).astype(jnp.bfloat16),
            "transform_b": jnp.zeros((1, HIDDEN), jnp.float32),
            "transform_ln_g": jnp.ones((1, HIDDEN), jnp.float32),
            "transform_ln_b": jnp.zeros((1, HIDDEN), jnp.float32),
            "decoder_w": _dense_w(k_d, (HIDDEN, VOCAB)).astype(jnp.bfloat16),
            "decoder_b": jnp.zeros((1, VOCAB), jnp.float32)}


# ------------------------------ model forward -------------------------------
def custom_conditional_bert_forward(ner_params, mlm_params, src_input_sentence):
    B, S = src_input_sentence.shape

    # --- NER BERT (fused encoder + classifier + argmax + [MASK] substitution) ---
    masked = ner_model_forward(ner_params, src_input_sentence)        # (B, S)

    # --- collapse consecutive duplicate [MASK] tokens (groupby dedup), ---
    # --- left-compact kept tokens, pad with 0 to length S (plain JAX glue) ---
    prev = jnp.concatenate(
        [jnp.full((B, 1), -1, masked.dtype), masked[:, :-1]], axis=1)
    keep = jnp.logical_not((masked == MASK_ID) & (prev == MASK_ID))
    order = jnp.argsort(jnp.logical_not(keep), axis=1, stable=True)
    ner_masking_tensor = jnp.where(
        jnp.take_along_axis(keep, order, axis=1),
        jnp.take_along_axis(masked, order, axis=1),
        0)

    # --- MLM BERT (fused encoder + transform/GELU/LN/decoder head) ---
    mlm_logits = mlm_model_forward(mlm_params, ner_masking_tensor)    # (B,S,VOCAB)
    return mlm_logits, ner_masking_tensor


# ----------------------------------- main ------------------------------------
if __name__ == "__main__":
    key = jax.random.PRNGKey(0)
    k_ner, k_mlm, k_inp = jax.random.split(key, 3)
    ner_params = init_ner_params(k_ner)
    mlm_params = init_mlm_params(k_mlm)

    src = jax.random.randint(k_inp, (BATCH, SEQ), 1, VOCAB, dtype=jnp.int32)
    src = src.at[1, SEQ - 2:].set(0)  # some padding tokens in row 1

    fwd = jax.jit(functools.partial(custom_conditional_bert_forward,
                                    ner_params, mlm_params))
    mlm_logits, ner_masking_tensor = fwd(src)
    jax.block_until_ready((mlm_logits, ner_masking_tensor))

    assert mlm_logits.shape == (BATCH, SEQ, VOCAB)
    assert ner_masking_tensor.shape == (BATCH, SEQ)
    print("KERNEL_OK")
</pallas_src>

<mosaic_0001>
module attributes {stable_mosaic.version = 11 : i64} {
  func.func @_ner_bert_kernel(%arg0: i32, %arg1: i32, %arg2: memref<8x32xf32, #tpu.memory_space<vmem>>, %arg3: memref<1x1x8xf32, #tpu.memory_space<vmem>>, %arg4: memref<1x8x1xi32, #tpu.memory_space<vmem>>, %arg5: memref<1x32xf32, #tpu.memory_space<vmem>>, %arg6: memref<1x32xf32, #tpu.memory_space<vmem>>, %arg7: memref<1x2x32x16xbf16, #tpu.memory_space<vmem>>, %arg8: memref<1x2x32x16xbf16, #tpu.memory_space<vmem>>, %arg9: memref<1x2x32x16xbf16, #tpu.memory_space<vmem>>, %arg10: memref<1x2x1x16xf32, #tpu.memory_space<vmem>>, %arg11: memref<1x2x1x16xf32, #tpu.memory_space<vmem>>, %arg12: memref<1x2x1x16xf32, #tpu.memory_space<vmem>>, %arg13: memref<1x32x32xbf16, #tpu.memory_space<vmem>>, %arg14: memref<1x1x32xf32, #tpu.memory_space<vmem>>, %arg15: memref<1x1x32xf32, #tpu.memory_space<vmem>>, %arg16: memref<1x1x32xf32, #tpu.memory_space<vmem>>, %arg17: memref<1x32x64xbf16, #tpu.memory_space<vmem>>, %arg18: memref<1x1x64xf32, #tpu.memory_space<vmem>>, %arg19: memref<1x64x32xbf16, #tpu.memory_space<vmem>>, %arg20: memref<1x1x32xf32, #tpu.memory_space<vmem>>, %arg21: memref<1x1x32xf32, #tpu.memory_space<vmem>>, %arg22: memref<1x1x32xf32, #tpu.memory_space<vmem>>, %arg23: memref<32x128xbf16, #tpu.memory_space<vmem>>, %arg24: memref<1x128xf32, #tpu.memory_space<vmem>>, %arg25: memref<1x8x1xi32, #tpu.memory_space<vmem>>, %arg26: memref<8x32xf32, #tpu.memory_space<vmem>>) attributes {dimension_semantics = [#tpu.dimension_semantics<parallel>, #tpu.dimension_semantics<arbitrary>], iteration_bounds = array<i64: 2, 2>, scalar_prefetch = 0 : i64, scratch_operands = 1 : i64, tpu.core_type = #tpu.core_type<tc>, window_params = [{transform_indices = @transform_0, window_bounds = array<i64: 8, 32>}, {transform_indices = @transform_1, window_bounds = array<i64: 1, 1, 8>}, {transform_indices = @transform_2, window_bounds = array<i64: 1, 8, 1>}, {pipeline_mode = #tpu.pipeline_mode<synchronous>, transform_indices = @transform_3, window_bounds = array<i64: 1, 32>}, {pipeline_mode = #tpu.pipeline_mode<synchronous>, transform_indices = @transform_4, window_bounds = array<i64: 1, 32>}, {transform_indices = @transform_5, window_bounds = array<i64: 1, 2, 32, 16>}, {transform_indices = @transform_6, window_bounds = array<i64: 1, 2, 32, 16>}, {transform_indices = @transform_7, window_bounds = array<i64: 1, 2, 32, 16>}, {transform_indices = @transform_8, window_bounds = array<i64: 1, 2, 1, 16>}, {transform_indices = @transform_9, window_bounds = array<i64: 1, 2, 1, 16>}, {transform_indices = @transform_10, window_bounds = array<i64: 1, 2, 1, 16>}, {transform_indices = @transform_11, window_bounds = array<i64: 1, 32, 32>}, {transform_indices = @transform_12, window_bounds = array<i64: 1, 1, 32>}, {transform_indices = @transform_13, window_bounds = array<i64: 1, 1, 32>}, {transform_indices = @transform_14, window_bounds = array<i64: 1, 1, 32>}, {transform_indices = @transform_15, window_bounds = array<i64: 1, 32, 64>}, {transform_indices = @transform_16, window_bounds = array<i64: 1, 1, 64>}, {transform_indices = @transform_17, window_bounds = array<i64: 1, 64, 32>}, {transform_indices = @transform_18, window_bounds = array<i64: 1, 1, 32>}, {transform_indices = @transform_19, window_bounds = array<i64: 1, 1, 32>}, {transform_indices = @transform_20, window_bounds = array<i64: 1, 1, 32>}, {pipeline_mode = #tpu.pipeline_mode<synchronous>, transform_indices = @transform_21, window_bounds = array<i64: 32, 128>}, {pipeline_mode = #tpu.pipeline_mode<synchronous>, transform_indices = @transform_22, window_bounds = array<i64: 1, 128>}, {transform_indices = @transform_23, window_bounds = array<i64: 1, 8, 1>}]} {
    %c0_i32 = arith.constant 0 : i32
    %0 = arith.cmpi eq, %arg1, %c0_i32 : i32
    %1 = arith.extui %0 : i1 to i32
    %c0_i32_0 = arith.constant 0 : i32
    %2 = arith.cmpi ne, %1, %c0_i32_0 : i32
    scf.if %2 {
      %c0_117 = arith.constant 0 : index
      %c0_118 = arith.constant 0 : index
      %185 = vector.load %arg2[%c0_117, %c0_118] : memref<8x32xf32, #tpu.memory_space<vmem>>, vector<8x32xf32>
      %c0_119 = arith.constant 0 : index
      %c0_120 = arith.constant 0 : index
      %186 = vector.load %arg5[%c0_119, %c0_120] : memref<1x32xf32, #tpu.memory_space<vmem>>, vector<1x32xf32>
      %c0_121 = arith.constant 0 : index
      %c0_122 = arith.constant 0 : index
      %187 = vector.load %arg6[%c0_121, %c0_122] : memref<1x32xf32, #tpu.memory_space<vmem>>, vector<1x32xf32>
      %cst_123 = arith.constant dense<0.000000e+00> : vector<8xf32>
      %188 = vector.multi_reduction <add>, %185, %cst_123 [1] : vector<8x32xf32> to vector<8xf32>
      %189 = vector.shape_cast %188 : vector<8xf32> to vector<8x1xf32>
      %cst_124 = arith.constant 3.200000e+01 : f32
      %190 = vector.broadcast %cst_124 : f32 to vector<8x1xf32>
      %191 = arith.divf %189, %190 : vector<8x1xf32>
      %192 = vector.broadcast %191 : vector<8x1xf32> to vector<8x32xf32>
      %193 = arith.subf %185, %192 : vector<8x32xf32>
      %194 = arith.mulf %193, %193 : vector<8x32xf32>
      %cst_125 = arith.constant dense<0.000000e+00> : vector<8xf32>
      %195 = vector.multi_reduction <add>, %194, %cst_125 [1] : vector<8x32xf32> to vector<8xf32>
      %196 = vector.shape_cast %195 : vector<8xf32> to vector<8x1xf32>
      %cst_126 = arith.constant 3.200000e+01 : f32
      %197 = vector.broadcast %cst_126 : f32 to vector<8x1xf32>
      %198 = arith.divf %196, %197 : vector<8x1xf32>
      %cst_127 = arith.constant 9.99999996E-13 : f32
      %199 = vector.broadcast %cst_127 : f32 to vector<8x1xf32>
      %200 = arith.addf %198, %199 : vector<8x1xf32>
      %201 = math.rsqrt %200 : vector<8x1xf32>
      %202 = vector.broadcast %191 : vector<8x1xf32> to vector<8x32xf32>
      %203 = arith.subf %185, %202 : vector<8x32xf32>
      %204 = vector.broadcast %201 : vector<8x1xf32> to vector<8x32xf32>
      %205 = arith.mulf %203, %204 : vector<8x32xf32>
      %206 = vector.broadcast %186 : vector<1x32xf32> to vector<8x32xf32>
      %207 = arith.mulf %205, %206 : vector<8x32xf32>
      %208 = vector.broadcast %187 : vector<1x32xf32> to vector<8x32xf32>
      %209 = arith.addf %207, %208 : vector<8x32xf32>
      %c0_128 = arith.constant 0 : index
      %c0_129 = arith.constant 0 : index
      %210 = vector.load %arg26[%c0_128, %c0_129] : memref<8x32xf32, #tpu.memory_space<vmem>>, vector<8x32xf32>
      tpu.vector_store %arg26[%c0_128, %c0_129], %209 {strides = array<i32>} : memref<8x32xf32, #tpu.memory_space<vmem>>, vector<8x32xf32>,
    } else {
    }
    %c0 = arith.constant 0 : index
    %c0_1 = arith.constant 0 : index
    %3 = vector.load %arg26[%c0, %c0_1] : memref<8x32xf32, #tpu.memory_space<vmem>>, vector<8x32xf32>
    %c0_2 = arith.constant 0 : index
    %c0_3 = arith.constant 0 : index
    %c0_4 = arith.constant 0 : index
    %4 = vector.load %arg3[%c0_2, %c0_3, %c0_4] : memref<1x1x8xf32, #tpu.memory_space<vmem>>, vector<1x1x8xf32>
    %5 = vector.shape_cast %4 : vector<1x1x8xf32> to vector<1x8xf32>
    %6 = arith.truncf %3 : vector<8x32xf32> to vector<8x32xbf16>
    %c0_5 = arith.constant 0 : index
    %c0_6 = arith.constant 0 : index
    %c0_7 = arith.constant 0 : index
    %c0_8 = arith.constant 0 : index
    %7 = vector.load %arg7[%c0_5, %c0_6, %c0_7, %c0_8] : memref<1x2x32x16xbf16, #tpu.memory_space<vmem>>, vector<1x1x32x16xbf16>
    %8 = vector.shape_cast %7 : vector<1x1x32x16xbf16> to vector<32x16xbf16>
    %cst = arith.constant dense<0.000000e+00> : vector<8x16xf32>
    %9 = tpu.matmul %6, %8, %cst {dimension_numbers = #tpu.dot_dimension_numbers<[1], [0], [0], [1], [0, 0, 1, 1], [], []>} : vector<8x32xbf16>, vector<32x16xbf16>, vector<8x16xf32> -> vector<8x16xf32>
    %c0_9 = arith.constant 0 : index
    %c0_10 = arith.constant 0 : index
    %c0_11 = arith.constant 0 : index
    %c0_12 = arith.constant 0 : index
    %10 = vector.load %arg10[%c0_9, %c0_10, %c0_11, %c0_12] : memref<1x2x1x16xf32, #tpu.memory_space<vmem>>, vector<1x1x1x16xf32>
    %11 = vector.shape_cast %10 : vector<1x1x1x16xf32> to vector<1x16xf32>
    %12 = vector.broadcast %11 : vector<1x16xf32> to vector<8x16xf32>
    %13 = arith.addf %9, %12 : vector<8x16xf32>
    %c0_13 = arith.constant 0 : index
    %c0_14 = arith.constant 0 : index
    %c0_15 = arith.constant 0 : index
    %c0_16 = arith.constant 0 : index
    %14 = vector.load %arg8[%c0_13, %c0_14, %c0_15, %c0_16] : memref<1x2x32x16xbf16, #tpu.memory_space<vmem>>, vector<1x1x32x16xbf16>
    %15 = vector.shape_cast %14 : vector<1x1x32x16xbf16> to vector<32x16xbf16>
    %cst_17 = arith.constant dense<0.000000e+00> : vector<8x16xf32>
    %16 = tpu.matmul %6, %15, %cst_17 {dimension_numbers = #tpu.dot_dimension_numbers<[1], [0], [0], [1], [0, 0, 1, 1], [], []>} : vector<8x32xbf16>, vector<32x16xbf16>, vector<8x16xf32> -> vector<8x16xf32>
    %c0_18 = arith.constant 0 : index
    %c0_19 = arith.constant 0 : index
    %c0_20 = arith.constant 0 : index
    %c0_21 = arith.constant 0 : index
    %17 = vector.load %arg11[%c0_18, %c0_19, %c0_20, %c0_21] : memref<1x2x1x16xf32, #tpu.memory_space<vmem>>, vector<1x1x1x16xf32>
    %18 = vector.shape_cast %17 : vector<1x1x1x16xf32> to vector<1x16xf32>
    %19 = vector.broadcast %18 : vector<1x16xf32> to vector<8x16xf32>
    %20 = arith.addf %16, %19 : vector<8x16xf32>
    %c0_22 = arith.constant 0 : index
    %c0_23 = arith.constant 0 : index
    %c0_24 = arith.constant 0 : index
    %c0_25 = arith.constant 0 : index
    %21 = vector.load %arg9[%c0_22, %c0_23, %c0_24, %c0_25] : memref<1x2x32x16xbf16, #tpu.memory_space<vmem>>, vector<1x1x32x16xbf16>
    %22 = vector.shape_cast %21 : vector<1x1x32x16xbf16> to vector<32x16xbf16>
    %cst_26 = arith.constant dense<0.000000e+00> : vector<8x16xf32>
    %23 = tpu.matmul %6, %22, %cst_26 {dimension_numbers = #tpu.dot_dimension_numbers<[1], [0], [0], [1], [0, 0, 1, 1], [], []>} : vector<8x32xbf16>, vector<32x16xbf16>, vector<8x16xf32> -> vector<8x16xf32>
    %c0_27 = arith.constant 0 : index
    %c0_28 = arith.constant 0 : index
    %c0_29 = arith.constant 0 : index
    %c0_30 = arith.constant 0 : index
    %24 = vector.load %arg12[%c0_27, %c0_28, %c0_29, %c0_30] : memref<1x2x1x16xf32, #tpu.memory_space<vmem>>, vector<1x1x1x16xf32>
    %25 = vector.shape_cast %24 : vector<1x1x1x16xf32> to vector<1x16xf32>
    %26 = vector.broadcast %25 : vector<1x16xf32> to vector<8x16xf32>
    %27 = arith.addf %23, %26 : vector<8x16xf32>
    %28 = arith.truncf %13 : vector<8x16xf32> to vector<8x16xbf16>
    %29 = arith.truncf %20 : vector<8x16xf32> to vector<8x16xbf16>
    %cst_31 = arith.constant dense<0.000000e+00> : vector<8x8xf32>
    %30 = tpu.matmul %28, %29, %cst_31 {dimension_numbers = #tpu.dot_dimension_numbers<[1], [1], [0], [0], [0, 0, 1, 0], [], []>} : vector<8x16xbf16>, vector<8x16xbf16>, vector<8x8xf32> -> vector<8x8xf32>
    %cst_32 = arith.constant 2.500000e-01 : f32
    %31 = vector.broadcast %cst_32 : f32 to vector<8x8xf32>
    %32 = arith.mulf %30, %31 : vector<8x8xf32>
    %33 = vector.broadcast %5 : vector<1x8xf32> to vector<8x8xf32>
    %34 = arith.addf %32, %33 : vector<8x8xf32>
    %cst_33 = arith.constant dense<0xFF800000> : vector<8xf32>
    %35 = vector.multi_reduction <maximumf>, %34, %cst_33 [1] : vector<8x8xf32> to vector<8xf32>
    %36 = vector.shape_cast %35 : vector<8xf32> to vector<8x1xf32>
    %37 = vector.broadcast %36 : vector<8x1xf32> to vector<8x8xf32>
    %38 = arith.subf %34, %37 : vector<8x8xf32>
    %39 = math.exp %38 : vector<8x8xf32>
    %cst_34 = arith.constant dense<0.000000e+00> : vector<8xf32>
    %40 = vector.multi_reduction <add>, %39, %cst_34 [1] : vector<8x8xf32> to vector<8xf32>
    %41 = vector.shape_cast %40 : vector<8xf32> to vector<8x1xf32>
    %42 = tpu.reciprocal %41 {approx = true} : vector<8x1xf32> -> vector<8x1xf32>
    %43 = vector.broadcast %42 : vector<8x1xf32> to vector<8x8xf32>
    %44 = arith.mulf %39, %43 : vector<8x8xf32>
    %45 = arith.truncf %44 : vector<8x8xf32> to vector<8x8xbf16>
    %46 = arith.truncf %27 : vector<8x16xf32> to vector<8x16xbf16>
    %cst_35 = arith.constant dense<0.000000e+00> : vector<8x16xf32>
    %47 = tpu.matmul %45, %46, %cst_35 {dimension_numbers = #tpu.dot_dimension_numbers<[1], [0], [0], [1], [0, 0, 1, 1], [], []>} : vector<8x8xbf16>, vector<8x16xbf16>, vector<8x16xf32> -> vector<8x16xf32>
    %c0_36 = arith.constant 0 : index
    %c1 = arith.constant 1 : index
    %c0_37 = arith.constant 0 : index
    %c0_38 = arith.constant 0 : index
    %48 = vector.load %arg7[%c0_36, %c1, %c0_37, %c0_38] : memref<1x2x32x16xbf16, #tpu.memory_space<vmem>>, vector<1x1x32x16xbf16>
    %49 = vector.shape_cast %48 : vector<1x1x32x16xbf16> to vector<32x16xbf16>
    %cst_39 = arith.constant dense<0.000000e+00> : vector<8x16xf32>
    %50 = tpu.matmul %6, %49, %cst_39 {dimension_numbers = #tpu.dot_dimension_numbers<[1], [0], [0], [1], [0, 0, 1, 1], [], []>} : vector<8x32xbf16>, vector<32x16xbf16>, vector<8x16xf32> -> vector<8x16xf32>
    %c0_40 = arith.constant 0 : index
    %c1_41 = arith.constant 1 : index
    %c0_42 = arith.constant 0 : index
    %c0_43 = arith.constant 0 : index
    %51 = vector.load %arg10[%c0_40, %c1_41, %c0_42, %c0_43] : memref<1x2x1x16xf32, #tpu.memory_space<vmem>>, vector<1x1x1x16xf32>
    %52 = vector.shape_cast %51 : vector<1x1x1x16xf32> to vector<1x16xf32>
    %53 = vector.broadcast %52 : vector<1x16xf32> to vector<8x16xf32>
    %54 = arith.addf %50, %53 : vector<8x16xf32>
    %c0_44 = arith.constant 0 : index
    %c1_45 = arith.constant 1 : index
    %c0_46 = arith.constant 0 : index
    %c0_47 = arith.constant 0 : index
    %55 = vector.load %arg8[%c0_44, %c1_45, %c0_46, %c0_47] : memref<1x2x32x16xbf16, #tpu.memory_space<vmem>>, vector<1x1x32x16xbf16>
    %56 = vector.shape_cast %55 : vector<1x1x32x16xbf16> to vector<32x16xbf16>
    %cst_48 = arith.constant dense<0.000000e+00> : vector<8x16xf32>
    %57 = tpu.matmul %6, %56, %cst_48 {dimension_numbers = #tpu.dot_dimension_numbers<[1], [0], [0], [1], [0, 0, 1, 1], [], []>} : vector<8x32xbf16>, vector<32x16xbf16>, vector<8x16xf32> -> vector<8x16xf32>
    %c0_49 = arith.constant 0 : index
    %c1_50 = arith.constant 1 : index
    %c0_51 = arith.constant 0 : index
    %c0_52 = arith.constant 0 : index
    %58 = vector.load %arg11[%c0_49, %c1_50, %c0_51, %c0_52] : memref<1x2x1x16xf32, #tpu.memory_space<vmem>>, vector<1x1x1x16xf32>
    %59 = vector.shape_cast %58 : vector<1x1x1x16xf32> to vector<1x16xf32>
    %60 = vector.broadcast %59 : vector<1x16xf32> to vector<8x16xf32>
    %61 = arith.addf %57, %60 : vector<8x16xf32>
    %c0_53 = arith.constant 0 : index
    %c1_54 = arith.constant 1 : index
    %c0_55 = arith.constant 0 : index
    %c0_56 = arith.constant 0 : index
    %62 = vector.load %arg9[%c0_53, %c1_54, %c0_55, %c0_56] : memref<1x2x32x16xbf16, #tpu.memory_space<vmem>>, vector<1x1x32x16xbf16>
    %63 = vector.shape_cast %62 : vector<1x1x32x16xbf16> to vector<32x16xbf16>
    %cst_57 = arith.constant dense<0.000000e+00> : vector<8x16xf32>
    %64 = tpu.matmul %6, %63, %cst_57 {dimension_numbers = #tpu.dot_dimension_numbers<[1], [0], [0], [1], [0, 0, 1, 1], [], []>} : vector<8x32xbf16>, vector<32x16xbf16>, vector<8x16xf32> -> vector<8x16xf32>
    %c0_58 = arith.constant 0 : index
    %c1_59 = arith.constant 1 : index
    %c0_60 = arith.constant 0 : index
    %c0_61 = arith.constant 0 : index
    %65 = vector.load %arg12[%c0_58, %c1_59, %c0_60, %c0_61] : memref<1x2x1x16xf32, #tpu.memory_space<vmem>>, vector<1x1x1x16xf32>
    %66 = vector.shape_cast %65 : vector<1x1x1x16xf32> to vector<1x16xf32>
    %67 = vector.broadcast %66 : vector<1x16xf32> to vector<8x16xf32>
    %68 = arith.addf %64, %67 : vector<8x16xf32>
    %69 = arith.truncf %54 : vector<8x16xf32> to vector<8x16xbf16>
    %70 = arith.truncf %61 : vector<8x16xf32> to vector<8x16xbf16>
    %cst_62 = arith.constant dense<0.000000e+00> : vector<8x8xf32>
    %71 = tpu.matmul %69, %70, %cst_62 {dimension_numbers = #tpu.dot_dimension_numbers<[1], [1], [0], [0], [0, 0, 1, 0], [], []>} : vector<8x16xbf16>, vector<8x16xbf16>, vector<8x8xf32> -> vector<8x8xf32>
    %cst_63 = arith.constant 2.500000e-01 : f32
    %72 = vector.broadcast %cst_63 : f32 to vector<8x8xf32>
    %73 = arith.mulf %71, %72 : vector<8x8xf32>
    %74 = vector.broadcast %5 : vector<1x8xf32> to vector<8x8xf32>
    %75 = arith.addf %73, %74 : vector<8x8xf32>
    %cst_64 = arith.constant dense<0xFF800000> : vector<8xf32>
    %76 = vector.multi_reduction <maximumf>, %75, %cst_64 [1] : vector<8x8xf32> to vector<8xf32>
    %77 = vector.shape_cast %76 : vector<8xf32> to vector<8x1xf32>
    %78 = vector.broadcast %77 : vector<8x1xf32> to vector<8x8xf32>
    %79 = arith.subf %75, %78 : vector<8x8xf32>
    %80 = math.exp %79 : vector<8x8xf32>
    %cst_65 = arith.constant dense<0.000000e+00> : vector<8xf32>
    %81 = vector.multi_reduction <add>, %80, %cst_65 [1] : vector<8x8xf32> to vector<8xf32>
    %82 = vector.shape_cast %81 : vector<8xf32> to vector<8x1xf32>
    %83 = tpu.reciprocal %82 {approx = true} : vector<8x1xf32> -> vector<8x1xf32>
    %84 = vector.broadcast %83 : vector<8x1xf32> to vector<8x8xf32>
    %85 = arith.mulf %80, %84 : vector<8x8xf32>
    %86 = arith.truncf %85 : vector<8x8xf32> to vector<8x8xbf16>
    %87 = arith.truncf %68 : vector<8x16xf32> to vector<8x16xbf16>
    %cst_66 = arith.constant dense<0.000000e+00> : vector<8x16xf32>
    %88 = tpu.matmul %86, %87, %cst_66 {dimension_numbers = #tpu.dot_dimension_numbers<[1], [0], [0], [1], [0, 0, 1, 1], [], []>} : vector<8x8xbf16>, vector<8x16xbf16>, vector<8x16xf32> -> vector<8x16xf32>
    %89 = tpu.concatenate %47, %88 in 1 : vector<8x16xf32>, vector<8x16xf32> -> vector<8x32xf32>
    %90 = arith.truncf %89 : vector<8x32xf32> to vector<8x32xbf16>
    %c0_67 = arith.constant 0 : index
    %c0_68 = arith.constant 0 : index
    %c0_69 = arith.constant 0 : index
    %91 = vector.load %arg13[%c0_67, %c0_68, %c0_69] : memref<1x32x32xbf16, #tpu.memory_space<vmem>>, vector<1x32x32xbf16>
    %92 = vector.shape_cast %91 : vector<1x32x32xbf16> to vector<32x32xbf16>
    %cst_70 = arith.constant dense<0.000000e+00> : vector<8x32xf32>
    %93 = tpu.matmul %90, %92, %cst_70 {dimension_numbers = #tpu.dot_dimension_numbers<[1], [0], [0], [1], [0, 0, 1, 1], [], []>} : vector<8x32xbf16>, vector<32x32xbf16>, vector<8x32xf32> -> vector<8x32xf32>
    %c0_71 = arith.constant 0 : index
    %c0_72 = arith.constant 0 : index
    %c0_73 = arith.constant 0 : index
    %94 = vector.load %arg14[%c0_71, %c0_72, %c0_73] : memref<1x1x32xf32, #tpu.memory_space<vmem>>, vector<1x1x32xf32>
    %95 = vector.shape_cast %94 : vector<1x1x32xf32> to vector<1x32xf32>
    %96 = vector.broadcast %95 : vector<1x32xf32> to vector<8x32xf32>
    %97 = arith.addf %93, %96 : vector<8x32xf32>
    %98 = arith.addf %97, %3 : vector<8x32xf32>
    %c0_74 = arith.constant 0 : index
    %c0_75 = arith.constant 0 : index
    %c0_76 = arith.constant 0 : index
    %99 = vector.load %arg15[%c0_74, %c0_75, %c0_76] : memref<1x1x32xf32, #tpu.memory_space<vmem>>, vector<1x1x32xf32>
    %100 = vector.shape_cast %99 : vector<1x1x32xf32> to vector<1x32xf32>
    %c0_77 = arith.constant 0 : index
    %c0_78 = arith.constant 0 : index
    %c0_79 = arith.constant 0 : index
    %101 = vector.load %arg16[%c0_77, %c0_78, %c0_79] : memref<1x1x32xf32, #tpu.memory_space<vmem>>, vector<1x1x32xf32>
    %102 = vector.shape_cast %101 : vector<1x1x32xf32> to vector<1x32xf32>
    %cst_80 = arith.constant dense<0.000000e+00> : vector<8xf32>
    %103 = vector.multi_reduction <add>, %98, %cst_80 [1] : vector<8x32xf32> to vector<8xf32>
    %104 = vector.shape_cast %103 : vector<8xf32> to vector<8x1xf32>
    %cst_81 = arith.constant 3.200000e+01 : f32
    %105 = vector.broadcast %cst_81 : f32 to vector<8x1xf32>
    %106 = arith.divf %104, %105 : vector<8x1xf32>
    %107 = vector.broadcast %106 : vector<8x1xf32> to vector<8x32xf32>
    %108 = arith.subf %98, %107 : vector<8x32xf32>
    %109 = arith.mulf %108, %108 : vector<8x32xf32>
    %cst_82 = arith.constant dense<0.000000e+00> : vector<8xf32>
    %110 = vector.multi_reduction <add>, %109, %cst_82 [1] : vector<8x32xf32> to vector<8xf32>
    %111 = vector.shape_cast %110 : vector<8xf32> to vector<8x1xf32>
    %cst_83 = arith.constant 3.200000e+01 : f32
    %112 = vector.broadcast %cst_83 : f32 to vector<8x1xf32>
    %113 = arith.divf %111, %112 : vector<8x1xf32>
    %cst_84 = arith.constant 9.99999996E-13 : f32
    %114 = vector.broadcast %cst_84 : f32 to vector<8x1xf32>
    %115 = arith.addf %113, %114 : vector<8x1xf32>
    %116 = math.rsqrt %115 : vector<8x1xf32>
    %117 = vector.broadcast %106 : vector<8x1xf32> to vector<8x32xf32>
    %118 = arith.subf %98, %117 : vector<8x32xf32>
    %119 = vector.broadcast %116 : vector<8x1xf32> to vector<8x32xf32>
    %120 = arith.mulf %118, %119 : vector<8x32xf32>
    %121 = vector.broadcast %100 : vector<1x32xf32> to vector<8x32xf32>
    %122 = arith.mulf %120, %121 : vector<8x32xf32>
    %123 = vector.broadcast %102 : vector<1x32xf32> to vector<8x32xf32>
    %124 = arith.addf %122, %123 : vector<8x32xf32>
    %125 = arith.truncf %124 : vector<8x32xf32> to vector<8x32xbf16>
    %c0_85 = arith.constant 0 : index
    %c0_86 = arith.constant 0 : index
    %c0_87 = arith.constant 0 : index
    %126 = vector.load %arg17[%c0_85, %c0_86, %c0_87] : memref<1x32x64xbf16, #tpu.memory_space<vmem>>, vector<1x32x64xbf16>
    %127 = vector.shape_cast %126 : vector<1x32x64xbf16> to vector<32x64xbf16>
    %cst_88 = arith.constant dense<0.000000e+00> : vector<8x64xf32>
    %128 = tpu.matmul %125, %127, %cst_88 {dimension_numbers = #tpu.dot_dimension_numbers<[1], [0], [0], [1], [0, 0, 1, 1], [], []>} : vector<8x32xbf16>, vector<32x64xbf16>, vector<8x64xf32> -> vector<8x64xf32>
    %c0_89 = arith.constant 0 : index
    %c0_90 = arith.constant 0 : index
    %c0_91 = arith.constant 0 : index
    %129 = vector.load %arg18[%c0_89, %c0_90, %c0_91] : memref<1x1x64xf32, #tpu.memory_space<vmem>>, vector<1x1x64xf32>
    %130 = vector.shape_cast %129 : vector<1x1x64xf32> to vector<1x64xf32>
    %131 = vector.broadcast %130 : vector<1x64xf32> to vector<8x64xf32>
    %132 = arith.addf %128, %131 : vector<8x64xf32>
    %133 = arith.mulf %132, %132 : vector<8x64xf32>
    %134 = arith.mulf %132, %133 : vector<8x64xf32>
    %cst_92 = arith.constant 4.471500e-02 : f32
    %135 = vector.broadcast %cst_92 : f32 to vector<8x64xf32>
    %136 = arith.mulf %135, %134 : vector<8x64xf32>
    %137 = arith.addf %132, %136 : vector<8x64xf32>
    %cst_93 = arith.constant 0.797884583 : f32
    %138 = vector.broadcast %cst_93 : f32 to vector<8x64xf32>
    %139 = arith.mulf %138, %137 : vector<8x64xf32>
    %140 = math.tanh %139 : vector<8x64xf32>
    %cst_94 = arith.constant 1.000000e+00 : f32
    %141 = vector.broadcast %cst_94 : f32 to vector<8x64xf32>
    %142 = arith.addf %141, %140 : vector<8x64xf32>
    %cst_95 = arith.constant 5.000000e-01 : f32
    %143 = vector.broadcast %cst_95 : f32 to vector<8x64xf32>
    %144 = arith.mulf %143, %142 : vector<8x64xf32>
    %145 = arith.mulf %132, %144 : vector<8x64xf32>
    %146 = arith.truncf %145 : vector<8x64xf32> to vector<8x64xbf16>
    %c0_96 = arith.constant 0 : index
    %c0_97 = arith.constant 0 : index
    %c0_98 = arith.constant 0 : index
    %147 = vector.load %arg19[%c0_96, %c0_97, %c0_98] : memref<1x64x32xbf16, #tpu.memory_space<vmem>>, vector<1x64x32xbf16>
    %148 = vector.shape_cast %147 : vector<1x64x32xbf16> to vector<64x32xbf16>
    %cst_99 = arith.constant dense<0.000000e+00> : vector<8x32xf32>
    %149 = tpu.matmul %146, %148, %cst_99 {dimension_numbers = #tpu.dot_dimension_numbers<[1], [0], [0], [1], [0, 0, 1, 1], [], []>} : vector<8x64xbf16>, vector<64x32xbf16>, vector<8x32xf32> -> vector<8x32xf32>
    %c0_100 = arith.constant 0 : index
    %c0_101 = arith.constant 0 : index
    %c0_102 = arith.constant 0 : index
    %150 = vector.load %arg20[%c0_100, %c0_101, %c0_102] : memref<1x1x32xf32, #tpu.memory_space<vmem>>, vector<1x1x32xf32>
    %151 = vector.shape_cast %150 : vector<1x1x32xf32> to vector<1x32xf32>
    %152 = vector.broadcast %151 : vector<1x32xf32> to vector<8x32xf32>
    %153 = arith.addf %149, %152 : vector<8x32xf32>
    %154 = arith.addf %153, %124 : vector<8x32xf32>
    %c0_103 = arith.constant 0 : index
    %c0_104 = arith.constant 0 : index
    %c0_105 = arith.constant 0 : index
    %155 = vector.load %arg21[%c0_103, %c0_104, %c0_105] : memref<1x1x32xf32, #tpu.memory_space<vmem>>, vector<1x1x32xf32>
    %156 = vector.shape_cast %155 : vector<1x1x32xf32> to vector<1x32xf32>
    %c0_106 = arith.constant 0 : index
    %c0_107 = arith.constant 0 : index
    %c0_108 = arith.constant 0 : index
    %157 = vector.load %arg22[%c0_106, %c0_107, %c0_108] : memref<1x1x32xf32, #tpu.memory_space<vmem>>, vector<1x1x32xf32>
    %158 = vector.shape_cast %157 : vector<1x1x32xf32> to vector<1x32xf32>
    %cst_109 = arith.constant dense<0.000000e+00> : vector<8xf32>
    %159 = vector.multi_reduction <add>, %154, %cst_109 [1] : vector<8x32xf32> to vector<8xf32>
    %160 = vector.shape_cast %159 : vector<8xf32> to vector<8x1xf32>
    %cst_110 = arith.constant 3.200000e+01 : f32
    %161 = vector.broadcast %cst_110 : f32 to vector<8x1xf32>
    %162 = arith.divf %160, %161 : vector<8x1xf32>
    %163 = vector.broadcast %162 : vector<8x1xf32> to vector<8x32xf32>
    %164 = arith.subf %154, %163 : vector<8x32xf32>
    %165 = arith.mulf %164, %164 : vector<8x32xf32>
    %cst_111 = arith.constant dense<0.000000e+00> : vector<8xf32>
    %166 = vector.multi_reduction <add>, %165, %cst_111 [1] : vector<8x32xf32> to vector<8xf32>
    %167 = vector.shape_cast %166 : vector<8xf32> to vector<8x1xf32>
    %cst_112 = arith.constant 3.200000e+01 : f32
    %168 = vector.broadcast %cst_112 : f32 to vector<8x1xf32>
    %169 = arith.divf %167, %168 : vector<8x1xf32>
    %cst_113 = arith.constant 9.99999996E-13 : f32
    %170 = vector.broadcast %cst_113 : f32 to vector<8x1xf32>
    %171 = arith.addf %169, %170 : vector<8x1xf32>
    %172 = math.rsqrt %171 : vector<8x1xf32>
    %173 = vector.broadcast %162 : vector<8x1xf32> to vector<8x32xf32>
    %174 = arith.subf %154, %173 : vector<8x32xf32>
    %175 = vector.broadcast %172 : vector<8x1xf32> to vector<8x32xf32>
    %176 = arith.mulf %174, %175 : vector<8x32xf32>
    %177 = vector.broadcast %156 : vector<1x32xf32> to vector<8x32xf32>
    %178 = arith.mulf %176, %177 : vector<8x32xf32>
    %179 = vector.broadcast %158 : vector<1x32xf32> to vector<8x32xf32>
    %180 = arith.addf %178, %179 : vector<8x32xf32>
    %c0_114 = arith.constant 0 : index
    %c0_115 = arith.constant 0 : index
    %181 = vector.load %arg26[%c0_114, %c0_115] : memref<8x32xf32, #tpu.memory_space<vmem>>, vector<8x32xf32>
    tpu.vector_store %arg26[%c0_114, %c0_115], %180 {strides = array<i32>} : memref<8x32xf32, #tpu.memory_space<vmem>>, vector<8x32xf32>,
    %c1_i32 = arith.constant 1 : i32
    %182 = arith.cmpi eq, %arg1, %c1_i32 : i32
    %183 = arith.extui %182 : i1 to i32
    %c0_i32_116 = arith.constant 0 : i32
    %184 = arith.cmpi ne, %183, %c0_i32_116 : i32
    scf.if %184 {
      %185 = arith.truncf %180 : vector<8x32xf32> to vector<8x32xbf16>
      %c0_117 = arith.constant 0 : index
      %c0_118 = arith.constant 0 : index
      %186 = vector.load %arg23[%c0_117, %c0_118] : memref<32x128xbf16, #tpu.memory_space<vmem>>, vector<32x128xbf16>
      %cst_119 = arith.constant dense<0.000000e+00> : vector<8x128xf32>
      %187 = tpu.matmul %185, %186, %cst_119 {dimension_numbers = #tpu.dot_dimension_numbers<[1], [0], [0], [1], [0, 0, 1, 1], [], []>} : vector<8x32xbf16>, vector<32x128xbf16>, vector<8x128xf32> -> vector<8x128xf32>
      %c0_120 = arith.constant 0 : index
      %c0_121 = arith.constant 0 : index
      %188 = vector.load %arg24[%c0_120, %c0_121] : memref<1x128xf32, #tpu.memory_space<vmem>>, vector<1x128xf32>
      %189 = vector.broadcast %188 : vector<1x128xf32> to vector<8x128xf32>
      %190 = arith.addf %187, %189 : vector<8x128xf32>
      %cst_122 = arith.constant dense<0xFF800000> : vector<8xf32>
      %191 = vector.multi_reduction <maximumf>, %190, %cst_122 [1] : vector<8x128xf32> to vector<8xf32>
      %192 = vector.shape_cast %191 : vector<8xf32> to vector<8x1xf32>
      %193 = tpu.iota {dimensions = array<i32: 1>} : vector<8x128xi32>
      %194 = vector.broadcast %192 : vector<8x1xf32> to vector<8x128xf32>
      %195 = arith.cmpf oeq, %190, %194 : vector<8x128xf32>
      %c128_i32 = arith.constant 128 : i32
      %196 = vector.broadcast %c128_i32 : i32 to vector<8x128xi32>
      %197 = arith.select %195, %193, %196 : vector<8x128xi1>, vector<8x128xi32>
      %cst_123 = arith.constant dense<2147483647> : vector<8xi32>
      %198 = vector.multi_reduction <minsi>, %197, %cst_123 [1] : vector<8x128xi32> to vector<8xi32>
      %199 = vector.shape_cast %198 : vector<8xi32> to vector<8x1xi32>
      %c0_124 = arith.constant 0 : index
      %c0_125 = arith.constant 0 : index
      %c0_126 = arith.constant 0 : index
      %200 = vector.load %arg4[%c0_124, %c0_125, %c0_126] : memref<1x8x1xi32, #tpu.memory_space<vmem>>, vector<1x8x1xi32>
      %201 = vector.shape_cast %200 : vector<1x8x1xi32> to vector<8x1xi32>
      %c0_i32_127 = arith.constant 0 : i32
      %202 = vector.broadcast %c0_i32_127 : i32 to vector<8x1xi32>
      %203 = arith.cmpi eq, %201, %202 : vector<8x1xi32>
      %c0_i32_128 = arith.constant 0 : i32
      %204 = vector.broadcast %c0_i32_128 : i32 to vector<8x1xi32>
      %205 = arith.select %203, %204, %199 : vector<8x1xi1>, vector<8x1xi32>
      %c0_i32_129 = arith.constant 0 : i32
      %206 = vector.broadcast %c0_i32_129 : i32 to vector<8x1xi32>
      %207 = arith.cmpi ne, %205, %206 : vector<8x1xi32>
      %c103_i32 = arith.constant 103 : i32
      %208 = vector.broadcast %c103_i32 : i32 to vector<8x1xi32>
      %209 = arith.select %207, %208, %201 : vector<8x1xi1>, vector<8x1xi32>
      %c0_130 = arith.constant 0 : index
      %c0_131 = arith.constant 0 : index
      %c0_132 = arith.constant 0 : index
      %210 = vector.load %arg25[%c0_130, %c0_131, %c0_132] : memref<1x8x1xi32, #tpu.memory_space<vmem>>, vector<1x8x1xi32>
      %211 = vector.shape_cast %210 : vector<1x8x1xi32> to vector<8x1xi32>
      %212 = vector.shape_cast %209 : vector<8x1xi32> to vector<1x8x1xi32>
      tpu.vector_store %arg25[%c0_130, %c0_131, %c0_132], %212 {strides = array<i32>} : memref<1x8x1xi32, #tpu.memory_space<vmem>>, vector<1x8x1xi32>,
    } else {
    }
    return
  }
  func.func @transform_0(%arg0: i32, %arg1: i32) -> (i32, i32) {
    %c0_i32 = arith.constant 0 : i32
    %c0_i32_0 = arith.constant 0 : i32
    return %arg0, %c0_i32 : i32, i32
  }
  func.func @transform_1(%arg0: i32, %arg1: i32) -> (i32, i32, i32) {
    %c0_i32 = arith.constant 0 : i32
    %c0_i32_0 = arith.constant 0 : i32
    %c0_i32_1 = arith.constant 0 : i32
    return %arg0, %c0_i32, %c0_i32_0 : i32, i32, i32
  }
  func.func @transform_2(%arg0: i32, %arg1: i32) -> (i32, i32, i32) {
    %c0_i32 = arith.constant 0 : i32
    %c0_i32_0 = arith.constant 0 : i32
    %c0_i32_1 = arith.constant 0 : i32
    return %arg0, %c0_i32, %c0_i32_0 : i32, i32, i32
  }
  func.func @transform_3(%arg0: i32, %arg1: i32) -> (i32, i32) {
    %c0_i32 = arith.constant 0 : i32
    %c0_i32_0 = arith.constant 0 : i32
    %c0_i32_1 = arith.constant 0 : i32
    return %c0_i32, %c0_i32_0 : i32, i32
  }
  func.func @transform_4(%arg0: i32, %arg1: i32) -> (i32, i32) {
    %c0_i32 = arith.constant 0 : i32
    %c0_i32_0 = arith.constant 0 : i32
    %c0_i32_1 = arith.constant 0 : i32
    return %c0_i32, %c0_i32_0 : i32, i32
  }
  func.func @transform_5(%arg0: i32, %arg1: i32) -> (i32, i32, i32, i32) {
    %c0_i32 = arith.constant 0 : i32
    %c0_i32_0 = arith.constant 0 : i32
    %c0_i32_1 = arith.constant 0 : i32
    %c0_i32_2 = arith.constant 0 : i32
    return %arg1, %c0_i32, %c0_i32_0, %c0_i32_1 : i32, i32, i32, i32
  }
  func.func @transform_6(%arg0: i32, %arg1: i32) -> (i32, i32, i32, i32) {
    %c0_i32 = arith.constant 0 : i32
    %c0_i32_0 = arith.constant 0 : i32
    %c0_i32_1 = arith.constant 0 : i32
    %c0_i32_2 = arith.constant 0 : i32
    return %arg1, %c0_i32, %c0_i32_0, %c0_i32_1 : i32, i32, i32, i32
  }
  func.func @transform_7(%arg0: i32, %arg1: i32) -> (i32, i32, i32, i32) {
    %c0_i32 = arith.constant 0 : i32
    %c0_i32_0 = arith.constant 0 : i32
    %c0_i32_1 = arith.constant 0 : i32
    %c0_i32_2 = arith.constant 0 : i32
    return %arg1, %c0_i32, %c0_i32_0, %c0_i32_1 : i32, i32, i32, i32
  }
  func.func @transform_8(%arg0: i32, %arg1: i32) -> (i32, i32, i32, i32) {
    %c0_i32 = arith.constant 0 : i32
    %c0_i32_0 = arith.constant 0 : i32
    %c0_i32_1 = arith.constant 0 : i32
    %c0_i32_2 = arith.constant 0 : i32
    return %arg1, %c0_i32, %c0_i32_0, %c0_i32_1 : i32, i32, i32, i32
  }
  func.func @transform_9(%arg0: i32, %arg1: i32) -> (i32, i32, i32, i32) {
    %c0_i32 = arith.constant 0 : i32
    %c0_i32_0 = arith.constant 0 : i32
    %c0_i32_1 = arith.constant 0 : i32
    %c0_i32_2 = arith.constant 0 : i32
    return %arg1, %c0_i32, %c0_i32_0, %c0_i32_1 : i32, i32, i32, i32
  }
  func.func @transform_10(%arg0: i32, %arg1: i32) -> (i32, i32, i32, i32) {
    %c0_i32 = arith.constant 0 : i32
    %c0_i32_0 = arith.constant 0 : i32
    %c0_i32_1 = arith.constant 0 : i32
    %c0_i32_2 = arith.constant 0 : i32
    return %arg1, %c0_i32, %c0_i32_0, %c0_i32_1 : i32, i32, i32, i32
  }
  func.func @transform_11(%arg0: i32, %arg1: i32) -> (i32, i32, i32) {
    %c0_i32 = arith.constant 0 : i32
    %c0_i32_0 = arith.constant 0 : i32
    %c0_i32_1 = arith.constant 0 : i32
    return %arg1, %c0_i32, %c0_i32_0 : i32, i32, i32
  }
  func.func @transform_12(%arg0: i32, %arg1: i32) -> (i32, i32, i32) {
    %c0_i32 = arith.constant 0 : i32
    %c0_i32_0 = arith.constant 0 : i32
    %c0_i32_1 = arith.constant 0 : i32
    return %arg1, %c0_i32, %c0_i32_0 : i32, i32, i32
  }
  func.func @transform_13(%arg0: i32, %arg1: i32) -> (i32, i32, i32) {
    %c0_i32 = arith.constant 0 : i32
    %c0_i32_0 = arith.constant 0 : i32
    %c0_i32_1 = arith.constant 0 : i32
    return %arg1, %c0_i32, %c0_i32_0 : i32, i32, i32
  }
  func.func @transform_14(%arg0: i32, %arg1: i32) -> (i32, i32, i32) {
    %c0_i32 = arith.constant 0 : i32
    %c0_i32_0 = arith.constant 0 : i32
    %c0_i32_1 = arith.constant 0 : i32
    return %arg1, %c0_i32, %c0_i32_0 : i32, i32, i32
  }
  func.func @transform_15(%arg0: i32, %arg1: i32) -> (i32, i32, i32) {
    %c0_i32 = arith.constant 0 : i32
    %c0_i32_0 = arith.constant 0 : i32
    %c0_i32_1 = arith.constant 0 : i32
    return %arg1, %c0_i32, %c0_i32_0 : i32, i32, i32
  }
  func.func @transform_16(%arg0: i32, %arg1: i32) -> (i32, i32, i32) {
    %c0_i32 = arith.constant 0 : i32
    %c0_i32_0 = arith.constant 0 : i32
    %c0_i32_1 = arith.constant 0 : i32
    return %arg1, %c0_i32, %c0_i32_0 : i32, i32, i32
  }
  func.func @transform_17(%arg0: i32, %arg1: i32) -> (i32, i32, i32) {
    %c0_i32 = arith.constant 0 : i32
    %c0_i32_0 = arith.constant 0 : i32
    %c0_i32_1 = arith.constant 0 : i32
    return %arg1, %c0_i32, %c0_i32_0 : i32, i32, i32
  }
  func.func @transform_18(%arg0: i32, %arg1: i32) -> (i32, i32, i32) {
    %c0_i32 = arith.constant 0 : i32
    %c0_i32_0 = arith.constant 0 : i32
    %c0_i32_1 = arith.constant 0 : i32
    return %arg1, %c0_i32, %c0_i32_0 : i32, i32, i32
  }
  func.func @transform_19(%arg0: i32, %arg1: i32) -> (i32, i32, i32) {
    %c0_i32 = arith.constant 0 : i32
    %c0_i32_0 = arith.constant 0 : i32
    %c0_i32_1 = arith.constant 0 : i32
    return %arg1, %c0_i32, %c0_i32_0 : i32, i32, i32
  }
  func.func @transform_20(%arg0: i32, %arg1: i32) -> (i32, i32, i32) {
    %c0_i32 = arith.constant 0 : i32
    %c0_i32_0 = arith.constant 0 : i32
    %c0_i32_1 = arith.constant 0 : i32
    return %arg1, %c0_i32, %c0_i32_0 : i32, i32, i32
  }
  func.func @transform_21(%arg0: i32, %arg1: i32) -> (i32, i32) {
    %c0_i32 = arith.constant 0 : i32
    %c0_i32_0 = arith.constant 0 : i32
    %c0_i32_1 = arith.constant 0 : i32
    return %c0_i32, %c0_i32_0 : i32, i32
  }
  func.func @transform_22(%arg0: i32, %arg1: i32) -> (i32, i32) {
    %c0_i32 = arith.constant 0 : i32
    %c0_i32_0 = arith.constant 0 : i32
    %c0_i32_1 = arith.constant 0 : i32
    return %c0_i32, %c0_i32_0 : i32, i32
  }
  func.func @transform_23(%arg0: i32, %arg1: i32) -> (i32, i32, i32) {
    %c0_i32 = arith.constant 0 : i32
    %c0_i32_0 = arith.constant 0 : i32
    %c0_i32_1 = arith.constant 0 : i32
    return %arg0, %c0_i32, %c0_i32_0 : i32, i32, i32
  }
}

module attributes {stable_mosaic.version = 11 : i64} {
  func.func @_mlm_bert_kernel(%arg0: i32, %arg1: i32, %arg2: memref<8x32xf32, #tpu.memory_space<vmem>>, %arg3: memref<1x1x8xf32, #tpu.memory_space<vmem>>, %arg4: memref<1x32xf32, #tpu.memory_space<vmem>>, %arg5: memref<1x32xf32, #tpu.memory_space<vmem>>, %arg6: memref<1x2x32x16xbf16, #tpu.memory_space<vmem>>, %arg7: memref<1x2x32x16xbf16, #tpu.memory_space<vmem>>, %arg8: memref<1x2x32x16xbf16, #tpu.memory_space<vmem>>, %arg9: memref<1x2x1x16xf32, #tpu.memory_space<vmem>>, %arg10: memref<1x2x1x16xf32, #tpu.memory_space<vmem>>, %arg11: memref<1x2x1x16xf32, #tpu.memory_space<vmem>>, %arg12: memref<1x32x32xbf16, #tpu.memory_space<vmem>>, %arg13: memref<1x1x32xf32, #tpu.memory_space<vmem>>, %arg14: memref<1x1x32xf32, #tpu.memory_space<vmem>>, %arg15: memref<1x1x32xf32, #tpu.memory_space<vmem>>, %arg16: memref<1x32x64xbf16, #tpu.memory_space<vmem>>, %arg17: memref<1x1x64xf32, #tpu.memory_space<vmem>>, %arg18: memref<1x64x32xbf16, #tpu.memory_space<vmem>>, %arg19: memref<1x1x32xf32, #tpu.memory_space<vmem>>, %arg20: memref<1x1x32xf32, #tpu.memory_space<vmem>>, %arg21: memref<1x1x32xf32, #tpu.memory_space<vmem>>, %arg22: memref<32x32xbf16, #tpu.memory_space<vmem>>, %arg23: memref<1x32xf32, #tpu.memory_space<vmem>>, %arg24: memref<1x32xf32, #tpu.memory_space<vmem>>, %arg25: memref<1x32xf32, #tpu.memory_space<vmem>>, %arg26: memref<32x128xbf16, #tpu.memory_space<vmem>>, %arg27: memref<1x128xf32, #tpu.memory_space<vmem>>, %arg28: memref<8x128xf32, #tpu.memory_space<vmem>>, %arg29: memref<8x32xf32, #tpu.memory_space<vmem>>) attributes {dimension_semantics = [#tpu.dimension_semantics<parallel>, #tpu.dimension_semantics<arbitrary>], iteration_bounds = array<i64: 2, 2>, scalar_prefetch = 0 : i64, scratch_operands = 1 : i64, tpu.core_type = #tpu.core_type<tc>, window_params = [{transform_indices = @transform_0, window_bounds = array<i64: 8, 32>}, {transform_indices = @transform_1, window_bounds = array<i64: 1, 1, 8>}, {pipeline_mode = #tpu.pipeline_mode<synchronous>, transform_indices = @transform_2, window_bounds = array<i64: 1, 32>}, {pipeline_mode = #tpu.pipeline_mode<synchronous>, transform_indices = @transform_3, window_bounds = array<i64: 1, 32>}, {transform_indices = @transform_4, window_bounds = array<i64: 1, 2, 32, 16>}, {transform_indices = @transform_5, window_bounds = array<i64: 1, 2, 32, 16>}, {transform_indices = @transform_6, window_bounds = array<i64: 1, 2, 32, 16>}, {transform_indices = @transform_7, window_bounds = array<i64: 1, 2, 1, 16>}, {transform_indices = @transform_8, window_bounds = array<i64: 1, 2, 1, 16>}, {transform_indices = @transform_9, window_bounds = array<i64: 1, 2, 1, 16>}, {transform_indices = @transform_10, window_bounds = array<i64: 1, 32, 32>}, {transform_indices = @transform_11, window_bounds = array<i64: 1, 1, 32>}, {transform_indices = @transform_12, window_bounds = array<i64: 1, 1, 32>}, {transform_indices = @transform_13, window_bounds = array<i64: 1, 1, 32>}, {transform_indices = @transform_14, window_bounds = array<i64: 1, 32, 64>}, {transform_indices = @transform_15, window_bounds = array<i64: 1, 1, 64>}, {transform_indices = @transform_16, window_bounds = array<i64: 1, 64, 32>}, {transform_indices = @transform_17, window_bounds = array<i64: 1, 1, 32>}, {transform_indices = @transform_18, window_bounds = array<i64: 1, 1, 32>}, {transform_indices = @transform_19, window_bounds = array<i64: 1, 1, 32>}, {pipeline_mode = #tpu.pipeline_mode<synchronous>, transform_indices = @transform_20, window_bounds = array<i64: 32, 32>}, {pipeline_mode = #tpu.pipeline_mode<synchronous>, transform_indices = @transform_21, window_bounds = array<i64: 1, 32>}, {pipeline_mode = #tpu.pipeline_mode<synchronous>, transform_indices = @transform_22, window_bounds = array<i64: 1, 32>}, {pipeline_mode = #tpu.pipeline_mode<synchronous>, transform_indices = @transform_23, window_bounds = array<i64: 1, 32>}, {pipeline_mode = #tpu.pipeline_mode<synchronous>, transform_indices = @transform_24, window_bounds = array<i64: 32, 128>}, {pipeline_mode = #tpu.pipeline_mode<synchronous>, transform_indices = @transform_25, window_bounds = array<i64: 1, 128>}, {transform_indices = @transform_26, window_bounds = array<i64: 8, 128>}]} {
    %c0_i32 = arith.constant 0 : i32
    %0 = arith.cmpi eq, %arg1, %c0_i32 : i32
    %1 = arith.extui %0 : i1 to i32
    %c0_i32_0 = arith.constant 0 : i32
    %2 = arith.cmpi ne, %1, %c0_i32_0 : i32
    scf.if %2 {
      %c0_117 = arith.constant 0 : index
      %c0_118 = arith.constant 0 : index
      %185 = vector.load %arg2[%c0_117, %c0_118] : memref<8x32xf32, #tpu.memory_space<vmem>>, vector<8x32xf32>
      %c0_119 = arith.constant 0 : index
      %c0_120 = arith.constant 0 : index
      %186 = vector.load %arg4[%c0_119, %c0_120] : memref<1x32xf32, #tpu.memory_space<vmem>>, vector<1x32xf32>
      %c0_121 = arith.constant 0 : index
      %c0_122 = arith.constant 0 : index
      %187 = vector.load %arg5[%c0_121, %c0_122] : memref<1x32xf32, #tpu.memory_space<vmem>>, vector<1x32xf32>
      %cst_123 = arith.constant dense<0.000000e+00> : vector<8xf32>
      %188 = vector.multi_reduction <add>, %185, %cst_123 [1] : vector<8x32xf32> to vector<8xf32>
      %189 = vector.shape_cast %188 : vector<8xf32> to vector<8x1xf32>
      %cst_124 = arith.constant 3.200000e+01 : f32
      %190 = vector.broadcast %cst_124 : f32 to vector<8x1xf32>
      %191 = arith.divf %189, %190 : vector<8x1xf32>
      %192 = vector.broadcast %191 : vector<8x1xf32> to vector<8x32xf32>
      %193 = arith.subf %185, %192 : vector<8x32xf32>
      %194 = arith.mulf %193, %193 : vector<8x32xf32>
      %cst_125 = arith.constant dense<0.000000e+00> : vector<8xf32>
      %195 = vector.multi_reduction <add>, %194, %cst_125 [1] : vector<8x32xf32> to vector<8xf32>
      %196 = vector.shape_cast %195 : vector<8xf32> to vector<8x1xf32>
      %cst_126 = arith.constant 3.200000e+01 : f32
      %197 = vector.broadcast %cst_126 : f32 to vector<8x1xf32>
      %198 = arith.divf %196, %197 : vector<8x1xf32>
      %cst_127 = arith.constant 9.99999996E-13 : f32
      %199 = vector.broadcast %cst_127 : f32 to vector<8x1xf32>
      %200 = arith.addf %198, %199 : vector<8x1xf32>
      %201 = math.rsqrt %200 : vector<8x1xf32>
      %202 = vector.broadcast %191 : vector<8x1xf32> to vector<8x32xf32>
      %203 = arith.subf %185, %202 : vector<8x32xf32>
      %204 = vector.broadcast %201 : vector<8x1xf32> to vector<8x32xf32>
      %205 = arith.mulf %203, %204 : vector<8x32xf32>
      %206 = vector.broadcast %186 : vector<1x32xf32> to vector<8x32xf32>
      %207 = arith.mulf %205, %206 : vector<8x32xf32>
      %208 = vector.broadcast %187 : vector<1x32xf32> to vector<8x32xf32>
      %209 = arith.addf %207, %208 : vector<8x32xf32>
      %c0_128 = arith.constant 0 : index
      %c0_129 = arith.constant 0 : index
      %210 = vector.load %arg29[%c0_128, %c0_129] : memref<8x32xf32, #tpu.memory_space<vmem>>, vector<8x32xf32>
      tpu.vector_store %arg29[%c0_128, %c0_129], %209 {strides = array<i32>} : memref<8x32xf32, #tpu.memory_space<vmem>>, vector<8x32xf32>,
    } else {
    }
    %c0 = arith.constant 0 : index
    %c0_1 = arith.constant 0 : index
    %3 = vector.load %arg29[%c0, %c0_1] : memref<8x32xf32, #tpu.memory_space<vmem>>, vector<8x32xf32>
    %c0_2 = arith.constant 0 : index
    %c0_3 = arith.constant 0 : index
    %c0_4 = arith.constant 0 : index
    %4 = vector.load %arg3[%c0_2, %c0_3, %c0_4] : memref<1x1x8xf32, #tpu.memory_space<vmem>>, vector<1x1x8xf32>
    %5 = vector.shape_cast %4 : vector<1x1x8xf32> to vector<1x8xf32>
    %6 = arith.truncf %3 : vector<8x32xf32> to vector<8x32xbf16>
    %c0_5 = arith.constant 0 : index
    %c0_6 = arith.constant 0 : index
    %c0_7 = arith.constant 0 : index
    %c0_8 = arith.constant 0 : index
    %7 = vector.load %arg6[%c0_5, %c0_6, %c0_7, %c0_8] : memref<1x2x32x16xbf16, #tpu.memory_space<vmem>>, vector<1x1x32x16xbf16>
    %8 = vector.shape_cast %7 : vector<1x1x32x16xbf16> to vector<32x16xbf16>
    %cst = arith.constant dense<0.000000e+00> : vector<8x16xf32>
    %9 = tpu.matmul %6, %8, %cst {dimension_numbers = #tpu.dot_dimension_numbers<[1], [0], [0], [1], [0, 0, 1, 1], [], []>} : vector<8x32xbf16>, vector<32x16xbf16>, vector<8x16xf32> -> vector<8x16xf32>
    %c0_9 = arith.constant 0 : index
    %c0_10 = arith.constant 0 : index
    %c0_11 = arith.constant 0 : index
    %c0_12 = arith.constant 0 : index
    %10 = vector.load %arg9[%c0_9, %c0_10, %c0_11, %c0_12] : memref<1x2x1x16xf32, #tpu.memory_space<vmem>>, vector<1x1x1x16xf32>
    %11 = vector.shape_cast %10 : vector<1x1x1x16xf32> to vector<1x16xf32>
    %12 = vector.broadcast %11 : vector<1x16xf32> to vector<8x16xf32>
    %13 = arith.addf %9, %12 : vector<8x16xf32>
    %c0_13 = arith.constant 0 : index
    %c0_14 = arith.constant 0 : index
    %c0_15 = arith.constant 0 : index
    %c0_16 = arith.constant 0 : index
    %14 = vector.load %arg7[%c0_13, %c0_14, %c0_15, %c0_16] : memref<1x2x32x16xbf16, #tpu.memory_space<vmem>>, vector<1x1x32x16xbf16>
    %15 = vector.shape_cast %14 : vector<1x1x32x16xbf16> to vector<32x16xbf16>
    %cst_17 = arith.constant dense<0.000000e+00> : vector<8x16xf32>
    %16 = tpu.matmul %6, %15, %cst_17 {dimension_numbers = #tpu.dot_dimension_numbers<[1], [0], [0], [1], [0, 0, 1, 1], [], []>} : vector<8x32xbf16>, vector<32x16xbf16>, vector<8x16xf32> -> vector<8x16xf32>
    %c0_18 = arith.constant 0 : index
    %c0_19 = arith.constant 0 : index
    %c0_20 = arith.constant 0 : index
    %c0_21 = arith.constant 0 : index
    %17 = vector.load %arg10[%c0_18, %c0_19, %c0_20, %c0_21] : memref<1x2x1x16xf32, #tpu.memory_space<vmem>>, vector<1x1x1x16xf32>
    %18 = vector.shape_cast %17 : vector<1x1x1x16xf32> to vector<1x16xf32>
    %19 = vector.broadcast %18 : vector<1x16xf32> to vector<8x16xf32>
    %20 = arith.addf %16, %19 : vector<8x16xf32>
    %c0_22 = arith.constant 0 : index
    %c0_23 = arith.constant 0 : index
    %c0_24 = arith.constant 0 : index
    %c0_25 = arith.constant 0 : index
    %21 = vector.load %arg8[%c0_22, %c0_23, %c0_24, %c0_25] : memref<1x2x32x16xbf16, #tpu.memory_space<vmem>>, vector<1x1x32x16xbf16>
    %22 = vector.shape_cast %21 : vector<1x1x32x16xbf16> to vector<32x16xbf16>
    %cst_26 = arith.constant dense<0.000000e+00> : vector<8x16xf32>
    %23 = tpu.matmul %6, %22, %cst_26 {dimension_numbers = #tpu.dot_dimension_numbers<[1], [0], [0], [1], [0, 0, 1, 1], [], []>} : vector<8x32xbf16>, vector<32x16xbf16>, vector<8x16xf32> -> vector<8x16xf32>
    %c0_27 = arith.constant 0 : index
    %c0_28 = arith.constant 0 : index
    %c0_29 = arith.constant 0 : index
    %c0_30 = arith.constant 0 : index
    %24 = vector.load %arg11[%c0_27, %c0_28, %c0_29, %c0_30] : memref<1x2x1x16xf32, #tpu.memory_space<vmem>>, vector<1x1x1x16xf32>
    %25 = vector.shape_cast %24 : vector<1x1x1x16xf32> to vector<1x16xf32>
    %26 = vector.broadcast %25 : vector<1x16xf32> to vector<8x16xf32>
    %27 = arith.addf %23, %26 : vector<8x16xf32>
    %28 = arith.truncf %13 : vector<8x16xf32> to vector<8x16xbf16>
    %29 = arith.truncf %20 : vector<8x16xf32> to vector<8x16xbf16>
    %cst_31 = arith.constant dense<0.000000e+00> : vector<8x8xf32>
    %30 = tpu.matmul %28, %29, %cst_31 {dimension_numbers = #tpu.dot_dimension_numbers<[1], [1], [0], [0], [0, 0, 1, 0], [], []>} : vector<8x16xbf16>, vector<8x16xbf16>, vector<8x8xf32> -> vector<8x8xf32>
    %cst_32 = arith.constant 2.500000e-01 : f32
    %31 = vector.broadcast %cst_32 : f32 to vector<8x8xf32>
    %32 = arith.mulf %30, %31 : vector<8x8xf32>
    %33 = vector.broadcast %5 : vector<1x8xf32> to vector<8x8xf32>
    %34 = arith.addf %32, %33 : vector<8x8xf32>
    %cst_33 = arith.constant dense<0xFF800000> : vector<8xf32>
    %35 = vector.multi_reduction <maximumf>, %34, %cst_33 [1] : vector<8x8xf32> to vector<8xf32>
    %36 = vector.shape_cast %35 : vector<8xf32> to vector<8x1xf32>
    %37 = vector.broadcast %36 : vector<8x1xf32> to vector<8x8xf32>
    %38 = arith.subf %34, %37 : vector<8x8xf32>
    %39 = math.exp %38 : vector<8x8xf32>
    %cst_34 = arith.constant dense<0.000000e+00> : vector<8xf32>
    %40 = vector.multi_reduction <add>, %39, %cst_34 [1] : vector<8x8xf32> to vector<8xf32>
    %41 = vector.shape_cast %40 : vector<8xf32> to vector<8x1xf32>
    %42 = tpu.reciprocal %41 {approx = true} : vector<8x1xf32> -> vector<8x1xf32>
    %43 = vector.broadcast %42 : vector<8x1xf32> to vector<8x8xf32>
    %44 = arith.mulf %39, %43 : vector<8x8xf32>
    %45 = arith.truncf %44 : vector<8x8xf32> to vector<8x8xbf16>
    %46 = arith.truncf %27 : vector<8x16xf32> to vector<8x16xbf16>
    %cst_35 = arith.constant dense<0.000000e+00> : vector<8x16xf32>
    %47 = tpu.matmul %45, %46, %cst_35 {dimension_numbers = #tpu.dot_dimension_numbers<[1], [0], [0], [1], [0, 0, 1, 1], [], []>} : vector<8x8xbf16>, vector<8x16xbf16>, vector<8x16xf32> -> vector<8x16xf32>
    %c0_36 = arith.constant 0 : index
    %c1 = arith.constant 1 : index
    %c0_37 = arith.constant 0 : index
    %c0_38 = arith.constant 0 : index
    %48 = vector.load %arg6[%c0_36, %c1, %c0_37, %c0_38] : memref<1x2x32x16xbf16, #tpu.memory_space<vmem>>, vector<1x1x32x16xbf16>
    %49 = vector.shape_cast %48 : vector<1x1x32x16xbf16> to vector<32x16xbf16>
    %cst_39 = arith.constant dense<0.000000e+00> : vector<8x16xf32>
    %50 = tpu.matmul %6, %49, %cst_39 {dimension_numbers = #tpu.dot_dimension_numbers<[1], [0], [0], [1], [0, 0, 1, 1], [], []>} : vector<8x32xbf16>, vector<32x16xbf16>, vector<8x16xf32> -> vector<8x16xf32>
    %c0_40 = arith.constant 0 : index
    %c1_41 = arith.constant 1 : index
    %c0_42 = arith.constant 0 : index
    %c0_43 = arith.constant 0 : index
    %51 = vector.load %arg9[%c0_40, %c1_41, %c0_42, %c0_43] : memref<1x2x1x16xf32, #tpu.memory_space<vmem>>, vector<1x1x1x16xf32>
    %52 = vector.shape_cast %51 : vector<1x1x1x16xf32> to vector<1x16xf32>
    %53 = vector.broadcast %52 : vector<1x16xf32> to vector<8x16xf32>
    %54 = arith.addf %50, %53 : vector<8x16xf32>
    %c0_44 = arith.constant 0 : index
    %c1_45 = arith.constant 1 : index
    %c0_46 = arith.constant 0 : index
    %c0_47 = arith.constant 0 : index
    %55 = vector.load %arg7[%c0_44, %c1_45, %c0_46, %c0_47] : memref<1x2x32x16xbf16, #tpu.memory_space<vmem>>, vector<1x1x32x16xbf16>
    %56 = vector.shape_cast %55 : vector<1x1x32x16xbf16> to vector<32x16xbf16>
    %cst_48 = arith.constant dense<0.000000e+00> : vector<8x16xf32>
    %57 = tpu.matmul %6, %56, %cst_48 {dimension_numbers = #tpu.dot_dimension_numbers<[1], [0], [0], [1], [0, 0, 1, 1], [], []>} : vector<8x32xbf16>, vector<32x16xbf16>, vector<8x16xf32> -> vector<8x16xf32>
    %c0_49 = arith.constant 0 : index
    %c1_50 = arith.constant 1 : index
    %c0_51 = arith.constant 0 : index
    %c0_52 = arith.constant 0 : index
    %58 = vector.load %arg10[%c0_49, %c1_50, %c0_51, %c0_52] : memref<1x2x1x16xf32, #tpu.memory_space<vmem>>, vector<1x1x1x16xf32>
    %59 = vector.shape_cast %58 : vector<1x1x1x16xf32> to vector<1x16xf32>
    %60 = vector.broadcast %59 : vector<1x16xf32> to vector<8x16xf32>
    %61 = arith.addf %57, %60 : vector<8x16xf32>
    %c0_53 = arith.constant 0 : index
    %c1_54 = arith.constant 1 : index
    %c0_55 = arith.constant 0 : index
    %c0_56 = arith.constant 0 : index
    %62 = vector.load %arg8[%c0_53, %c1_54, %c0_55, %c0_56] : memref<1x2x32x16xbf16, #tpu.memory_space<vmem>>, vector<1x1x32x16xbf16>
    %63 = vector.shape_cast %62 : vector<1x1x32x16xbf16> to vector<32x16xbf16>
    %cst_57 = arith.constant dense<0.000000e+00> : vector<8x16xf32>
    %64 = tpu.matmul %6, %63, %cst_57 {dimension_numbers = #tpu.dot_dimension_numbers<[1], [0], [0], [1], [0, 0, 1, 1], [], []>} : vector<8x32xbf16>, vector<32x16xbf16>, vector<8x16xf32> -> vector<8x16xf32>
    %c0_58 = arith.constant 0 : index
    %c1_59 = arith.constant 1 : index
    %c0_60 = arith.constant 0 : index
    %c0_61 = arith.constant 0 : index
    %65 = vector.load %arg11[%c0_58, %c1_59, %c0_60, %c0_61] : memref<1x2x1x16xf32, #tpu.memory_space<vmem>>, vector<1x1x1x16xf32>
    %66 = vector.shape_cast %65 : vector<1x1x1x16xf32> to vector<1x16xf32>
    %67 = vector.broadcast %66 : vector<1x16xf32> to vector<8x16xf32>
    %68 = arith.addf %64, %67 : vector<8x16xf32>
    %69 = arith.truncf %54 : vector<8x16xf32> to vector<8x16xbf16>
    %70 = arith.truncf %61 : vector<8x16xf32> to vector<8x16xbf16>
    %cst_62 = arith.constant dense<0.000000e+00> : vector<8x8xf32>
    %71 = tpu.matmul %69, %70, %cst_62 {dimension_numbers = #tpu.dot_dimension_numbers<[1], [1], [0], [0], [0, 0, 1, 0], [], []>} : vector<8x16xbf16>, vector<8x16xbf16>, vector<8x8xf32> -> vector<8x8xf32>
    %cst_63 = arith.constant 2.500000e-01 : f32
    %72 = vector.broadcast %cst_63 : f32 to vector<8x8xf32>
    %73 = arith.mulf %71, %72 : vector<8x8xf32>
    %74 = vector.broadcast %5 : vector<1x8xf32> to vector<8x8xf32>
    %75 = arith.addf %73, %74 : vector<8x8xf32>
    %cst_64 = arith.constant dense<0xFF800000> : vector<8xf32>
    %76 = vector.multi_reduction <maximumf>, %75, %cst_64 [1] : vector<8x8xf32> to vector<8xf32>
    %77 = vector.shape_cast %76 : vector<8xf32> to vector<8x1xf32>
    %78 = vector.broadcast %77 : vector<8x1xf32> to vector<8x8xf32>
    %79 = arith.subf %75, %78 : vector<8x8xf32>
    %80 = math.exp %79 : vector<8x8xf32>
    %cst_65 = arith.constant dense<0.000000e+00> : vector<8xf32>
    %81 = vector.multi_reduction <add>, %80, %cst_65 [1] : vector<8x8xf32> to vector<8xf32>
    %82 = vector.shape_cast %81 : vector<8xf32> to vector<8x1xf32>
    %83 = tpu.reciprocal %82 {approx = true} : vector<8x1xf32> -> vector<8x1xf32>
    %84 = vector.broadcast %83 : vector<8x1xf32> to vector<8x8xf32>
    %85 = arith.mulf %80, %84 : vector<8x8xf32>
    %86 = arith.truncf %85 : vector<8x8xf32> to vector<8x8xbf16>
    %87 = arith.truncf %68 : vector<8x16xf32> to vector<8x16xbf16>
    %cst_66 = arith.constant dense<0.000000e+00> : vector<8x16xf32>
    %88 = tpu.matmul %86, %87, %cst_66 {dimension_numbers = #tpu.dot_dimension_numbers<[1], [0], [0], [1], [0, 0, 1, 1], [], []>} : vector<8x8xbf16>, vector<8x16xbf16>, vector<8x16xf32> -> vector<8x16xf32>
    %89 = tpu.concatenate %47, %88 in 1 : vector<8x16xf32>, vector<8x16xf32> -> vector<8x32xf32>
    %90 = arith.truncf %89 : vector<8x32xf32> to vector<8x32xbf16>
    %c0_67 = arith.constant 0 : index
    %c0_68 = arith.constant 0 : index
    %c0_69 = arith.constant 0 : index
    %91 = vector.load %arg12[%c0_67, %c0_68, %c0_69] : memref<1x32x32xbf16, #tpu.memory_space<vmem>>, vector<1x32x32xbf16>
    %92 = vector.shape_cast %91 : vector<1x32x32xbf16> to vector<32x32xbf16>
    %cst_70 = arith.constant dense<0.000000e+00> : vector<8x32xf32>
    %93 = tpu.matmul %90, %92, %cst_70 {dimension_numbers = #tpu.dot_dimension_numbers<[1], [0], [0], [1], [0, 0, 1, 1], [], []>} : vector<8x32xbf16>, vector<32x32xbf16>, vector<8x32xf32> -> vector<8x32xf32>
    %c0_71 = arith.constant 0 : index
    %c0_72 = arith.constant 0 : index
    %c0_73 = arith.constant 0 : index
    %94 = vector.load %arg13[%c0_71, %c0_72, %c0_73] : memref<1x1x32xf32, #tpu.memory_space<vmem>>, vector<1x1x32xf32>
    %95 = vector.shape_cast %94 : vector<1x1x32xf32> to vector<1x32xf32>
    %96 = vector.broadcast %95 : vector<1x32xf32> to vector<8x32xf32>
    %97 = arith.addf %93, %96 : vector<8x32xf32>
    %98 = arith.addf %97, %3 : vector<8x32xf32>
    %c0_74 = arith.constant 0 : index
    %c0_75 = arith.constant 0 : index
    %c0_76 = arith.constant 0 : index
    %99 = vector.load %arg14[%c0_74, %c0_75, %c0_76] : memref<1x1x32xf32, #tpu.memory_space<vmem>>, vector<1x1x32xf32>
    %100 = vector.shape_cast %99 : vector<1x1x32xf32> to vector<1x32xf32>
    %c0_77 = arith.constant 0 : index
    %c0_78 = arith.constant 0 : index
    %c0_79 = arith.constant 0 : index
    %101 = vector.load %arg15[%c0_77, %c0_78, %c0_79] : memref<1x1x32xf32, #tpu.memory_space<vmem>>, vector<1x1x32xf32>
    %102 = vector.shape_cast %101 : vector<1x1x32xf32> to vector<1x32xf32>
    %cst_80 = arith.constant dense<0.000000e+00> : vector<8xf32>
    %103 = vector.multi_reduction <add>, %98, %cst_80 [1] : vector<8x32xf32> to vector<8xf32>
    %104 = vector.shape_cast %103 : vector<8xf32> to vector<8x1xf32>
    %cst_81 = arith.constant 3.200000e+01 : f32
    %105 = vector.broadcast %cst_81 : f32 to vector<8x1xf32>
    %106 = arith.divf %104, %105 : vector<8x1xf32>
    %107 = vector.broadcast %106 : vector<8x1xf32> to vector<8x32xf32>
    %108 = arith.subf %98, %107 : vector<8x32xf32>
    %109 = arith.mulf %108, %108 : vector<8x32xf32>
    %cst_82 = arith.constant dense<0.000000e+00> : vector<8xf32>
    %110 = vector.multi_reduction <add>, %109, %cst_82 [1] : vector<8x32xf32> to vector<8xf32>
    %111 = vector.shape_cast %110 : vector<8xf32> to vector<8x1xf32>
    %cst_83 = arith.constant 3.200000e+01 : f32
    %112 = vector.broadcast %cst_83 : f32 to vector<8x1xf32>
    %113 = arith.divf %111, %112 : vector<8x1xf32>
    %cst_84 = arith.constant 9.99999996E-13 : f32
    %114 = vector.broadcast %cst_84 : f32 to vector<8x1xf32>
    %115 = arith.addf %113, %114 : vector<8x1xf32>
    %116 = math.rsqrt %115 : vector<8x1xf32>
    %117 = vector.broadcast %106 : vector<8x1xf32> to vector<8x32xf32>
    %118 = arith.subf %98, %117 : vector<8x32xf32>
    %119 = vector.broadcast %116 : vector<8x1xf32> to vector<8x32xf32>
    %120 = arith.mulf %118, %119 : vector<8x32xf32>
    %121 = vector.broadcast %100 : vector<1x32xf32> to vector<8x32xf32>
    %122 = arith.mulf %120, %121 : vector<8x32xf32>
    %123 = vector.broadcast %102 : vector<1x32xf32> to vector<8x32xf32>
    %124 = arith.addf %122, %123 : vector<8x32xf32>
    %125 = arith.truncf %124 : vector<8x32xf32> to vector<8x32xbf16>
    %c0_85 = arith.constant 0 : index
    %c0_86 = arith.constant 0 : index
    %c0_87 = arith.constant 0 : index
    %126 = vector.load %arg16[%c0_85, %c0_86, %c0_87] : memref<1x32x64xbf16, #tpu.memory_space<vmem>>, vector<1x32x64xbf16>
    %127 = vector.shape_cast %126 : vector<1x32x64xbf16> to vector<32x64xbf16>
    %cst_88 = arith.constant dense<0.000000e+00> : vector<8x64xf32>
    %128 = tpu.matmul %125, %127, %cst_88 {dimension_numbers = #tpu.dot_dimension_numbers<[1], [0], [0], [1], [0, 0, 1, 1], [], []>} : vector<8x32xbf16>, vector<32x64xbf16>, vector<8x64xf32> -> vector<8x64xf32>
    %c0_89 = arith.constant 0 : index
    %c0_90 = arith.constant 0 : index
    %c0_91 = arith.constant 0 : index
    %129 = vector.load %arg17[%c0_89, %c0_90, %c0_91] : memref<1x1x64xf32, #tpu.memory_space<vmem>>, vector<1x1x64xf32>
    %130 = vector.shape_cast %129 : vector<1x1x64xf32> to vector<1x64xf32>
    %131 = vector.broadcast %130 : vector<1x64xf32> to vector<8x64xf32>
    %132 = arith.addf %128, %131 : vector<8x64xf32>
    %133 = arith.mulf %132, %132 : vector<8x64xf32>
    %134 = arith.mulf %132, %133 : vector<8x64xf32>
    %cst_92 = arith.constant 4.471500e-02 : f32
    %135 = vector.broadcast %cst_92 : f32 to vector<8x64xf32>
    %136 = arith.mulf %135, %134 : vector<8x64xf32>
    %137 = arith.addf %132, %136 : vector<8x64xf32>
    %cst_93 = arith.constant 0.797884583 : f32
    %138 = vector.broadcast %cst_93 : f32 to vector<8x64xf32>
    %139 = arith.mulf %138, %137 : vector<8x64xf32>
    %140 = math.tanh %139 : vector<8x64xf32>
    %cst_94 = arith.constant 1.000000e+00 : f32
    %141 = vector.broadcast %cst_94 : f32 to vector<8x64xf32>
    %142 = arith.addf %141, %140 : vector<8x64xf32>
    %cst_95 = arith.constant 5.000000e-01 : f32
    %143 = vector.broadcast %cst_95 : f32 to vector<8x64xf32>
    %144 = arith.mulf %143, %142 : vector<8x64xf32>
    %145 = arith.mulf %132, %144 : vector<8x64xf32>
    %146 = arith.truncf %145 : vector<8x64xf32> to vector<8x64xbf16>
    %c0_96 = arith.constant 0 : index
    %c0_97 = arith.constant 0 : index
    %c0_98 = arith.constant 0 : index
    %147 = vector.load %arg18[%c0_96, %c0_97, %c0_98] : memref<1x64x32xbf16, #tpu.memory_space<vmem>>, vector<1x64x32xbf16>
    %148 = vector.shape_cast %147 : vector<1x64x32xbf16> to vector<64x32xbf16>
    %cst_99 = arith.constant dense<0.000000e+00> : vector<8x32xf32>
    %149 = tpu.matmul %146, %148, %cst_99 {dimension_numbers = #tpu.dot_dimension_numbers<[1], [0], [0], [1], [0, 0, 1, 1], [], []>} : vector<8x64xbf16>, vector<64x32xbf16>, vector<8x32xf32> -> vector<8x32xf32>
    %c0_100 = arith.constant 0 : index
    %c0_101 = arith.constant 0 : index
    %c0_102 = arith.constant 0 : index
    %150 = vector.load %arg19[%c0_100, %c0_101, %c0_102] : memref<1x1x32xf32, #tpu.memory_space<vmem>>, vector<1x1x32xf32>
    %151 = vector.shape_cast %150 : vector<1x1x32xf32> to vector<1x32xf32>
    %152 = vector.broadcast %151 : vector<1x32xf32> to vector<8x32xf32>
    %153 = arith.addf %149, %152 : vector<8x32xf32>
    %154 = arith.addf %153, %124 : vector<8x32xf32>
    %c0_103 = arith.constant 0 : index
    %c0_104 = arith.constant 0 : index
    %c0_105 = arith.constant 0 : index
    %155 = vector.load %arg20[%c0_103, %c0_104, %c0_105] : memref<1x1x32xf32, #tpu.memory_space<vmem>>, vector<1x1x32xf32>
    %156 = vector.shape_cast %155 : vector<1x1x32xf32> to vector<1x32xf32>
    %c0_106 = arith.constant 0 : index
    %c0_107 = arith.constant 0 : index
    %c0_108 = arith.constant 0 : index
    %157 = vector.load %arg21[%c0_106, %c0_107, %c0_108] : memref<1x1x32xf32, #tpu.memory_space<vmem>>, vector<1x1x32xf32>
    %158 = vector.shape_cast %157 : vector<1x1x32xf32> to vector<1x32xf32>
    %cst_109 = arith.constant dense<0.000000e+00> : vector<8xf32>
    %159 = vector.multi_reduction <add>, %154, %cst_109 [1] : vector<8x32xf32> to vector<8xf32>
    %160 = vector.shape_cast %159 : vector<8xf32> to vector<8x1xf32>
    %cst_110 = arith.constant 3.200000e+01 : f32
    %161 = vector.broadcast %cst_110 : f32 to vector<8x1xf32>
    %162 = arith.divf %160, %161 : vector<8x1xf32>
    %163 = vector.broadcast %162 : vector<8x1xf32> to vector<8x32xf32>
    %164 = arith.subf %154, %163 : vector<8x32xf32>
    %165 = arith.mulf %164, %164 : vector<8x32xf32>
    %cst_111 = arith.constant dense<0.000000e+00> : vector<8xf32>
    %166 = vector.multi_reduction <add>, %165, %cst_111 [1] : vector<8x32xf32> to vector<8xf32>
    %167 = vector.shape_cast %166 : vector<8xf32> to vector<8x1xf32>
    %cst_112 = arith.constant 3.200000e+01 : f32
    %168 = vector.broadcast %cst_112 : f32 to vector<8x1xf32>
    %169 = arith.divf %167, %168 : vector<8x1xf32>
    %cst_113 = arith.constant 9.99999996E-13 : f32
    %170 = vector.broadcast %cst_113 : f32 to vector<8x1xf32>
    %171 = arith.addf %169, %170 : vector<8x1xf32>
    %172 = math.rsqrt %171 : vector<8x1xf32>
    %173 = vector.broadcast %162 : vector<8x1xf32> to vector<8x32xf32>
    %174 = arith.subf %154, %173 : vector<8x32xf32>
    %175 = vector.broadcast %172 : vector<8x1xf32> to vector<8x32xf32>
    %176 = arith.mulf %174, %175 : vector<8x32xf32>
    %177 = vector.broadcast %156 : vector<1x32xf32> to vector<8x32xf32>
    %178 = arith.mulf %176, %177 : vector<8x32xf32>
    %179 = vector.broadcast %158 : vector<1x32xf32> to vector<8x32xf32>
    %180 = arith.addf %178, %179 : vector<8x32xf32>
    %c0_114 = arith.constant 0 : index
    %c0_115 = arith.constant 0 : index
    %181 = vector.load %arg29[%c0_114, %c0_115] : memref<8x32xf32, #tpu.memory_space<vmem>>, vector<8x32xf32>
    tpu.vector_store %arg29[%c0_114, %c0_115], %180 {strides = array<i32>} : memref<8x32xf32, #tpu.memory_space<vmem>>, vector<8x32xf32>,
    %c1_i32 = arith.constant 1 : i32
    %182 = arith.cmpi eq, %arg1, %c1_i32 : i32
    %183 = arith.extui %182 : i1 to i32
    %c0_i32_116 = arith.constant 0 : i32
    %184 = arith.cmpi ne, %183, %c0_i32_116 : i32
    scf.if %184 {
      %185 = arith.truncf %180 : vector<8x32xf32> to vector<8x32xbf16>
      %c0_117 = arith.constant 0 : index
      %c0_118 = arith.constant 0 : index
      %186 = vector.load %arg22[%c0_117, %c0_118] : memref<32x32xbf16, #tpu.memory_space<vmem>>, vector<32x32xbf16>
      %cst_119 = arith.constant dense<0.000000e+00> : vector<8x32xf32>
      %187 = tpu.matmul %185, %186, %cst_119 {dimension_numbers = #tpu.dot_dimension_numbers<[1], [0], [0], [1], [0, 0, 1, 1], [], []>} : vector<8x32xbf16>, vector<32x32xbf16>, vector<8x32xf32> -> vector<8x32xf32>
      %c0_120 = arith.constant 0 : index
      %c0_121 = arith.constant 0 : index
      %188 = vector.load %arg23[%c0_120, %c0_121] : memref<1x32xf32, #tpu.memory_space<vmem>>, vector<1x32xf32>
      %189 = vector.broadcast %188 : vector<1x32xf32> to vector<8x32xf32>
      %190 = arith.addf %187, %189 : vector<8x32xf32>
      %191 = arith.mulf %190, %190 : vector<8x32xf32>
      %192 = arith.mulf %190, %191 : vector<8x32xf32>
      %cst_122 = arith.constant 4.471500e-02 : f32
      %193 = vector.broadcast %cst_122 : f32 to vector<8x32xf32>
      %194 = arith.mulf %193, %192 : vector<8x32xf32>
      %195 = arith.addf %190, %194 : vector<8x32xf32>
      %cst_123 = arith.constant 0.797884583 : f32
      %196 = vector.broadcast %cst_123 : f32 to vector<8x32xf32>
      %197 = arith.mulf %196, %195 : vector<8x32xf32>
      %198 = math.tanh %197 : vector<8x32xf32>
      %cst_124 = arith.constant 1.000000e+00 : f32
      %199 = vector.broadcast %cst_124 : f32 to vector<8x32xf32>
      %200 = arith.addf %199, %198 : vector<8x32xf32>
      %cst_125 = arith.constant 5.000000e-01 : f32
      %201 = vector.broadcast %cst_125 : f32 to vector<8x32xf32>
      %202 = arith.mulf %201, %200 : vector<8x32xf32>
      %203 = arith.mulf %190, %202 : vector<8x32xf32>
      %c0_126 = arith.constant 0 : index
      %c0_127 = arith.constant 0 : index
      %204 = vector.load %arg24[%c0_126, %c0_127] : memref<1x32xf32, #tpu.memory_space<vmem>>, vector<1x32xf32>
      %c0_128 = arith.constant 0 : index
      %c0_129 = arith.constant 0 : index
      %205 = vector.load %arg25[%c0_128, %c0_129] : memref<1x32xf32, #tpu.memory_space<vmem>>, vector<1x32xf32>
      %cst_130 = arith.constant dense<0.000000e+00> : vector<8xf32>
      %206 = vector.multi_reduction <add>, %203, %cst_130 [1] : vector<8x32xf32> to vector<8xf32>
      %207 = vector.shape_cast %206 : vector<8xf32> to vector<8x1xf32>
      %cst_131 = arith.constant 3.200000e+01 : f32
      %208 = vector.broadcast %cst_131 : f32 to vector<8x1xf32>
      %209 = arith.divf %207, %208 : vector<8x1xf32>
      %210 = vector.broadcast %209 : vector<8x1xf32> to vector<8x32xf32>
      %211 = arith.subf %203, %210 : vector<8x32xf32>
      %212 = arith.mulf %211, %211 : vector<8x32xf32>
      %cst_132 = arith.constant dense<0.000000e+00> : vector<8xf32>
      %213 = vector.multi_reduction <add>, %212, %cst_132 [1] : vector<8x32xf32> to vector<8xf32>
      %214 = vector.shape_cast %213 : vector<8xf32> to vector<8x1xf32>
      %cst_133 = arith.constant 3.200000e+01 : f32
      %215 = vector.broadcast %cst_133 : f32 to vector<8x1xf32>
      %216 = arith.divf %214, %215 : vector<8x1xf32>
      %cst_134 = arith.constant 9.99999996E-13 : f32
      %217 = vector.broadcast %cst_134 : f32 to vector<8x1xf32>
      %218 = arith.addf %216, %217 : vector<8x1xf32>
      %219 = math.rsqrt %218 : vector<8x1xf32>
      %220 = vector.broadcast %209 : vector<8x1xf32> to vector<8x32xf32>
      %221 = arith.subf %203, %220 : vector<8x32xf32>
      %222 = vector.broadcast %219 : vector<8x1xf32> to vector<8x32xf32>
      %223 = arith.mulf %221, %222 : vector<8x32xf32>
      %224 = vector.broadcast %204 : vector<1x32xf32> to vector<8x32xf32>
      %225 = arith.mulf %223, %224 : vector<8x32xf32>
      %226 = vector.broadcast %205 : vector<1x32xf32> to vector<8x32xf32>
      %227 = arith.addf %225, %226 : vector<8x32xf32>
      %228 = arith.truncf %227 : vector<8x32xf32> to vector<8x32xbf16>
      %c0_135 = arith.constant 0 : index
      %c0_136 = arith.constant 0 : index
      %229 = vector.load %arg26[%c0_135, %c0_136] : memref<32x128xbf16, #tpu.memory_space<vmem>>, vector<32x128xbf16>
      %cst_137 = arith.constant dense<0.000000e+00> : vector<8x128xf32>
      %230 = tpu.matmul %228, %229, %cst_137 {dimension_numbers = #tpu.dot_dimension_numbers<[1], [0], [0], [1], [0, 0, 1, 1], [], []>} : vector<8x32xbf16>, vector<32x128xbf16>, vector<8x128xf32> -> vector<8x128xf32>
      %c0_138 = arith.constant 0 : index
      %c0_139 = arith.constant 0 : index
      %231 = vector.load %arg27[%c0_138, %c0_139] : memref<1x128xf32, #tpu.memory_space<vmem>>, vector<1x128xf32>
      %232 = vector.broadcast %231 : vector<1x128xf32> to vector<8x128xf32>
      %233 = arith.addf %230, %232 : vector<8x128xf32>
      %c0_140 = arith.constant 0 : index
      %c0_141 = arith.constant 0 : index
      %234 = vector.load %arg28[%c0_140, %c0_141] : memref<8x128xf32, #tpu.memory_space<vmem>>, vector<8x128xf32>
      tpu.vector_store %arg28[%c0_140, %c0_141], %233 {strides = array<i32>} : memref<8x128xf32, #tpu.memory_space<vmem>>, vector<8x128xf32>,
    } else {
    }
    return
  }
  func.func @transform_0(%arg0: i32, %arg1: i32) -> (i32, i32) {
    %c0_i32 = arith.constant 0 : i32
    %c0_i32_0 = arith.constant 0 : i32
    return %arg0, %c0_i32 : i32, i32
  }
  func.func @transform_1(%arg0: i32, %arg1: i32) -> (i32, i32, i32) {
    %c0_i32 = arith.constant 0 : i32
    %c0_i32_0 = arith.constant 0 : i32
    %c0_i32_1 = arith.constant 0 : i32
    return %arg0, %c0_i32, %c0_i32_0 : i32, i32, i32
  }
  func.func @transform_2(%arg0: i32, %arg1: i32) -> (i32, i32) {
    %c0_i32 = arith.constant 0 : i32
    %c0_i32_0 = arith.constant 0 : i32
    %c0_i32_1 = arith.constant 0 : i32
    return %c0_i32, %c0_i32_0 : i32, i32
  }
  func.func @transform_3(%arg0: i32, %arg1: i32) -> (i32, i32) {
    %c0_i32 = arith.constant 0 : i32
    %c0_i32_0 = arith.constant 0 : i32
    %c0_i32_1 = arith.constant 0 : i32
    return %c0_i32, %c0_i32_0 : i32, i32
  }
  func.func @transform_4(%arg0: i32, %arg1: i32) -> (i32, i32, i32, i32) {
    %c0_i32 = arith.constant 0 : i32
    %c0_i32_0 = arith.constant 0 : i32
    %c0_i32_1 = arith.constant 0 : i32
    %c0_i32_2 = arith.constant 0 : i32
    return %arg1, %c0_i32, %c0_i32_0, %c0_i32_1 : i32, i32, i32, i32
  }
  func.func @transform_5(%arg0: i32, %arg1: i32) -> (i32, i32, i32, i32) {
    %c0_i32 = arith.constant 0 : i32
    %c0_i32_0 = arith.constant 0 : i32
    %c0_i32_1 = arith.constant 0 : i32
    %c0_i32_2 = arith.constant 0 : i32
    return %arg1, %c0_i32, %c0_i32_0, %c0_i32_1 : i32, i32, i32, i32
  }
  func.func @transform_6(%arg0: i32, %arg1: i32) -> (i32, i32, i32, i32) {
    %c0_i32 = arith.constant 0 : i32
    %c0_i32_0 = arith.constant 0 : i32
    %c0_i32_1 = arith.constant 0 : i32
    %c0_i32_2 = arith.constant 0 : i32
    return %arg1, %c0_i32, %c0_i32_0, %c0_i32_1 : i32, i32, i32, i32
  }
  func.func @transform_7(%arg0: i32, %arg1: i32) -> (i32, i32, i32, i32) {
    %c0_i32 = arith.constant 0 : i32
    %c0_i32_0 = arith.constant 0 : i32
    %c0_i32_1 = arith.constant 0 : i32
    %c0_i32_2 = arith.constant 0 : i32
    return %arg1, %c0_i32, %c0_i32_0, %c0_i32_1 : i32, i32, i32, i32
  }
  func.func @transform_8(%arg0: i32, %arg1: i32) -> (i32, i32, i32, i32) {
    %c0_i32 = arith.constant 0 : i32
    %c0_i32_0 = arith.constant 0 : i32
    %c0_i32_1 = arith.constant 0 : i32
    %c0_i32_2 = arith.constant 0 : i32
    return %arg1, %c0_i32, %c0_i32_0, %c0_i32_1 : i32, i32, i32, i32
  }
  func.func @transform_9(%arg0: i32, %arg1: i32) -> (i32, i32, i32, i32) {
    %c0_i32 = arith.constant 0 : i32
    %c0_i32_0 = arith.constant 0 : i32
    %c0_i32_1 = arith.constant 0 : i32
    %c0_i32_2 = arith.constant 0 : i32
    return %arg1, %c0_i32, %c0_i32_0, %c0_i32_1 : i32, i32, i32, i32
  }
  func.func @transform_10(%arg0: i32, %arg1: i32) -> (i32, i32, i32) {
    %c0_i32 = arith.constant 0 : i32
    %c0_i32_0 = arith.constant 0 : i32
    %c0_i32_1 = arith.constant 0 : i32
    return %arg1, %c0_i32, %c0_i32_0 : i32, i32, i32
  }
  func.func @transform_11(%arg0: i32, %arg1: i32) -> (i32, i32, i32) {
    %c0_i32 = arith.constant 0 : i32
    %c0_i32_0 = arith.constant 0 : i32
    %c0_i32_1 = arith.constant 0 : i32
    return %arg1, %c0_i32, %c0_i32_0 : i32, i32, i32
  }
  func.func @transform_12(%arg0: i32, %arg1: i32) -> (i32, i32, i32) {
    %c0_i32 = arith.constant 0 : i32
    %c0_i32_0 = arith.constant 0 : i32
    %c0_i32_1 = arith.constant 0 : i32
    return %arg1, %c0_i32, %c0_i32_0 : i32, i32, i32
  }
  func.func @transform_13(%arg0: i32, %arg1: i32) -> (i32, i32, i32) {
    %c0_i32 = arith.constant 0 : i32
    %c0_i32_0 = arith.constant 0 : i32
    %c0_i32_1 = arith.constant 0 : i32
    return %arg1, %c0_i32, %c0_i32_0 : i32, i32, i32
  }
  func.func @transform_14(%arg0: i32, %arg1: i32) -> (i32, i32, i32) {
    %c0_i32 = arith.constant 0 : i32
    %c0_i32_0 = arith.constant 0 : i32
    %c0_i32_1 = arith.constant 0 : i32
    return %arg1, %c0_i32, %c0_i32_0 : i32, i32, i32
  }
  func.func @transform_15(%arg0: i32, %arg1: i32) -> (i32, i32, i32) {
    %c0_i32 = arith.constant 0 : i32
    %c0_i32_0 = arith.constant 0 : i32
    %c0_i32_1 = arith.constant 0 : i32
    return %arg1, %c0_i32, %c0_i32_0 : i32, i32, i32
  }
  func.func @transform_16(%arg0: i32, %arg1: i32) -> (i32, i32, i32) {
    %c0_i32 = arith.constant 0 : i32
    %c0_i32_0 = arith.constant 0 : i32
    %c0_i32_1 = arith.constant 0 : i32
    return %arg1, %c0_i32, %c0_i32_0 : i32, i32, i32
  }
  func.func @transform_17(%arg0: i32, %arg1: i32) -> (i32, i32, i32) {
    %c0_i32 = arith.constant 0 : i32
    %c0_i32_0 = arith.constant 0 : i32
    %c0_i32_1 = arith.constant 0 : i32
    return %arg1, %c0_i32, %c0_i32_0 : i32, i32, i32
  }
  func.func @transform_18(%arg0: i32, %arg1: i32) -> (i32, i32, i32) {
    %c0_i32 = arith.constant 0 : i32
    %c0_i32_0 = arith.constant 0 : i32
    %c0_i32_1 = arith.constant 0 : i32
    return %arg1, %c0_i32, %c0_i32_0 : i32, i32, i32
  }
  func.func @transform_19(%arg0: i32, %arg1: i32) -> (i32, i32, i32) {
    %c0_i32 = arith.constant 0 : i32
    %c0_i32_0 = arith.constant 0 : i32
    %c0_i32_1 = arith.constant 0 : i32
    return %arg1, %c0_i32, %c0_i32_0 : i32, i32, i32
  }
  func.func @transform_20(%arg0: i32, %arg1: i32) -> (i32, i32) {
    %c0_i32 = arith.constant 0 : i32
    %c0_i32_0 = arith.constant 0 : i32
    %c0_i32_1 = arith.constant 0 : i32
    return %c0_i32, %c0_i32_0 : i32, i32
  }
  func.func @transform_21(%arg0: i32, %arg1: i32) -> (i32, i32) {
    %c0_i32 = arith.constant 0 : i32
    %c0_i32_0 = arith.constant 0 : i32
    %c0_i32_1 = arith.constant 0 : i32
    return %c0_i32, %c0_i32_0 : i32, i32
  }
  func.func @transform_22(%arg0: i32, %arg1: i32) -> (i32, i32) {
    %c0_i32 = arith.constant 0 : i32
    %c0_i32_0 = arith.constant 0 : i32
    %c0_i32_1 = arith.constant 0 : i32
    return %c0_i32, %c0_i32_0 : i32, i32
  }
  func.func @transform_23(%arg0: i32, %arg1: i32) -> (i32, i32) {
    %c0_i32 = arith.constant 0 : i32
    %c0_i32_0 = arith.constant 0 : i32
    %c0_i32_1 = arith.constant 0 : i32
    return %c0_i32, %c0_i32_0 : i32, i32
  }
  func.func @transform_24(%arg0: i32, %arg1: i32) -> (i32, i32) {
    %c0_i32 = arith.constant 0 : i32
    %c0_i32_0 = arith.constant 0 : i32
    %c0_i32_1 = arith.constant 0 : i32
    return %c0_i32, %c0_i32_0 : i32, i32
  }
  func.func @transform_25(%arg0: i32, %arg1: i32) -> (i32, i32) {
    %c0_i32 = arith.constant 0 : i32
    %c0_i32_0 = arith.constant 0 : i32
    %c0_i32_1 = arith.constant 0 : i32
    return %c0_i32, %c0_i32_0 : i32, i32
  }
  func.func @transform_26(%arg0: i32, %arg1: i32) -> (i32, i32) {
    %c0_i32 = arith.constant 0 : i32
    %c0_i32_0 = arith.constant 0 : i32
    return %arg0, %c0_i32 : i32, i32
  }
}

</mosaic_0001>

<llo_original>
// kernel: custom_conditional_bert_forward.2
$region0: #{custom_conditional_bert_forward.2}
  #allocation0 [shape = 'u32[]', space=smem, size = 0x4, offset = 0x4, fixed_abs, tag = 'smem constant byte address 0x4 - core index']
  #allocation1 [shape = 'u32[144,128]{1,0:T(1,128)}', space=vmem, size = 0x12000, scoped, tag = 'internal scratch']
  #allocation2 [shape = 'f32[8,32]{1,0:T(8,128)}', space=vmem, size = 0x1000, scoped, tag = 'scratch operand']
  %s0 = inlined_call_operand.vmem [shape: f32[16,32], index: 0, kind: input, shape index: {}]
  %s1 = inlined_call_operand.vmem [shape: f32[2,1,8], index: 1, kind: input, shape index: {}]
  %s2 = inlined_call_operand.vmem [shape: s32[2,8,1], index: 2, kind: input, shape index: {}]
  %s3 = inlined_call_operand.vmem [shape: f32[1,32], index: 3, kind: input, shape index: {}]
  %s4 = inlined_call_operand.vmem [shape: f32[1,32], index: 4, kind: input, shape index: {}]
  %s5 = inlined_call_operand.vmem [shape: bf16[2,2,32,16], index: 5, kind: input, shape index: {}]
  %s6 = inlined_call_operand.vmem [shape: bf16[2,2,32,16], index: 6, kind: input, shape index: {}]
  %s7 = inlined_call_operand.vmem [shape: bf16[2,2,32,16], index: 7, kind: input, shape index: {}]
  %s8 = inlined_call_operand.vmem [shape: f32[2,2,1,16], index: 8, kind: input, shape index: {}, may-alias: {8,9,10}]
  %s9 = inlined_call_operand.vmem [shape: f32[2,2,1,16], index: 9, kind: input, shape index: {}, may-alias: {8,9,10}]
  %s10 = inlined_call_operand.vmem [shape: f32[2,2,1,16], index: 10, kind: input, shape index: {}, may-alias: {8,9,10}]
  %s11 = inlined_call_operand.vmem [shape: bf16[2,32,32], index: 11, kind: input, shape index: {}]
  %s12 = inlined_call_operand.vmem [shape: f32[2,1,32], index: 12, kind: input, shape index: {}, may-alias: {12,14,18,20}]
  %s13 = inlined_call_operand.vmem [shape: f32[2,1,32], index: 13, kind: input, shape index: {}, may-alias: {13,19}]
  %s14 = inlined_call_operand.vmem [shape: f32[2,1,32], index: 14, kind: input, shape index: {}, may-alias: {12,14,18,20}]
  %s15 = inlined_call_operand.hbm [shape: bf16[2,32,64], index: 15, kind: input, shape index: {}]
  %s16 = inlined_call_operand.vmem [shape: f32[2,1,64], index: 16, kind: input, shape index: {}]
  %s17 = inlined_call_operand.vmem [shape: bf16[2,64,32], index: 17, kind: input, shape index: {}]
  %s18 = inlined_call_operand.vmem [shape: f32[2,1,32], index: 18, kind: input, shape index: {}, may-alias: {12,14,18,20}]
  %s19 = inlined_call_operand.vmem [shape: f32[2,1,32], index: 19, kind: input, shape index: {}, may-alias: {13,19}]
  %s20 = inlined_call_operand.vmem [shape: f32[2,1,32], index: 20, kind: input, shape index: {}, may-alias: {12,14,18,20}]
  %s21 = inlined_call_operand.hbm [shape: bf16[32,128], index: 21, kind: input, shape index: {}]
  %s22 = inlined_call_operand.vmem [shape: f32[1,128], index: 22, kind: input, shape index: {}]
  %s23 = inlined_call_operand.vmem [shape: s32[2,8,1], index: 23, kind: output, shape index: {}]
  %s24 = sld [smem:[#allocation0]]
  $region141: #{custom_conditional_bert_forward.2} parent=0
    _
  %s26 = ssub.s32 1, %s24
  %s27 = scalar_select 0, %s26, %s24
  $region1: #{custom_conditional_bert_forward.2} parent=0
    #allocation3 [shape = 'u8[16384]{0}', space=vmem, size = 0x4000, scoped, tag = 'input window, operand 15']
    #allocation4 [shape = 's32[2]{0}', space=sflag, size = 0x8, scoped, tag = 'scoped memory for custom_conditional_bert_forward.2']
    #allocation5 [shape = 'u8[8192]{0}', space=vmem, size = 0x2000, scoped, tag = 'input window, operand 21, single buffered']
    #allocation6 [shape = 's32[1]{0}', space=sflag, size = 0x4, scoped, tag = 'scoped memory for custom_conditional_bert_forward.2']
    %28 = vsyncpa [#allocation4], 0
    %s29 = scalar_lea.sflag [#allocation4], 1
    %30 = vsyncpa %s29, 0
    %31 = vsyncpa [#allocation6], 0
    loop: start=0, step=1, limit=6
    $region2: #{custom_conditional_bert_forward.2} parent=1 // loop_pre_header
      _
    $region3: #{custom_conditional_bert_forward.2} parent=1 // loop_header
      %s33 = sphi 0, %s37
      %p34 = scmp.ge.s32.totalorder %s33, 6
      %s40 = sphi 0, %s52
      %s41 = sphi 0, %s48
      %s42 = sphi 0, %s40
      %s43 = sphi 0, %s41
      %s44 = sphi 0, %s42
      %s45 = sphi 0, %s43
      %s55 = sphi 0, %s57
      %s58 = sphi 0, %s55
      %s59 = sphi 0, %s58
      %s75 = sphi 0, %s59
      %s81 = sphi 0, %s83
      %s84 = sphi 0, %s81
      %s85 = sphi 0, %s84
      %s101 = sphi 0, %s85
      %s107 = sphi 0, %s109
      %s110 = sphi 0, %s107
      %s111 = sphi 0, %s110
      %s127 = sphi 0, %s111
      %s131 = sphi 0, %s131
      %s133 = sphi 0, %s131
      %s134 = sphi 0, %s133
      %s148 = sphi 0, %s134
      %s152 = sphi 0, %s152
      %s154 = sphi 0, %s152
      %s155 = sphi 0, %s154
      %s169 = sphi 0, %s155
      %s175 = sphi 0, %s177
      %s178 = sphi 0, %s175
      %s179 = sphi 0, %s178
      %s195 = sphi 0, %s179
      %s201 = sphi 0, %s203
      %s204 = sphi 0, %s201
      %s205 = sphi 0, %s204
      %s221 = sphi 0, %s205
      %s227 = sphi 0, %s229
      %s230 = sphi 0, %s227
      %s231 = sphi 0, %s230
      %s247 = sphi 0, %s231
      %s253 = sphi 0, %s255
      %s256 = sphi 0, %s253
      %s257 = sphi 0, %s256
      %s273 = sphi 0, %s257
      %s279 = sphi 0, %s281
      %s282 = sphi 0, %s279
      %s283 = sphi 0, %s282
      %s299 = sphi 0, %s283
      %s305 = sphi 0, %s307
      %s308 = sphi 0, %s305
      %s309 = sphi 0, %s308
      %s325 = sphi 0, %s309
      %s331 = sphi 0, %s333
      %s334 = sphi 0, %s331
      %s335 = sphi 0, %s334
      %s351 = sphi 0, %s335
      %s357 = sphi 0, %s359
      %s360 = sphi 0, %s357
      %s361 = sphi 0, %s360
      %s377 = sphi 0, %s361
      %s383 = sphi 0, %s385
      %s386 = sphi 0, %s383
      %s387 = sphi 0, %s386
      %s403 = sphi 0, %s387
      %s409 = sphi 0, %s411
      %s412 = sphi 0, %s409
      %s413 = sphi 0, %s412
      %s429 = sphi 0, %s413
      %s435 = sphi 0, %s437
      %s438 = sphi 0, %s435
      %s439 = sphi 0, %s438
      %s455 = sphi 0, %s439
      %s461 = sphi 0, %s463
      %s464 = sphi 0, %s461
      %s465 = sphi 0, %s464
      %s481 = sphi 0, %s465
      %s487 = sphi 0, %s489
      %s490 = sphi 0, %s487
      %s491 = sphi 0, %s490
      %s507 = sphi 0, %s491
      %s513 = sphi 0, %s515
      %s516 = sphi 0, %s513
      %s517 = sphi 0, %s516
      %s533 = sphi 0, %s517
      %s539 = sphi 0, %s541
      %s542 = sphi 0, %s539
      %s543 = sphi 0, %s542
      %s559 = sphi 0, %s543
      %s565 = sphi 0, %s567
      %s568 = sphi 0, %s565
      %s569 = sphi 0, %s568
      %s585 = sphi 0, %s569
      %s589 = sphi 0, %s589
      %s591 = sphi 0, %s589
      %s592 = sphi 0, %s591
      %s606 = sphi 0, %s592
      %s610 = sphi 0, %s610
      %s612 = sphi 0, %s610
      %s613 = sphi 0, %s612
      %s627 = sphi 0, %s613
      %s633 = sphi 0, %s635
      %s636 = sphi 0, %s633
      %s637 = sphi 0, %s636
      %s653 = sphi 0, %s637
    $region4: #{custom_conditional_bert_forward.2} parent=1 // loop_header_branch
      %36 = sbr.rel (%p34) target = $region8
    $region5: #{custom_conditional_bert_forward.2} parent=1 // loop_body
      %s38 = ssub.s32 %s33, 1
      %s39 = ssub.s32 %s33, 2
      %s46 = sadd.s32 1, %s41
      %p47 = scmp.ge.s32.totalorder %s46, 2
      %s48 = scalar_select %p47, 0, %s46
      %s49 = sadd.s32 1, %s40
      %s50 = scalar_select %p47, %s49, %s40
      %p51 = scmp.ge.s32.totalorder %s50, 2
      %s52 = scalar_select %p51, 0, %s50
      %s53 = ssub.s32 %s40, %s52
      %p54 = scmp.eq.s32.totalorder %s53, 0
      %s56 = sadd.s32 %s55, 1
      %s57 = scalar_select %p54, %s55, %s56
      %p60 = pneg %p54
      %p61 = scmp.eq.s32.totalorder %s33, 3
      %p62 = por %p60, %p61
      %p63 = scmp.ne.s32.totalorder %s55, %s58
      %p64 = scmp.eq.s32.totalorder %s33, 0
      %p65 = por %p63, %p64
      %p66 = scmp.ne.s32.totalorder %s55, %s58
      %p67 = scmp.eq.s32.totalorder %s38, 3
      %p68 = por %p66, %p67
      %p69 = scmp.ne.s32.totalorder %s58, %s59
      %p70 = scmp.eq.s32.totalorder %s38, 0
      %p71 = por %p69, %p70
      %p72 = scmp.ne.s32.totalorder %s58, %s59
      %p73 = scmp.eq.s32.totalorder %s39, 3
      %p74 = por %p72, %p73
      %p76 = scmp.ne.s32.totalorder %s59, %s75
      %p77 = scmp.eq.s32.totalorder %s39, 0
      %p78 = por %p76, %p77
      %s79 = ssub.s32 %s40, %s52
      %p80 = scmp.eq.s32.totalorder %s79, 0
      %s82 = sadd.s32 %s81, 1
      %s83 = scalar_select %p80, %s81, %s82
      %p86 = pneg %p80
      %p87 = scmp.eq.s32.totalorder %s33, 3
      %p88 = por %p86, %p87
      %p89 = scmp.ne.s32.totalorder %s81, %s84
      %p90 = scmp.eq.s32.totalorder %s33, 0
      %p91 = por %p89, %p90
      %p92 = scmp.ne.s32.totalorder %s81, %s84
      %p93 = scmp.eq.s32.totalorder %s38, 3
      %p94 = por %p92, %p93
      %p95 = scmp.ne.s32.totalorder %s84, %s85
      %p96 = scmp.eq.s32.totalorder %s38, 0
      %p97 = por %p95, %p96
      %p98 = scmp.ne.s32.totalorder %s84, %s85
      %p99 = scmp.eq.s32.totalorder %s39, 3
      %p100 = por %p98, %p99
      %p102 = scmp.ne.s32.totalorder %s85, %s101
      %p103 = scmp.eq.s32.totalorder %s39, 0
      %p104 = por %p102, %p103
      %s105 = ssub.s32 %s40, %s52
      %p106 = scmp.eq.s32.totalorder %s105, 0
      %s108 = sadd.s32 %s107, 1
      %s109 = scalar_select %p106, %s107, %s108
      %p112 = pneg %p106
      %p113 = scmp.eq.s32.totalorder %s33, 3
      %p114 = por %p112, %p113
      %p115 = scmp.ne.s32.totalorder %s107, %s110
      %p116 = scmp.eq.s32.totalorder %s33, 0
      %p117 = por %p115, %p116
      %p118 = scmp.ne.s32.totalorder %s107, %s110
      %p119 = scmp.eq.s32.totalorder %s38, 3
      %p120 = por %p118, %p119
      %p121 = scmp.ne.s32.totalorder %s110, %s111
      %p122 = scmp.eq.s32.totalorder %s38, 0
      %p123 = por %p121, %p122
      %p124 = scmp.ne.s32.totalorder %s110, %s111
      %p125 = scmp.eq.s32.totalorder %s39, 3
      %p126 = por %p124, %p125
      %p128 = scmp.ne.s32.totalorder %s111, %s127
      %p129 = scmp.eq.s32.totalorder %s39, 0
      %p130 = por %p128, %p129
      %s132 = sadd.s32 %s131, 1
      %p135 = scmp.eq.s32.totalorder %s33, 3
      %p136 = scmp.ne.s32.totalorder %s131, %s133
      %p137 = scmp.eq.s32.totalorder %s33, 0
      %p138 = por %p136, %p137
      %p139 = scmp.ne.s32.totalorder %s131, %s133
      %p140 = scmp.eq.s32.totalorder %s38, 3
      %p141 = por %p139, %p140
      %p142 = scmp.ne.s32.totalorder %s133, %s134
      %p143 = scmp.eq.s32.totalorder %s38, 0
      %p144 = por %p142, %p143
      %p145 = scmp.ne.s32.totalorder %s133, %s134
      %p146 = scmp.eq.s32.totalorder %s39, 3
      %p147 = por %p145, %p146
      %p149 = scmp.ne.s32.totalorder %s134, %s148
      %p150 = scmp.eq.s32.totalorder %s39, 0
      %p151 = por %p149, %p150
      %s153 = sadd.s32 %s152, 1
      %p156 = scmp.eq.s32.totalorder %s33, 3
      %p157 = scmp.ne.s32.totalorder %s152, %s154
      %p158 = scmp.eq.s32.totalorder %s33, 0
      %p159 = por %p157, %p158
      %p160 = scmp.ne.s32.totalorder %s152, %s154
      %p161 = scmp.eq.s32.totalorder %s38, 3
      %p162 = por %p160, %p161
      %p163 = scmp.ne.s32.totalorder %s154, %s155
      %p164 = scmp.eq.s32.totalorder %s38, 0
      %p165 = por %p163, %p164
      %p166 = scmp.ne.s32.totalorder %s154, %s155
      %p167 = scmp.eq.s32.totalorder %s39, 3
      %p168 = por %p166, %p167
      %p170 = scmp.ne.s32.totalorder %s155, %s169
      %p171 = scmp.eq.s32.totalorder %s39, 0
      %p172 = por %p170, %p171
      %s173 = ssub.s32 %s41, %s48
      %p174 = scmp.eq.s32.totalorder %s173, 0
      %s176 = sadd.s32 %s175, 1
      %s177 = scalar_select %p174, %s175, %s176
      %p180 = pneg %p174
      %p181 = scmp.eq.s32.totalorder %s33, 3
      %p182 = por %p180, %p181
      %p183 = scmp.ne.s32.totalorder %s175, %s178
      %p184 = scmp.eq.s32.totalorder %s33, 0
      %p185 = por %p183, %p184
      %p186 = scmp.ne.s32.totalorder %s175, %s178
      %p187 = scmp.eq.s32.totalorder %s38, 3
      %p188 = por %p186, %p187
      %p189 = scmp.ne.s32.totalorder %s178, %s179
      %p190 = scmp.eq.s32.totalorder %s38, 0
      %p191 = por %p189, %p190
      %p192 = scmp.ne.s32.totalorder %s178, %s179
      %p193 = scmp.eq.s32.totalorder %s39, 3
      %p194 = por %p192, %p193
      %p196 = scmp.ne.s32.totalorder %s179, %s195
      %p197 = scmp.eq.s32.totalorder %s39, 0
      %p198 = por %p196, %p197
      %s199 = ssub.s32 %s41, %s48
      %p200 = scmp.eq.s32.totalorder %s199, 0
      %s202 = sadd.s32 %s201, 1
      %s203 = scalar_select %p200, %s201, %s202
      %p206 = pneg %p200
      %p207 = scmp.eq.s32.totalorder %s33, 3
      %p208 = por %p206, %p207
      %p209 = scmp.ne.s32.totalorder %s201, %s204
      %p210 = scmp.eq.s32.totalorder %s33, 0
      %p211 = por %p209, %p210
      %p212 = scmp.ne.s32.totalorder %s201, %s204
      %p213 = scmp.eq.s32.totalorder %s38, 3
      %p214 = por %p212, %p213
      %p215 = scmp.ne.s32.totalorder %s204, %s205
      %p216 = scmp.eq.s32.totalorder %s38, 0
      %p217 = por %p215, %p216
      %p218 = scmp.ne.s32.totalorder %s204, %s205
      %p219 = scmp.eq.s32.totalorder %s39, 3
      %p220 = por %p218, %p219
      %p222 = scmp.ne.s32.totalorder %s205, %s221
      %p223 = scmp.eq.s32.totalorder %s39, 0
      %p224 = por %p222, %p223
      %s225 = ssub.s32 %s41, %s48
      %p226 = scmp.eq.s32.totalorder %s225, 0
      %s228 = sadd.s32 %s227, 1
      %s229 = scalar_select %p226, %s227, %s228
      %p232 = pneg %p226
      %p233 = scmp.eq.s32.totalorder %s33, 3
      %p234 = por %p232, %p233
      %p235 = scmp.ne.s32.totalorder %s227, %s230
      %p236 = scmp.eq.s32.totalorder %s33, 0
      %p237 = por %p235, %p236
      %p238 = scmp.ne.s32.totalorder %s227, %s230
      %p239 = scmp.eq.s32.totalorder %s38, 3
      %p240 = por %p238, %p239
      %p241 = scmp.ne.s32.totalorder %s230, %s231
      %p242 = scmp.eq.s32.totalorder %s38, 0
      %p243 = por %p241, %p242
      %p244 = scmp.ne.s32.totalorder %s230, %s231
      %p245 = scmp.eq.s32.totalorder %s39, 3
      %p246 = por %p244, %p245
      %p248 = scmp.ne.s32.totalorder %s231, %s247
      %p249 = scmp.eq.s32.totalorder %s39, 0
      %p250 = por %p248, %p249
      %s251 = ssub.s32 %s41, %s48
      %p252 = scmp.eq.s32.totalorder %s251, 0
      %s254 = sadd.s32 %s253, 1
      %s255 = scalar_select %p252, %s253, %s254
      %p258 = pneg %p252
      %p259 = scmp.eq.s32.totalorder %s33, 3
      %p260 = por %p258, %p259
      %p261 = scmp.ne.s32.totalorder %s253, %s256
      %p262 = scmp.eq.s32.totalorder %s33, 0
      %p263 = por %p261, %p262
      %p264 = scmp.ne.s32.totalorder %s253, %s256
      %p265 = scmp.eq.s32.totalorder %s38, 3
      %p266 = por %p264, %p265
      %p267 = scmp.ne.s32.totalorder %s256, %s257
      %p268 = scmp.eq.s32.totalorder %s38, 0
      %p269 = por %p267, %p268
      %p270 = scmp.ne.s32.totalorder %s256, %s257
      %p271 = scmp.eq.s32.totalorder %s39, 3
      %p272 = por %p270, %p271
      %p274 = scmp.ne.s32.totalorder %s257, %s273
      %p275 = scmp.eq.s32.totalorder %s39, 0
      %p276 = por %p274, %p275
      %s277 = ssub.s32 %s41, %s48
      %p278 = scmp.eq.s32.totalorder %s277, 0
      %s280 = sadd.s32 %s279, 1
      %s281 = scalar_select %p278, %s279, %s280
      %p284 = pneg %p278
      %p285 = scmp.eq.s32.totalorder %s33, 3
      %p286 = por %p284, %p285
      %p287 = scmp.ne.s32.totalorder %s279, %s282
      %p288 = scmp.eq.s32.totalorder %s33, 0
      %p289 = por %p287, %p288
      %p290 = scmp.ne.s32.totalorder %s279, %s282
      %p291 = scmp.eq.s32.totalorder %s38, 3
      %p292 = por %p290, %p291
      %p293 = scmp.ne.s32.totalorder %s282, %s283
      %p294 = scmp.eq.s32.totalorder %s38, 0
      %p295 = por %p293, %p294
      %p296 = scmp.ne.s32.totalorder %s282, %s283
      %p297 = scmp.eq.s32.totalorder %s39, 3
      %p298 = por %p296, %p297
      %p300 = scmp.ne.s32.totalorder %s283, %s299
      %p301 = scmp.eq.s32.totalorder %s39, 0
      %p302 = por %p300, %p301
      %s303 = ssub.s32 %s41, %s48
      %p304 = scmp.eq.s32.totalorder %s303, 0
      %s306 = sadd.s32 %s305, 1
      %s307 = scalar_select %p304, %s305, %s306
      %p310 = pneg %p304
      %p311 = scmp.eq.s32.totalorder %s33, 3
      %p312 = por %p310, %p311
      %p313 = scmp.ne.s32.totalorder %s305, %s308
      %p314 = scmp.eq.s32.totalorder %s33, 0
      %p315 = por %p313, %p314
      %p316 = scmp.ne.s32.totalorder %s305, %s308
      %p317 = scmp.eq.s32.totalorder %s38, 3
      %p318 = por %p316, %p317
      %p319 = scmp.ne.s32.totalorder %s308, %s309
      %p320 = scmp.eq.s32.totalorder %s38, 0
      %p321 = por %p319, %p320
      %p322 = scmp.ne.s32.totalorder %s308, %s309
      %p323 = scmp.eq.s32.totalorder %s39, 3
      %p324 = por %p322, %p323
      %p326 = scmp.ne.s32.totalorder %s309, %s325
      %p327 = scmp.eq.s32.totalorder %s39, 0
      %p328 = por %p326, %p327
      %s329 = ssub.s32 %s41, %s48
      %p330 = scmp.eq.s32.totalorder %s329, 0
      %s332 = sadd.s32 %s331, 1
      %s333 = scalar_select %p330, %s331, %s332
      %p336 = pneg %p330
      %p337 = scmp.eq.s32.totalorder %s33, 3
      %p338 = por %p336, %p337
      %p339 = scmp.ne.s32.totalorder %s331, %s334
      %p340 = scmp.eq.s32.totalorder %s33, 0
      %p341 = por %p339, %p340
      %p342 = scmp.ne.s32.totalorder %s331, %s334
      %p343 = scmp.eq.s32.totalorder %s38, 3
      %p344 = por %p342, %p343
      %p345 = scmp.ne.s32.totalorder %s334, %s335
      %p346 = scmp.eq.s32.totalorder %s38, 0
      %p347 = por %p345, %p346
      %p348 = scmp.ne.s32.totalorder %s334, %s335
      %p349 = scmp.eq.s32.totalorder %s39, 3
      %p350 = por %p348, %p349
      %p352 = scmp.ne.s32.totalorder %s335, %s351
      %p353 = scmp.eq.s32.totalorder %s39, 0
      %p354 = por %p352, %p353
      %s355 = ssub.s32 %s41, %s48
      %p356 = scmp.eq.s32.totalorder %s355, 0
      %s358 = sadd.s32 %s357, 1
      %s359 = scalar_select %p356, %s357, %s358
      %p362 = pneg %p356
      %p363 = scmp.eq.s32.totalorder %s33, 3
      %p364 = por %p362, %p363
      %p365 = scmp.ne.s32.totalorder %s357, %s360
      %p366 = scmp.eq.s32.totalorder %s33, 0
      %p367 = por %p365, %p366
      %p368 = scmp.ne.s32.totalorder %s357, %s360
      %p369 = scmp.eq.s32.totalorder %s38, 3
      %p370 = por %p368, %p369
      %p371 = scmp.ne.s32.totalorder %s360, %s361
      %p372 = scmp.eq.s32.totalorder %s38, 0
      %p373 = por %p371, %p372
      %p374 = scmp.ne.s32.totalorder %s360, %s361
      %p375 = scmp.eq.s32.totalorder %s39, 3
      %p376 = por %p374, %p375
      %p378 = scmp.ne.s32.totalorder %s361, %s377
      %p379 = scmp.eq.s32.totalorder %s39, 0
      %p380 = por %p378, %p379
      %s381 = ssub.s32 %s41, %s48
      %p382 = scmp.eq.s32.totalorder %s381, 0
      %s384 = sadd.s32 %s383, 1
      %s385 = scalar_select %p382, %s383, %s384
      %p388 = pneg %p382
      %p389 = scmp.eq.s32.totalorder %s33, 3
      %p390 = por %p388, %p389
      %p391 = scmp.ne.s32.totalorder %s383, %s386
      %p392 = scmp.eq.s32.totalorder %s33, 0
      %p393 = por %p391, %p392
      %p394 = scmp.ne.s32.totalorder %s383, %s386
      %p395 = scmp.eq.s32.totalorder %s38, 3
      %p396 = por %p394, %p395
      %p397 = scmp.ne.s32.totalorder %s386, %s387
      %p398 = scmp.eq.s32.totalorder %s38, 0
      %p399 = por %p397, %p398
      %p400 = scmp.ne.s32.totalorder %s386, %s387
      %p401 = scmp.eq.s32.totalorder %s39, 3
      %p402 = por %p400, %p401
      %p404 = scmp.ne.s32.totalorder %s387, %s403
      %p405 = scmp.eq.s32.totalorder %s39, 0
      %p406 = por %p404, %p405
      %s407 = ssub.s32 %s41, %s48
      %p408 = scmp.eq.s32.totalorder %s407, 0
      %s410 = sadd.s32 %s409, 1
      %s411 = scalar_select %p408, %s409, %s410
      %p414 = pneg %p408
      %p415 = scmp.eq.s32.totalorder %s33, 3
      %p416 = por %p414, %p415
      %p417 = scmp.ne.s32.totalorder %s409, %s412
      %p418 = scmp.eq.s32.totalorder %s33, 0
      %p419 = por %p417, %p418
      %p420 = scmp.ne.s32.totalorder %s409, %s412
      %p421 = scmp.eq.s32.totalorder %s38, 3
      %p422 = por %p420, %p421
      %p423 = scmp.ne.s32.totalorder %s412, %s413
      %p424 = scmp.eq.s32.totalorder %s38, 0
      %p425 = por %p423, %p424
      %p426 = scmp.ne.s32.totalorder %s412, %s413
      %p427 = scmp.eq.s32.totalorder %s39, 3
      %p428 = por %p426, %p427
      %p430 = scmp.ne.s32.totalorder %s413, %s429
      %p431 = scmp.eq.s32.totalorder %s39, 0
      %p432 = por %p430, %p431
      %s433 = ssub.s32 %s41, %s48
      %p434 = scmp.eq.s32.totalorder %s433, 0
      %s436 = sadd.s32 %s435, 1
      %s437 = scalar_select %p434, %s435, %s436
      %p440 = pneg %p434
      %p441 = scmp.eq.s32.totalorder %s33, 3
      %p442 = por %p440, %p441
      %p443 = scmp.ne.s32.totalorder %s435, %s438
      %p444 = scmp.eq.s32.totalorder %s33, 0
      %p445 = por %p443, %p444
      %p446 = scmp.ne.s32.totalorder %s435, %s438
      %p447 = scmp.eq.s32.totalorder %s38, 3
      %p448 = por %p446, %p447
      %p449 = scmp.ne.s32.totalorder %s438, %s439
      %p450 = scmp.eq.s32.totalorder %s38, 0
      %p451 = por %p449, %p450
      %p452 = scmp.ne.s32.totalorder %s438, %s439
      %p453 = scmp.eq.s32.totalorder %s39, 3
      %p454 = por %p452, %p453
      %p456 = scmp.ne.s32.totalorder %s439, %s455
      %p457 = scmp.eq.s32.totalorder %s39, 0
      %p458 = por %p456, %p457
      %s459 = ssub.s32 %s41, %s48
      %p460 = scmp.eq.s32.totalorder %s459, 0
      %s462 = sadd.s32 %s461, 1
      %s463 = scalar_select %p460, %s461, %s462
      %p466 = pneg %p460
      %p467 = scmp.eq.s32.totalorder %s33, 3
      %p468 = por %p466, %p467
      %p469 = scmp.ne.s32.totalorder %s461, %s464
      %p470 = scmp.eq.s32.totalorder %s33, 0
      %p471 = por %p469, %p470
      %p472 = scmp.ne.s32.totalorder %s461, %s464
      %p473 = scmp.eq.s32.totalorder %s38, 3
      %p474 = por %p472, %p473
      %p475 = scmp.ne.s32.totalorder %s464, %s465
      %p476 = scmp.eq.s32.totalorder %s38, 0
      %p477 = por %p475, %p476
      %p478 = scmp.ne.s32.totalorder %s464, %s465
      %p479 = scmp.eq.s32.totalorder %s39, 3
      %p480 = por %p478, %p479
      %p482 = scmp.ne.s32.totalorder %s465, %s481
      %p483 = scmp.eq.s32.totalorder %s39, 0
      %p484 = por %p482, %p483
      %s485 = ssub.s32 %s41, %s48
      %p486 = scmp.eq.s32.totalorder %s485, 0
      %s488 = sadd.s32 %s487, 1
      %s489 = scalar_select %p486, %s487, %s488
      %p492 = pneg %p486
      %p493 = scmp.eq.s32.totalorder %s33, 3
      %p494 = por %p492, %p493
      %p495 = scmp.ne.s32.totalorder %s487, %s490
      %p496 = scmp.eq.s32.totalorder %s33, 0
      %p497 = por %p495, %p496
      %p498 = scmp.ne.s32.totalorder %s487, %s490
      %p499 = scmp.eq.s32.totalorder %s38, 3
      %p500 = por %p498, %p499
      %p501 = scmp.ne.s32.totalorder %s490, %s491
      %p502 = scmp.eq.s32.totalorder %s38, 0
      %p503 = por %p501, %p502
      %p504 = scmp.ne.s32.totalorder %s490, %s491
      %p505 = scmp.eq.s32.totalorder %s39, 3
      %p506 = por %p504, %p505
      %p508 = scmp.ne.s32.totalorder %s491, %s507
      %p509 = scmp.eq.s32.totalorder %s39, 0
      %p510 = por %p508, %p509
      %s511 = ssub.s32 %s41, %s48
      %p512 = scmp.eq.s32.totalorder %s511, 0
      %s514 = sadd.s32 %s513, 1
      %s515 = scalar_select %p512, %s513, %s514
      %p518 = pneg %p512
      %p519 = scmp.eq.s32.totalorder %s33, 3
      %p520 = por %p518, %p519
      %p521 = scmp.ne.s32.totalorder %s513, %s516
      %p522 = scmp.eq.s32.totalorder %s33, 0
      %p523 = por %p521, %p522
      %p524 = scmp.ne.s32.totalorder %s513, %s516
      %p525 = scmp.eq.s32.totalorder %s38, 3
      %p526 = por %p524, %p525
      %p527 = scmp.ne.s32.totalorder %s516, %s517
      %p528 = scmp.eq.s32.totalorder %s38, 0
      %p529 = por %p527, %p528
      %p530 = scmp.ne.s32.totalorder %s516, %s517
      %p531 = scmp.eq.s32.totalorder %s39, 3
      %p532 = por %p530, %p531
      %p534 = scmp.ne.s32.totalorder %s517, %s533
      %p535 = scmp.eq.s32.totalorder %s39, 0
      %p536 = por %p534, %p535
      %s537 = ssub.s32 %s41, %s48
      %p538 = scmp.eq.s32.totalorder %s537, 0
      %s540 = sadd.s32 %s539, 1
      %s541 = scalar_select %p538, %s539, %s540
      %p544 = pneg %p538
      %p545 = scmp.eq.s32.totalorder %s33, 3
      %p546 = por %p544, %p545
      %p547 = scmp.ne.s32.totalorder %s539, %s542
      %p548 = scmp.eq.s32.totalorder %s33, 0
      %p549 = por %p547, %p548
      %p550 = scmp.ne.s32.totalorder %s539, %s542
      %p551 = scmp.eq.s32.totalorder %s38, 3
      %p552 = por %p550, %p551
      %p553 = scmp.ne.s32.totalorder %s542, %s543
      %p554 = scmp.eq.s32.totalorder %s38, 0
      %p555 = por %p553, %p554
      %p556 = scmp.ne.s32.totalorder %s542, %s543
      %p557 = scmp.eq.s32.totalorder %s39, 3
      %p558 = por %p556, %p557
      %p560 = scmp.ne.s32.totalorder %s543, %s559
      %p561 = scmp.eq.s32.totalorder %s39, 0
      %p562 = por %p560, %p561
      %s563 = ssub.s32 %s41, %s48
      %p564 = scmp.eq.s32.totalorder %s563, 0
      %s566 = sadd.s32 %s565, 1
      %s567 = scalar_select %p564, %s565, %s566
      %p570 = pneg %p564
      %p571 = scmp.eq.s32.totalorder %s33, 3
      %p572 = por %p570, %p571
      %p573 = scmp.ne.s32.totalorder %s565, %s568
      %p574 = scmp.eq.s32.totalorder %s33, 0
      %p575 = por %p573, %p574
      %p576 = scmp.ne.s32.totalorder %s565, %s568
      %p577 = scmp.eq.s32.totalorder %s38, 3
      %p578 = por %p576, %p577
      %p579 = scmp.ne.s32.totalorder %s568, %s569
      %p580 = scmp.eq.s32.totalorder %s38, 0
      %p581 = por %p579, %p580
      %p582 = scmp.ne.s32.totalorder %s568, %s569
      %p583 = scmp.eq.s32.totalorder %s39, 3
      %p584 = por %p582, %p583
      %p586 = scmp.ne.s32.totalorder %s569, %s585
      %p587 = scmp.eq.s32.totalorder %s39, 0
      %p588 = por %p586, %p587
      %s590 = sadd.s32 %s589, 1
      %p593 = scmp.eq.s32.totalorder %s33, 3
      %p594 = scmp.ne.s32.totalorder %s589, %s591
      %p595 = scmp.eq.s32.totalorder %s33, 0
      %p596 = por %p594, %p595
      %p597 = scmp.ne.s32.totalorder %s589, %s591
      %p598 = scmp.eq.s32.totalorder %s38, 3
      %p599 = por %p597, %p598
      %p600 = scmp.ne.s32.totalorder %s591, %s592
      %p601 = scmp.eq.s32.totalorder %s38, 0
      %p602 = por %p600, %p601
      %p603 = scmp.ne.s32.totalorder %s591, %s592
      %p604 = scmp.eq.s32.totalorder %s39, 3
      %p605 = por %p603, %p604
      %p607 = scmp.ne.s32.totalorder %s592, %s606
      %p608 = scmp.eq.s32.totalorder %s39, 0
      %p609 = por %p607, %p608
      %s611 = sadd.s32 %s610, 1
      %p614 = scmp.eq.s32.totalorder %s33, 3
      %p615 = scmp.ne.s32.totalorder %s610, %s612
      %p616 = scmp.eq.s32.totalorder %s33, 0
      %p617 = por %p615, %p616
      %p618 = scmp.ne.s32.totalorder %s610, %s612
      %p619 = scmp.eq.s32.totalorder %s38, 3
      %p620 = por %p618, %p619
      %p621 = scmp.ne.s32.totalorder %s612, %s613
      %p622 = scmp.eq.s32.totalorder %s38, 0
      %p623 = por %p621, %p622
      %p624 = scmp.ne.s32.totalorder %s612, %s613
      %p625 = scmp.eq.s32.totalorder %s39, 3
      %p626 = por %p624, %p625
      %p628 = scmp.ne.s32.totalorder %s613, %s627
      %p629 = scmp.eq.s32.totalorder %s39, 0
      %p630 = por %p628, %p629
      %s631 = ssub.s32 %s40, %s52
      %p632 = scmp.eq.s32.totalorder %s631, 0
      %s634 = sadd.s32 %s633, 1
      %s635 = scalar_select %p632, %s633, %s634
      %p638 = pneg %p632
      %p639 = scmp.eq.s32.totalorder %s33, 3
      %p640 = por %p638, %p639
      %p641 = scmp.ne.s32.totalorder %s633, %s636
      %p642 = scmp.eq.s32.totalorder %s33, 0
      %p643 = por %p641, %p642
      %p644 = scmp.ne.s32.totalorder %s633, %s636
      %p645 = scmp.eq.s32.totalorder %s38, 3
      %p646 = por %p644, %p645
      %p647 = scmp.ne.s32.totalorder %s636, %s637
      %p648 = scmp.eq.s32.totalorder %s38, 0
      %p649 = por %p647, %p648
      %p650 = scmp.ne.s32.totalorder %s636, %s637
      %p651 = scmp.eq.s32.totalorder %s39, 3
      %p652 = por %p650, %p651
      %p654 = scmp.ne.s32.totalorder %s637, %s653
      %p655 = scmp.eq.s32.totalorder %s39, 0
      %p656 = por %p654, %p655
      %p657 = scmp.le.s32.totalorder 1, %s33
      %p658 = scmp.lt.s32.totalorder %s33, 5
      %p659 = pnand %p657, %p658
      %p660 = pneg %p659
      // Predicated region
      $region9: #{custom_conditional_bert_forward.2} parent=5 // pred_check
        _
      $region10: #{custom_conditional_bert_forward.2} parent=5 // pred_check_branch
        %662 = sbr.rel (%p659) target = $region12
      $region11: #{custom_conditional_bert_forward.2} parent=5 // pred_region
        %s663 = ssub.s32 %s33, 1
        // Predicated region
        $region13: #{custom_conditional_bert_forward.2} parent=11 // pred_check
          %p664 = pneg %p144
        $region14: #{custom_conditional_bert_forward.2} parent=11 // pred_check_branch
          %666 = sbr.rel (%p664) target = $region16
        $region15: #{custom_conditional_bert_forward.2} parent=11 // pred_region
          _
        $region16: #{custom_conditional_bert_forward.2} parent=11 // pred_fallthru
          _
        // Predicated region
        $region17: #{custom_conditional_bert_forward.2} parent=11 // pred_check
          %p667 = pneg %p165
        $region18: #{custom_conditional_bert_forward.2} parent=11 // pred_check_branch
          %669 = sbr.rel (%p667) target = $region20
        $region19: #{custom_conditional_bert_forward.2} parent=11 // pred_region
          _
        $region20: #{custom_conditional_bert_forward.2} parent=11 // pred_fallthru
          _
        // Predicated region
        $region21: #{custom_conditional_bert_forward.2} parent=11 // pred_check
          %p670 = pneg %p602
        $region22: #{custom_conditional_bert_forward.2} parent=11 // pred_check_branch
          %672 = sbr.rel (%p670) target = $region24
        $region23: #{custom_conditional_bert_forward.2} parent=11 // pred_region
          %s674 = ssub.s32 256, 256
          %675 = vsyncadd [#allocation6], %s674
          %s676 = sshll.u32 [#allocation5], 4
          %s677 = int_to_ptr.vmem [resolvable:$true] %s676
          %682 = dma.hbm_to_vmem [thread:$0]  %s21, 256, %s677, [#allocation6], 64, 64, 4
        $region24: #{custom_conditional_bert_forward.2} parent=11 // pred_fallthru
          _
        // Predicated region
        $region25: #{custom_conditional_bert_forward.2} parent=11 // pred_check
          %p683 = pneg %p623
        $region26: #{custom_conditional_bert_forward.2} parent=11 // pred_check_branch
          %685 = sbr.rel (%p683) target = $region28
        $region27: #{custom_conditional_bert_forward.2} parent=11 // pred_region
          _
        $region28: #{custom_conditional_bert_forward.2} parent=11 // pred_fallthru
          _
      $region12: #{custom_conditional_bert_forward.2} parent=5 // pred_fallthru
        _
      %p686 = scmp.lt.s32.totalorder %s33, 4
      // Predicated region
      $region29: #{custom_conditional_bert_forward.2} parent=5 // pred_check
        %p687 = pneg %p686
      $region30: #{custom_conditional_bert_forward.2} parent=5 // pred_check_branch
        %689 = sbr.rel (%p687) target = $region32
      $region31: #{custom_conditional_bert_forward.2} parent=5 // pred_region
        // Predicated region
        $region33: #{custom_conditional_bert_forward.2} parent=31 // pred_check
          %p690 = pneg %p65
        $region34: #{custom_conditional_bert_forward.2} parent=31 // pred_check_branch
          %692 = sbr.rel (%p690) target = $region36
        $region35: #{custom_conditional_bert_forward.2} parent=31 // pred_region
          %p693 = scmp.lt.s32.totalorder %s40, 1
          %s694 = scalar_select %p693, %s40, 1
          %s695 = smul.addr %s694, 8
          %s696 = scalar_lea.vmem %s0, %s695
        $region36: #{custom_conditional_bert_forward.2} parent=31 // pred_fallthru
          _
        // Predicated region
        $region37: #{custom_conditional_bert_forward.2} parent=31 // pred_check
          %p697 = pneg %p91
        $region38: #{custom_conditional_bert_forward.2} parent=31 // pred_check_branch
          %699 = sbr.rel (%p697) target = $region40
        $region39: #{custom_conditional_bert_forward.2} parent=31 // pred_region
          %p700 = scmp.lt.s32.totalorder %s40, 1
          %s701 = scalar_select %p700, %s40, 1
          %s702 = scalar_lea.vmem %s1, %s701
        $region40: #{custom_conditional_bert_forward.2} parent=31 // pred_fallthru
          _
        // Predicated region
        $region41: #{custom_conditional_bert_forward.2} parent=31 // pred_check
          %p703 = pneg %p117
        $region42: #{custom_conditional_bert_forward.2} parent=31 // pred_check_branch
          %705 = sbr.rel (%p703) target = $region44
        $region43: #{custom_conditional_bert_forward.2} parent=31 // pred_region
          %p706 = scmp.lt.s32.totalorder %s40, 1
          %s707 = scalar_select %p706, %s40, 1
          %s708 = smul.addr %s707, 8
          %s709 = scalar_lea.vmem %s2, %s708
        $region44: #{custom_conditional_bert_forward.2} parent=31 // pred_fallthru
          _
        // Predicated region
        $region45: #{custom_conditional_bert_forward.2} parent=31 // pred_check
          %p710 = pneg %p185
        $region46: #{custom_conditional_bert_forward.2} parent=31 // pred_check_branch
          %712 = sbr.rel (%p710) target = $region48
        $region47: #{custom_conditional_bert_forward.2} parent=31 // pred_region
          %p713 = scmp.lt.s32.totalorder %s41, 1
          %s714 = scalar_select %p713, %s41, 1
          %s715 = smul.addr %s714, 8
          %s716 = smul.addr %s715, 4
          %s717 = scalar_lea.vmem %s5, %s716
        $region48: #{custom_conditional_bert_forward.2} parent=31 // pred_fallthru
          _
        // Predicated region
        $region49: #{custom_conditional_bert_forward.2} parent=31 // pred_check
          %p718 = pneg %p211
        $region50: #{custom_conditional_bert_forward.2} parent=31 // pred_check_branch
          %720 = sbr.rel (%p718) target = $region52
        $region51: #{custom_conditional_bert_forward.2} parent=31 // pred_region
          %p721 = scmp.lt.s32.totalorder %s41, 1
          %s722 = scalar_select %p721, %s41, 1
          %s723 = smul.addr %s722, 8
          %s724 = smul.addr %s723, 4
          %s725 = scalar_lea.vmem %s6, %s724
        $region52: #{custom_conditional_bert_forward.2} parent=31 // pred_fallthru
          _
        // Predicated region
        $region53: #{custom_conditional_bert_forward.2} parent=31 // pred_check
          %p726 = pneg %p237
        $region54: #{custom_conditional_bert_forward.2} parent=31 // pred_check_branch
          %728 = sbr.rel (%p726) target = $region56
        $region55: #{custom_conditional_bert_forward.2} parent=31 // pred_region
          %p729 = scmp.lt.s32.totalorder %s41, 1
          %s730 = scalar_select %p729, %s41, 1
          %s731 = smul.addr %s730, 8
          %s732 = smul.addr %s731, 4
          %s733 = scalar_lea.vmem %s7, %s732
        $region56: #{custom_conditional_bert_forward.2} parent=31 // pred_fallthru
          _
        // Predicated region
        $region57: #{custom_conditional_bert_forward.2} parent=31 // pred_check
          %p734 = pneg %p263
        $region58: #{custom_conditional_bert_forward.2} parent=31 // pred_check_branch
          %736 = sbr.rel (%p734) target = $region60
        $region59: #{custom_conditional_bert_forward.2} parent=31 // pred_region
          %p737 = scmp.lt.s32.totalorder %s41, 1
          %s738 = scalar_select %p737, %s41, 1
          %s739 = smul.addr %s738, 2
          %s740 = scalar_lea.vmem %s8, %s739
        $region60: #{custom_conditional_bert_forward.2} parent=31 // pred_fallthru
          _
        // Predicated region
        $region61: #{custom_conditional_bert_forward.2} parent=31 // pred_check
          %p741 = pneg %p289
        $region62: #{custom_conditional_bert_forward.2} parent=31 // pred_check_branch
          %743 = sbr.rel (%p741) target = $region64
        $region63: #{custom_conditional_bert_forward.2} parent=31 // pred_region
          %p744 = scmp.lt.s32.totalorder %s41, 1
          %s745 = scalar_select %p744, %s41, 1
          %s746 = smul.addr %s745, 2
          %s747 = scalar_lea.vmem %s9, %s746
        $region64: #{custom_conditional_bert_forward.2} parent=31 // pred_fallthru
          _
        // Predicated region
        $region65: #{custom_conditional_bert_forward.2} parent=31 // pred_check
          %p748 = pneg %p315
        $region66: #{custom_conditional_bert_forward.2} parent=31 // pred_check_branch
          %750 = sbr.rel (%p748) target = $region68
        $region67: #{custom_conditional_bert_forward.2} parent=31 // pred_region
          %p751 = scmp.lt.s32.totalorder %s41, 1
          %s752 = scalar_select %p751, %s41, 1
          %s753 = smul.addr %s752, 2
          %s754 = scalar_lea.vmem %s10, %s753
        $region68: #{custom_conditional_bert_forward.2} parent=31 // pred_fallthru
          _
        // Predicated region
        $region69: #{custom_conditional_bert_forward.2} parent=31 // pred_check
          %p755 = pneg %p341
        $region70: #{custom_conditional_bert_forward.2} parent=31 // pred_check_branch
          %757 = sbr.rel (%p755) target = $region72
        $region71: #{custom_conditional_bert_forward.2} parent=31 // pred_region
          %p758 = scmp.lt.s32.totalorder %s41, 1
          %s759 = scalar_select %p758, %s41, 1
          %s760 = smul.addr %s759, 4
          %s761 = smul.addr %s760, 4
          %s762 = scalar_lea.vmem %s11, %s761
        $region72: #{custom_conditional_bert_forward.2} parent=31 // pred_fallthru
          _
        // Predicated region
        $region73: #{custom_conditional_bert_forward.2} parent=31 // pred_check
          %p763 = pneg %p367
        $region74: #{custom_conditional_bert_forward.2} parent=31 // pred_check_branch
          %765 = sbr.rel (%p763) target = $region76
        $region75: #{custom_conditional_bert_forward.2} parent=31 // pred_region
          %p766 = scmp.lt.s32.totalorder %s41, 1
          %s767 = scalar_select %p766, %s41, 1
          %s768 = scalar_lea.vmem %s12, %s767
        $region76: #{custom_conditional_bert_forward.2} parent=31 // pred_fallthru
          _
        // Predicated region
        $region77: #{custom_conditional_bert_forward.2} parent=31 // pred_check
          %p769 = pneg %p393
        $region78: #{custom_conditional_bert_forward.2} parent=31 // pred_check_branch
          %771 = sbr.rel (%p769) target = $region80
        $region79: #{custom_conditional_bert_forward.2} parent=31 // pred_region
          %p772 = scmp.lt.s32.totalorder %s41, 1
          %s773 = scalar_select %p772, %s41, 1
          %s774 = scalar_lea.vmem %s13, %s773
        $region80: #{custom_conditional_bert_forward.2} parent=31 // pred_fallthru
          _
        // Predicated region
        $region81: #{custom_conditional_bert_forward.2} parent=31 // pred_check
          %p775 = pneg %p419
        $region82: #{custom_conditional_bert_forward.2} parent=31 // pred_check_branch
          %777 = sbr.rel (%p775) target = $region84
        $region83: #{custom_conditional_bert_forward.2} parent=31 // pred_region
          %p778 = scmp.lt.s32.totalorder %s41, 1
          %s779 = scalar_select %p778, %s41, 1
          %s780 = scalar_lea.vmem %s14, %s779
        $region84: #{custom_conditional_bert_forward.2} parent=31 // pred_fallthru
          _
        // Predicated region
        $region85: #{custom_conditional_bert_forward.2} parent=31 // pred_check
          %p781 = pneg %p445
        $region86: #{custom_conditional_bert_forward.2} parent=31 // pred_check_branch
          %783 = sbr.rel (%p781) target = $region88
        $region87: #{custom_conditional_bert_forward.2} parent=31 // pred_region
          %s784 = sand.u32 %s435, 1
          %s785 = scalar_lea.sflag [#allocation4], %s784
          %s786 = sand.u32 %s435, 1
          %s787 = smul.addr %s786, 16
          %s788 = scalar_lea.vmem [#allocation3], %s787
          %s790 = ssub.s32 256, 256
          %791 = vsyncadd %s785, %s790
          %s792 = smul.addr %s41, 4
          %s793 = smul.addr %s792, 64
          %s794 = scalar_lea.hbm %s15, %s793
          %s795 = sshll.u32 %s788, 4
          %s796 = int_to_ptr.vmem [resolvable:$true] %s795
          %801 = dma.hbm_to_vmem [thread:$0]  %s794, 256, %s796, %s785, 64, 64, 4
        $region88: #{custom_conditional_bert_forward.2} parent=31 // pred_fallthru
          _
        // Predicated region
        $region89: #{custom_conditional_bert_forward.2} parent=31 // pred_check
          %p802 = pneg %p471
        $region90: #{custom_conditional_bert_forward.2} parent=31 // pred_check_branch
          %804 = sbr.rel (%p802) target = $region92
        $region91: #{custom_conditional_bert_forward.2} parent=31 // pred_region
          %p805 = scmp.lt.s32.totalorder %s41, 1
          %s806 = scalar_select %p805, %s41, 1
          %s807 = scalar_lea.vmem %s16, %s806
        $region92: #{custom_conditional_bert_forward.2} parent=31 // pred_fallthru
          _
        // Predicated region
        $region93: #{custom_conditional_bert_forward.2} parent=31 // pred_check
          %p808 = pneg %p497
        $region94: #{custom_conditional_bert_forward.2} parent=31 // pred_check_branch
          %810 = sbr.rel (%p808) target = $region96
        $region95: #{custom_conditional_bert_forward.2} parent=31 // pred_region
          %p811 = scmp.lt.s32.totalorder %s41, 1
          %s812 = scalar_select %p811, %s41, 1
          %s813 = smul.addr %s812, 8
          %s814 = smul.addr %s813, 4
          %s815 = scalar_lea.vmem %s17, %s814
        $region96: #{custom_conditional_bert_forward.2} parent=31 // pred_fallthru
          _
        // Predicated region
        $region97: #{custom_conditional_bert_forward.2} parent=31 // pred_check
          %p816 = pneg %p523
        $region98: #{custom_conditional_bert_forward.2} parent=31 // pred_check_branch
          %818 = sbr.rel (%p816) target = $region100
        $region99: #{custom_conditional_bert_forward.2} parent=31 // pred_region
          %p819 = scmp.lt.s32.totalorder %s41, 1
          %s820 = scalar_select %p819, %s41, 1
          %s821 = scalar_lea.vmem %s18, %s820
        $region100: #{custom_conditional_bert_forward.2} parent=31 // pred_fallthru
          _
        // Predicated region
        $region101: #{custom_conditional_bert_forward.2} parent=31 // pred_check
          %p822 = pneg %p549
        $region102: #{custom_conditional_bert_forward.2} parent=31 // pred_check_branch
          %824 = sbr.rel (%p822) target = $region104
        $region103: #{custom_conditional_bert_forward.2} parent=31 // pred_region
          %p825 = scmp.lt.s32.totalorder %s41, 1
          %s826 = scalar_select %p825, %s41, 1
          %s827 = scalar_lea.vmem %s19, %s826
        $region104: #{custom_conditional_bert_forward.2} parent=31 // pred_fallthru
          _
        // Predicated region
        $region105: #{custom_conditional_bert_forward.2} parent=31 // pred_check
          %p828 = pneg %p575
        $region106: #{custom_conditional_bert_forward.2} parent=31 // pred_check_branch
          %830 = sbr.rel (%p828) target = $region108
        $region107: #{custom_conditional_bert_forward.2} parent=31 // pred_region
          %p831 = scmp.lt.s32.totalorder %s41, 1
          %s832 = scalar_select %p831, %s41, 1
          %s833 = scalar_lea.vmem %s20, %s832
        $region108: #{custom_conditional_bert_forward.2} parent=31 // pred_fallthru
          _
      $region32: #{custom_conditional_bert_forward.2} parent=5 // pred_fallthru
        _
      %p834 = scmp.le.s32.totalorder 1, %s33
      %p835 = scmp.lt.s32.totalorder %s33, 5
      %p836 = pnand %p834, %p835
      %p837 = pneg %p836
      // Predicated region
      $region109: #{custom_conditional_bert_forward.2} parent=5 // pred_check
        _
      $region110: #{custom_conditional_bert_forward.2} parent=5 // pred_check_branch
        %839 = sbr.rel (%p836) target = $region112
      $region111: #{custom_conditional_bert_forward.2} parent=5 // pred_region
        %s840 = ssub.s32 %s33, 1
        %s841 = sand.u32 %s438, 1
        %s842 = scalar_lea.sflag [#allocation4], %s841
        %s843 = sand.u32 %s438, 1
        %s844 = smul.addr %s843, 16
        %s845 = scalar_lea.vmem [#allocation3], %s844
        // Predicated region
        $region113: #{custom_conditional_bert_forward.2} parent=111 // pred_check
          %p846 = pneg %p451
        $region114: #{custom_conditional_bert_forward.2} parent=111 // pred_check_branch
          %848 = sbr.rel (%p846) target = $region116
        $region115: #{custom_conditional_bert_forward.2} parent=111 // pred_region
          %849 = dma.done %s842, 256
        $region116: #{custom_conditional_bert_forward.2} parent=111 // pred_fallthru
          _
        // Predicated region
        $region117: #{custom_conditional_bert_forward.2} parent=111 // pred_check
          %p850 = pneg %p602
        $region118: #{custom_conditional_bert_forward.2} parent=111 // pred_check_branch
          %852 = sbr.rel (%p850) target = $region120
        $region119: #{custom_conditional_bert_forward.2} parent=111 // pred_region
          %853 = dma.done [#allocation6], 256
        $region120: #{custom_conditional_bert_forward.2} parent=111 // pred_fallthru
          _
        %p854 = scmp.lt.s32.totalorder %s42, 1
        %s855 = scalar_select %p854, %s42, 1
        %s856 = smul.addr %s855, 8
        %s857 = scalar_lea.vmem %s0, %s856
        %p858 = pneg %p71
        %p859 = pneg %p68
        %p860 = scmp.lt.s32.totalorder %s42, 1
        %s861 = scalar_select %p860, %s42, 1
        %s862 = scalar_lea.vmem %s1, %s861
        %p863 = pneg %p97
        %p864 = pneg %p94
        %p865 = scmp.lt.s32.totalorder %s42, 1
        %s866 = scalar_select %p865, %s42, 1
        %s867 = smul.addr %s866, 8
        %s868 = scalar_lea.vmem %s2, %s867
        %p869 = pneg %p123
        %p870 = pneg %p120
        %p871 = pneg %p144
        %p872 = pneg %p141
        %p873 = pneg %p165
        %p874 = pneg %p162
        %p875 = scmp.lt.s32.totalorder %s43, 1
        %s876 = scalar_select %p875, %s43, 1
        %s877 = smul.addr %s876, 8
        %s878 = smul.addr %s877, 4
        %s879 = scalar_lea.vmem %s5, %s878
        %p880 = pneg %p191
        %p881 = pneg %p188
        %p882 = scmp.lt.s32.totalorder %s43, 1
        %s883 = scalar_select %p882, %s43, 1
        %s884 = smul.addr %s883, 8
        %s885 = smul.addr %s884, 4
        %s886 = scalar_lea.vmem %s6, %s885
        %p887 = pneg %p217
        %p888 = pneg %p214
        %p889 = scmp.lt.s32.totalorder %s43, 1
        %s890 = scalar_select %p889, %s43, 1
        %s891 = smul.addr %s890, 8
        %s892 = smul.addr %s891, 4
        %s893 = scalar_lea.vmem %s7, %s892
        %p894 = pneg %p243
        %p895 = pneg %p240
        %p896 = scmp.lt.s32.totalorder %s43, 1
        %s897 = scalar_select %p896, %s43, 1
        %s898 = smul.addr %s897, 2
        %s899 = scalar_lea.vmem %s8, %s898
        %p900 = pneg %p269
        %p901 = pneg %p266
        %p902 = scmp.lt.s32.totalorder %s43, 1
        %s903 = scalar_select %p902, %s43, 1
        %s904 = smul.addr %s903, 2
        %s905 = scalar_lea.vmem %s9, %s904
        %p906 = pneg %p295
        %p907 = pneg %p292
        %p908 = scmp.lt.s32.totalorder %s43, 1
        %s909 = scalar_select %p908, %s43, 1
        %s910 = smul.addr %s909, 2
        %s911 = scalar_lea.vmem %s10, %s910
        %p912 = pneg %p321
        %p913 = pneg %p318
        %p914 = scmp.lt.s32.totalorder %s43, 1
        %s915 = scalar_select %p914, %s43, 1
        %s916 = smul.addr %s915, 4
        %s917 = smul.addr %s916, 4
        %s918 = scalar_lea.vmem %s11, %s917
        %p919 = pneg %p347
        %p920 = pneg %p344
        %p921 = scmp.lt.s32.totalorder %s43, 1
        %s922 = scalar_select %p921, %s43, 1
        %s923 = scalar_lea.vmem %s12, %s922
        %p924 = pneg %p373
        %p925 = pneg %p370
        %p926 = scmp.lt.s32.totalorder %s43, 1
        %s927 = scalar_select %p926, %s43, 1
        %s928 = scalar_lea.vmem %s13, %s927
        %p929 = pneg %p399
        %p930 = pneg %p396
        %p931 = scmp.lt.s32.totalorder %s43, 1
        %s932 = scalar_select %p931, %s43, 1
        %s933 = scalar_lea.vmem %s14, %s932
        %p934 = pneg %p425
        %p935 = pneg %p422
        %s936 = sand.u32 %s438, 1
        %s937 = scalar_lea.sflag [#allocation4], %s936
        %s938 = sand.u32 %s438, 1
        %s939 = smul.addr %s938, 16
        %s940 = scalar_lea.vmem [#allocation3], %s939
        %p941 = pneg %p451
        %p942 = pneg %p448
        %p943 = scmp.lt.s32.totalorder %s43, 1
        %s944 = scalar_select %p943, %s43, 1
        %s945 = scalar_lea.vmem %s16, %s944
        %p946 = pneg %p477
        %p947 = pneg %p474
        %p948 = scmp.lt.s32.totalorder %s43, 1
        %s949 = scalar_select %p948, %s43, 1
        %s950 = smul.addr %s949, 8
        %s951 = smul.addr %s950, 4
        %s952 = scalar_lea.vmem %s17, %s951
        %p953 = pneg %p503
        %p954 = pneg %p500
        %p955 = scmp.lt.s32.totalorder %s43, 1
        %s956 = scalar_select %p955, %s43, 1
        %s957 = scalar_lea.vmem %s18, %s956
        %p958 = pneg %p529
        %p959 = pneg %p526
        %p960 = scmp.lt.s32.totalorder %s43, 1
        %s961 = scalar_select %p960, %s43, 1
        %s962 = scalar_lea.vmem %s19, %s961
        %p963 = pneg %p555
        %p964 = pneg %p552
        %p965 = scmp.lt.s32.totalorder %s43, 1
        %s966 = scalar_select %p965, %s43, 1
        %s967 = scalar_lea.vmem %s20, %s966
        %p968 = pneg %p581
        %p969 = pneg %p578
        %p970 = pneg %p602
        %p971 = pneg %p599
        %p972 = pneg %p623
        %p973 = pneg %p620
        %p974 = pneg %p649
        %p975 = pneg %p646
        %p976 = scmp.lt.s32.totalorder %s42, 1
        %s977 = scalar_select %p976, %s42, 1
        %s978 = smul.addr %s977, 8
        %s979 = scalar_lea.vmem %s23, %s978
        %p980 = scmp.lt.s32.totalorder %s42, 1
        %s981 = scalar_select %p980, %s42, 1
        %s982 = smul.addr %s981, 8
        %s983 = scalar_lea.vmem %s0, %s982
        %p984 = scmp.lt.s32.totalorder %s42, 1
        %s985 = scalar_select %p984, %s42, 1
        %s986 = scalar_lea.vmem %s1, %s985
        %p987 = scmp.lt.s32.totalorder %s42, 1
        %s988 = scalar_select %p987, %s42, 1
        %s989 = smul.addr %s988, 8
        %s990 = scalar_lea.vmem %s2, %s989
        %p991 = scmp.lt.s32.totalorder %s43, 1
        %s992 = scalar_select %p991, %s43, 1
        %s993 = smul.addr %s992, 8
        %s994 = smul.addr %s993, 4
        %s995 = scalar_lea.vmem %s5, %s994
        %p996 = scmp.lt.s32.totalorder %s43, 1
        %s997 = scalar_select %p996, %s43, 1
        %s998 = smul.addr %s997, 8
        %s999 = smul.addr %s998, 4
        %s1000 = scalar_lea.vmem %s6, %s999
        %p1001 = scmp.lt.s32.totalorder %s43, 1
        %s1002 = scalar_select %p1001, %s43, 1
        %s1003 = smul.addr %s1002, 8
        %s1004 = smul.addr %s1003, 4
        %s1005 = scalar_lea.vmem %s7, %s1004
        %p1006 = scmp.lt.s32.totalorder %s43, 1
        %s1007 = scalar_select %p1006, %s43, 1
        %s1008 = smul.addr %s1007, 2
        %s1009 = scalar_lea.vmem %s8, %s1008
        %p1010 = scmp.lt.s32.totalorder %s43, 1
        %s1011 = scalar_select %p1010, %s43, 1
        %s1012 = smul.addr %s1011, 2
        %s1013 = scalar_lea.vmem %s9, %s1012
        %p1014 = scmp.lt.s32.totalorder %s43, 1
        %s1015 = scalar_select %p1014, %s43, 1
        %s1016 = smul.addr %s1015, 2
        %s1017 = scalar_lea.vmem %s10, %s1016
        %p1018 = scmp.lt.s32.totalorder %s43, 1
        %s1019 = scalar_select %p1018, %s43, 1
        %s1020 = smul.addr %s1019, 4
        %s1021 = smul.addr %s1020, 4
        %s1022 = scalar_lea.vmem %s11, %s1021
        %p1023 = scmp.lt.s32.totalorder %s43, 1
        %s1024 = scalar_select %p1023, %s43, 1
        %s1025 = scalar_lea.vmem %s12, %s1024
        %p1026 = scmp.lt.s32.totalorder %s43, 1
        %s1027 = scalar_select %p1026, %s43, 1
        %s1028 = scalar_lea.vmem %s13, %s1027
        %p1029 = scmp.lt.s32.totalorder %s43, 1
        %s1030 = scalar_select %p1029, %s43, 1
        %s1031 = scalar_lea.vmem %s14, %s1030
        %p1032 = scmp.lt.s32.totalorder %s43, 1
        %s1033 = scalar_select %p1032, %s43, 1
        %s1034 = scalar_lea.vmem %s16, %s1033
        %p1035 = scmp.lt.s32.totalorder %s43, 1
        %s1036 = scalar_select %p1035, %s43, 1
        %s1037 = smul.addr %s1036, 8
        %s1038 = smul.addr %s1037, 4
        %s1039 = scalar_lea.vmem %s17, %s1038
        %p1040 = scmp.lt.s32.totalorder %s43, 1
        %s1041 = scalar_select %p1040, %s43, 1
        %s1042 = scalar_lea.vmem %s18, %s1041
        %p1043 = scmp.lt.s32.totalorder %s43, 1
        %s1044 = scalar_select %p1043, %s43, 1
        %s1045 = scalar_lea.vmem %s19, %s1044
        %p1046 = scmp.lt.s32.totalorder %s43, 1
        %s1047 = scalar_select %p1046, %s43, 1
        %s1048 = scalar_lea.vmem %s20, %s1047
        %p1049 = scmp.lt.s32.totalorder %s42, 1
        %s1050 = scalar_select %p1049, %s42, 1
        %s1051 = smul.addr %s1050, 8
        %s1052 = scalar_lea.vmem %s23, %s1051
        %p1054 = scmp.eq.s32.totalorder %s43, 0
        // Predicated region
        $region121: #{custom_conditional_bert_forward.2} parent=111 // pred_check
          %p1055 = pneg %p1054
        $region122: #{custom_conditional_bert_forward.2} parent=111 // pred_check_branch
          %1057 = sbr.rel (%p1055) target = $region124
        $region123: #{custom_conditional_bert_forward.2} parent=111 // pred_region
          %v1058 = vld [vmem:[%s983] sm:$0xff]
          %v1059 = vld [vmem:[%s3] sm:$0x1]
          %v1060 = vld [vmem:[%s4] sm:$0x1]
          %vm1061 = vcmask 261120
          %v1062 = vsel %vm1061, %v1058, 0.0
          %1063 = vadd.xlane.f32.xlu0 %v1062
          %v1064 = vpop.xlane.xlu0 %1063
          %v1065 = vrcp.pop 32.0
          %v1066 = vmul.f32 %v1064, %v1065
          %v1067 = vsub.f32 %v1058, %v1066
          %v1068 = vmul.f32 %v1067, %v1067
          %v1069 = vsel %vm1061, %v1068, 0.0
          %1070 = vadd.xlane.f32.xlu0 %v1069
          %v1071 = vpop.xlane.xlu0 %1070
          %v1072 = vmul.f32 %v1071, %v1065
          %v1073 = vadd.f32 %v1072, 1e-12
          %v1074 = vrsqrt.pop %v1073
          %v1075 = vmul.f32 %v1067, %v1074
          %v1077 = vlaneseq
          %v1078 = vshrl.u32 %v1077, 7
          %v1079 = vsub.s32 0, %v1078
          %v1080 = vrot.slane %v1059, %v1079
          %v1082 = vmul.f32 %v1075, %v1080
          %v1084 = vlaneseq
          %v1085 = vshrl.u32 %v1084, 7
          %v1086 = vsub.s32 0, %v1085
          %v1087 = vrot.slane %v1060, %v1086
          %v1089 = vadd.f32 %v1082, %v1087
          %1090 = vst.msk [vmem:[#allocation2] sm:$0xff] %vm1061, %v1089
        $region124: #{custom_conditional_bert_forward.2} parent=111 // pred_fallthru
          _
        %v1091 = vld [vmem:[#allocation2] sm:$0xff]
        %v1092 = vld [vmem:[%s986] sm:$0x1]
        %v1093 = vpack.c.bf16 %v1091, %v1091
        %v1094 = vld [vmem:[%s995] sm:$0xf]
        %v1095 = vld [vmem:[%s995 + $0x4] sm:$0xf]
        %v1096 = vld [vmem:[%s995 + $0x8] sm:$0xf]
        %v1097 = vld [vmem:[%s995 + $0xc] sm:$0xf]
        %v1098 = vld [vmem:[%s1009] sm:$0x1]
        %v1100 = vlaneseq
        %v1101 = vshrl.u32 %v1100, 7
        %v1102 = vsub.s32 0, %v1101
        %v1103 = vrot.slane %v1098, %v1102
        %v1109 = vunpack.c.l.b16 %v1094
        %v1110 = vunpack.c.l.b16 %v1095
        %v1111 = vunpack.c.l.b16 %v1096
        %v1112 = vunpack.c.l.b16 %v1097
        %v1113 = vpack.c.b16 %v1110, %v1109
        %v1114 = vpack.c.b16 %v1112, %v1111
        %vm1117 = vcmask 261120
        %v1119 = vsel %vm1117, %v1093, 0
        %1121 = vmatprep.subr.bf16.mxu0 0
        %1122 = vmatpush1.bf16.msra.mxu0 %v1113
        %1123 = vmatprep.subr.bf16.mxu0 0
        %1124 = vmatpush1.bf16.msra.mxu0 %v1114
        %1125 = vmatprep.subr.bf16.mxu0 0
        %1126 = vmatpush1.bf16.msra.mxu0 0
        %1127 = vmatprep.subr.bf16.mxu0 0
        %1128 = vmatpush1.bf16.msra.mxu0 0
        %1129 = vmatprep.subr.bf16.mxu0 0
        %1130 = vmatpush1.bf16.msra.mxu0 0
        %1131 = vmatprep.subr.bf16.mxu0 0
        %1132 = vmatpush1.bf16.msra.mxu0 0
        %1133 = vmatprep.subr.bf16.mxu0 0
        %1134 = vmatpush1.bf16.msra.mxu0 0
        %1135 = vmatprep.subr.bf16.mxu0 0
        %1136 = vmatpush1.bf16.msra.mxu0 0
        %1137 = vmatprep.subr.bf16.mxu0 0
        %1138 = vmatpush1.bf16.msra.mxu0 0
        %1139 = vmatprep.subr.bf16.mxu0 0
        %1140 = vmatpush1.bf16.msra.mxu0 0
        %1141 = vmatprep.subr.bf16.mxu0 0
        %1142 = vmatpush1.bf16.msra.mxu0 0
        %1143 = vmatprep.subr.bf16.mxu0 0
        %1144 = vmatpush1.bf16.msra.mxu0 0
        %1145 = vmatprep.subr.bf16.mxu0 0
        %1146 = vmatpush1.bf16.msra.mxu0 0
        %1147 = vmatprep.subr.bf16.mxu0 0
        %1148 = vmatpush1.bf16.msra.mxu0 0
        %1149 = vmatprep.subr.bf16.mxu0 0
        %1150 = vmatpush1.bf16.msra.mxu0 0
        %1151 = vmatprep.subr.bf16.mxu0 0
        %1152 = vmatpush1.bf16.msra.mxu0 0
        %1153 = vmatprep.mubr.bf16.mxu0 0
        %1154 = vmatmul.mubr.bf16.gmra.mrb[0].mxu0 %v1119
        %v1155 = vpop.f32.mrb[0].mxu0
        %v1156 = vadd.f32 %v1103, %v1155
        %v1157 = vpop.f32.mrb[0].mxu0
        %v1158 = vpop.f32.mrb[0].mxu0
        %v1159 = vpop.f32.mrb[0].mxu0
        %1160 = vdwg.mxu0
        %v1161 = vld [vmem:[%s1000] sm:$0xf]
        %v1162 = vld [vmem:[%s1000 + $0x4] sm:$0xf]
        %v1163 = vld [vmem:[%s1000 + $0x8] sm:$0xf]
        %v1164 = vld [vmem:[%s1000 + $0xc] sm:$0xf]
        %v1165 = vld [vmem:[%s1013] sm:$0x1]
        %v1167 = vlaneseq
        %v1168 = vshrl.u32 %v1167, 7
        %v1169 = vsub.s32 0, %v1168
        %v1170 = vrot.slane %v1165, %v1169
        %v1176 = vunpack.c.l.b16 %v1161
        %v1177 = vunpack.c.l.b16 %v1162
        %v1178 = vunpack.c.l.b16 %v1163
        %v1179 = vunpack.c.l.b16 %v1164
        %v1180 = vpack.c.b16 %v1177, %v1176
        %v1181 = vpack.c.b16 %v1179, %v1178
        %1184 = vmatprep.subr.bf16.mxu0 0
        %1185 = vmatpush1.bf16.msra.mxu0 %v1180
        %1186 = vmatprep.subr.bf16.mxu0 0
        %1187 = vmatpush1.bf16.msra.mxu0 %v1181
        %1188 = vmatprep.subr.bf16.mxu0 0
        %1189 = vmatpush1.bf16.msra.mxu0 0
        %1190 = vmatprep.subr.bf16.mxu0 0
        %1191 = vmatpush1.bf16.msra.mxu0 0
        %1192 = vmatprep.subr.bf16.mxu0 0
        %1193 = vmatpush1.bf16.msra.mxu0 0
        %1194 = vmatprep.subr.bf16.mxu0 0
        %1195 = vmatpush1.bf16.msra.mxu0 0
        %1196 = vmatprep.subr.bf16.mxu0 0
        %1197 = vmatpush1.bf16.msra.mxu0 0
        %1198 = vmatprep.subr.bf16.mxu0 0
        %1199 = vmatpush1.bf16.msra.mxu0 0
        %1200 = vmatprep.subr.bf16.mxu0 0
        %1201 = vmatpush1.bf16.msra.mxu0 0
        %1202 = vmatprep.subr.bf16.mxu0 0
        %1203 = vmatpush1.bf16.msra.mxu0 0
        %1204 = vmatprep.subr.bf16.mxu0 0
        %1205 = vmatpush1.bf16.msra.mxu0 0
        %1206 = vmatprep.subr.bf16.mxu0 0
        %1207 = vmatpush1.bf16.msra.mxu0 0
        %1208 = vmatprep.subr.bf16.mxu0 0
        %1209 = vmatpush1.bf16.msra.mxu0 0
        %1210 = vmatprep.subr.bf16.mxu0 0
        %1211 = vmatpush1.bf16.msra.mxu0 0
        %1212 = vmatprep.subr.bf16.mxu0 0
        %1213 = vmatpush1.bf16.msra.mxu0 0
        %1214 = vmatprep.subr.bf16.mxu0 0
        %1215 = vmatpush1.bf16.msra.mxu0 0
        %1216 = vmatprep.mubr.bf16.mxu0 0
        %1217 = vmatmul.mubr.bf16.gmra.mrb[0].mxu0 %v1119
        %v1218 = vpop.f32.mrb[0].mxu0
        %v1219 = vadd.f32 %v1170, %v1218
        %v1220 = vpop.f32.mrb[0].mxu0
        %v1221 = vpop.f32.mrb[0].mxu0
        %v1222 = vpop.f32.mrb[0].mxu0
        %1223 = vdwg.mxu0
        %v1224 = vld [vmem:[%s1005] sm:$0xf]
        %v1225 = vld [vmem:[%s1005 + $0x4] sm:$0xf]
        %v1226 = vld [vmem:[%s1005 + $0x8] sm:$0xf]
        %v1227 = vld [vmem:[%s1005 + $0xc] sm:$0xf]
        %v1228 = vld [vmem:[%s1017] sm:$0x1]
        %v1230 = vlaneseq
        %v1231 = vshrl.u32 %v1230, 7
        %v1232 = vsub.s32 0, %v1231
        %v1233 = vrot.slane %v1228, %v1232
        %v1239 = vunpack.c.l.b16 %v1224
        %v1240 = vunpack.c.l.b16 %v1225
        %v1241 = vunpack.c.l.b16 %v1226
        %v1242 = vunpack.c.l.b16 %v1227
        %v1243 = vpack.c.b16 %v1240, %v1239
        %v1244 = vpack.c.b16 %v1242, %v1241
        %1247 = vmatprep.subr.bf16.mxu0 0
        %1248 = vmatpush1.bf16.msra.mxu0 %v1243
        %1249 = vmatprep.subr.bf16.mxu0 0
        %1250 = vmatpush1.bf16.msra.mxu0 %v1244
        %1251 = vmatprep.subr.bf16.mxu0 0
        %1252 = vmatpush1.bf16.msra.mxu0 0
        %1253 = vmatprep.subr.bf16.mxu0 0
        %1254 = vmatpush1.bf16.msra.mxu0 0
        %1255 = vmatprep.subr.bf16.mxu0 0
        %1256 = vmatpush1.bf16.msra.mxu0 0
        %1257 = vmatprep.subr.bf16.mxu0 0
        %1258 = vmatpush1.bf16.msra.mxu0 0
        %1259 = vmatprep.subr.bf16.mxu0 0
        %1260 = vmatpush1.bf16.msra.mxu0 0
        %1261 = vmatprep.subr.bf16.mxu0 0
        %1262 = vmatpush1.bf16.msra.mxu0 0
        %1263 = vmatprep.subr.bf16.mxu0 0
        %1264 = vmatpush1.bf16.msra.mxu0 0
        %1265 = vmatprep.subr.bf16.mxu0 0
        %1266 = vmatpush1.bf16.msra.mxu0 0
        %1267 = vmatprep.subr.bf16.mxu0 0
        %1268 = vmatpush1.bf16.msra.mxu0 0
        %1269 = vmatprep.subr.bf16.mxu0 0
        %1270 = vmatpush1.bf16.msra.mxu0 0
        %1271 = vmatprep.subr.bf16.mxu0 0
        %1272 = vmatpush1.bf16.msra.mxu0 0
        %1273 = vmatprep.subr.bf16.mxu0 0
        %1274 = vmatpush1.bf16.msra.mxu0 0
        %1275 = vmatprep.subr.bf16.mxu0 0
        %1276 = vmatpush1.bf16.msra.mxu0 0
        %1277 = vmatprep.subr.bf16.mxu0 0
        %1278 = vmatpush1.bf16.msra.mxu0 0
        %1279 = vmatprep.mubr.bf16.mxu0 0
        %1280 = vmatmul.mubr.bf16.gmra.mrb[0].mxu0 %v1119
        %v1281 = vpop.f32.mrb[0].mxu0
        %v1282 = vadd.f32 %v1233, %v1281
        %v1283 = vpop.f32.mrb[0].mxu0
        %v1284 = vpop.f32.mrb[0].mxu0
        %v1285 = vpop.f32.mrb[0].mxu0
        %1286 = vdwg.mxu0
        %v1287 = vpack.c.bf16 %v1156, %v1156
        %v1288 = vpack.c.bf16 %v1219, %v1219
        %vm1289 = vcmask 130048
        %v1291 = vsel %vm1289, %v1287, 0
        %v1294 = vsel %vm1289, %v1288, 0
        %1296 = vmatprep.subr.bf16.mxu0 0
        %1297 = vmatpush1.bf16.xpose.msra.mxu0 %v1294
        %1298 = vmatprep.subr.bf16.mxu0 0
        %1299 = vmatpush1.bf16.xpose.msra.mxu0 0
        %1300 = vmatprep.subr.bf16.mxu0 0
        %1301 = vmatpush1.bf16.xpose.msra.mxu0 0
        %1302 = vmatprep.subr.bf16.mxu0 0
        %1303 = vmatpush1.bf16.xpose.msra.mxu0 0
        %1304 = vmatprep.subr.bf16.mxu0 0
        %1305 = vmatpush1.bf16.xpose.msra.mxu0 0
        %1306 = vmatprep.subr.bf16.mxu0 0
        %1307 = vmatpush1.bf16.xpose.msra.mxu0 0
        %1308 = vmatprep.subr.bf16.mxu0 0
        %1309 = vmatpush1.bf16.xpose.msra.mxu0 0
        %1310 = vmatprep.subr.bf16.mxu0 0
        %1311 = vmatpush1.bf16.xpose.msra.mxu0 0
        %1312 = vmatprep.subr.bf16.mxu0 0
        %1313 = vmatpush1.bf16.xpose.msra.mxu0 0
        %1314 = vmatprep.subr.bf16.mxu0 0
        %1315 = vmatpush1.bf16.xpose.msra.mxu0 0
        %1316 = vmatprep.subr.bf16.mxu0 0
        %1317 = vmatpush1.bf16.xpose.msra.mxu0 0
        %1318 = vmatprep.subr.bf16.mxu0 0
        %1319 = vmatpush1.bf16.xpose.msra.mxu0 0
        %1320 = vmatprep.subr.bf16.mxu0 0
        %1321 = vmatpush1.bf16.xpose.msra.mxu0 0
        %1322 = vmatprep.subr.bf16.mxu0 0
        %1323 = vmatpush1.bf16.xpose.msra.mxu0 0
        %1324 = vmatprep.subr.bf16.mxu0 0
        %1325 = vmatpush1.bf16.xpose.msra.mxu0 0
        %1326 = vmatprep.subr.bf16.mxu0 0
        %1327 = vmatpush1.bf16.xpose.msra.mxu0 0
        %1328 = vmatprep.mubr.bf16.mxu0 0
        %1329 = vmatmul.mubr.bf16.gmra.mrb[0].mxu0 %v1291
        %v1330 = vpop.f32.mrb[0].mxu0
        %v1331 = vadd.f32 0.0, %v1330
        %v1332 = vpop.f32.mrb[0].mxu0
        %v1333 = vpop.f32.mrb[0].mxu0
        %v1334 = vpop.f32.mrb[0].mxu0
        %1335 = vdwg.mxu0
        %v1336 = vmul.f32 %v1331, 0.25
        %v1338 = vlaneseq
        %v1339 = vshrl.u32 %v1338, 7
        %v1340 = vsub.s32 0, %v1339
        %v1341 = vrot.slane %v1092, %v1340
        %v1343 = vadd.f32 %v1336, %v1341
        %vm1344 = vcmask 64512
        %v1345 = vsel %vm1344, %v1343, -inf
        %1346 = vmax.xlane.f32.xlu0 %v1345
        %v1347 = vpop.xlane.xlu0 %1346
        %v1348 = vsub.f32 %v1343, %v1347
        %v1349 = vmul.f32 %v1348, 1.442695
        %v1350 = vpow.pop %v1349
        %v1351 = vsel %vm1344, %v1350, 0.0
        %1352 = vadd.xlane.f32.xlu0 %v1351
        %v1353 = vpop.xlane.xlu0 %1352
        %v1354 = vrcp.pop %v1353
        %v1355 = vmul.f32 %v1350, %v1354
        %v1356 = vpack.c.bf16 %v1355, %v1355
        %v1357 = vpack.c.bf16 %v1282, %v1282
        %v1359 = vsel %vm1344, %v1356, 0
        %vm1361 = vcmask 1043456
        %v1363 = vsel %vm1361, %v1357, 0
        %1365 = vmatprep.subr.bf16.mxu0 0
        %1366 = vmatpush1.bf16.msra.mxu0 %v1363
        %1367 = vmatprep.subr.bf16.mxu0 0
        %1368 = vmatpush1.bf16.msra.mxu0 0
        %1369 = vmatprep.subr.bf16.mxu0 0
        %1370 = vmatpush1.bf16.msra.mxu0 0
        %1371 = vmatprep.subr.bf16.mxu0 0
        %1372 = vmatpush1.bf16.msra.mxu0 0
        %1373 = vmatprep.subr.bf16.mxu0 0
        %1374 = vmatpush1.bf16.msra.mxu0 0
        %1375 = vmatprep.subr.bf16.mxu0 0
        %1376 = vmatpush1.bf16.msra.mxu0 0
        %1377 = vmatprep.subr.bf16.mxu0 0
        %1378 = vmatpush1.bf16.msra.mxu0 0
        %1379 = vmatprep.subr.bf16.mxu0 0
        %1380 = vmatpush1.bf16.msra.mxu0 0
        %1381 = vmatprep.subr.bf16.mxu0 0
        %1382 = vmatpush1.bf16.msra.mxu0 0
        %1383 = vmatprep.subr.bf16.mxu0 0
        %1384 = vmatpush1.bf16.msra.mxu0 0
        %1385 = vmatprep.subr.bf16.mxu0 0
        %1386 = vmatpush1.bf16.msra.mxu0 0
        %1387 = vmatprep.subr.bf16.mxu0 0
        %1388 = vmatpush1.bf16.msra.mxu0 0
        %1389 = vmatprep.subr.bf16.mxu0 0
        %1390 = vmatpush1.bf16.msra.mxu0 0
        %1391 = vmatprep.subr.bf16.mxu0 0
        %1392 = vmatpush1.bf16.msra.mxu0 0
        %1393 = vmatprep.subr.bf16.mxu0 0
        %1394 = vmatpush1.bf16.msra.mxu0 0
        %1395 = vmatprep.subr.bf16.mxu0 0
        %1396 = vmatpush1.bf16.msra.mxu0 0
        %1397 = vmatprep.mubr.bf16.mxu0 0
        %1398 = vmatmul.mubr.bf16.gmra.mrb[0].mxu0 %v1359
        %v1399 = vpop.f32.mrb[0].mxu0
        %v1400 = vadd.f32 0.0, %v1399
        %v1401 = vpop.f32.mrb[0].mxu0
        %v1402 = vpop.f32.mrb[0].mxu0
        %v1403 = vpop.f32.mrb[0].mxu0
        %1404 = vdwg.mxu0
        %s1405 = scalar_lea.vmem %s995, 16
        %v1406 = vld [vmem:[%s1405] sm:$0xf]
        %v1407 = vld [vmem:[%s1405 + $0x4] sm:$0xf]
        %v1408 = vld [vmem:[%s1405 + $0x8] sm:$0xf]
        %v1409 = vld [vmem:[%s1405 + $0xc] sm:$0xf]
        %s1410 = scalar_lea.vmem %s1009, 1
        %v1411 = vld [vmem:[%s1410] sm:$0x1]
        %v1413 = vlaneseq
        %v1414 = vshrl.u32 %v1413, 7
        %v1415 = vsub.s32 0, %v1414
        %v1416 = vrot.slane %v1411, %v1415
        %v1422 = vunpack.c.l.b16 %v1406
        %v1423 = vunpack.c.l.b16 %v1407
        %v1424 = vunpack.c.l.b16 %v1408
        %v1425 = vunpack.c.l.b16 %v1409
        %v1426 = vpack.c.b16 %v1423, %v1422
        %v1427 = vpack.c.b16 %v1425, %v1424
        %1430 = vmatprep.subr.bf16.mxu0 0
        %1431 = vmatpush1.bf16.msra.mxu0 %v1426
        %1432 = vmatprep.subr.bf16.mxu0 0
        %1433 = vmatpush1.bf16.msra.mxu0 %v1427
        %1434 = vmatprep.subr.bf16.mxu0 0
        %1435 = vmatpush1.bf16.msra.mxu0 0
        %1436 = vmatprep.subr.bf16.mxu0 0
        %1437 = vmatpush1.bf16.msra.mxu0 0
        %1438 = vmatprep.subr.bf16.mxu0 0
        %1439 = vmatpush1.bf16.msra.mxu0 0
        %1440 = vmatprep.subr.bf16.mxu0 0
        %1441 = vmatpush1.bf16.msra.mxu0 0
        %1442 = vmatprep.subr.bf16.mxu0 0
        %1443 = vmatpush1.bf16.msra.mxu0 0
        %1444 = vmatprep.subr.bf16.mxu0 0
        %1445 = vmatpush1.bf16.msra.mxu0 0
        %1446 = vmatprep.subr.bf16.mxu0 0
        %1447 = vmatpush1.bf16.msra.mxu0 0
        %1448 = vmatprep.subr.bf16.mxu0 0
        %1449 = vmatpush1.bf16.msra.mxu0 0
        %1450 = vmatprep.subr.bf16.mxu0 0
        %1451 = vmatpush1.bf16.msra.mxu0 0
        %1452 = vmatprep.subr.bf16.mxu0 0
        %1453 = vmatpush1.bf16.msra.mxu0 0
        %1454 = vmatprep.subr.bf16.mxu0 0
        %1455 = vmatpush1.bf16.msra.mxu0 0
        %1456 = vmatprep.subr.bf16.mxu0 0
        %1457 = vmatpush1.bf16.msra.mxu0 0
        %1458 = vmatprep.subr.bf16.mxu0 0
        %1459 = vmatpush1.bf16.msra.mxu0 0
        %1460 = vmatprep.subr.bf16.mxu0 0
        %1461 = vmatpush1.bf16.msra.mxu0 0
        %1462 = vmatprep.mubr.bf16.mxu0 0
        %1463 = vmatmul.mubr.bf16.gmra.mrb[0].mxu0 %v1119
        %v1464 = vpop.f32.mrb[0].mxu0
        %v1465 = vadd.f32 %v1416, %v1464
        %v1466 = vpop.f32.mrb[0].mxu0
        %v1467 = vpop.f32.mrb[0].mxu0
        %v1468 = vpop.f32.mrb[0].mxu0
        %1469 = vdwg.mxu0
        %s1470 = scalar_lea.vmem %s1000, 16
        %v1471 = vld [vmem:[%s1470] sm:$0xf]
        %v1472 = vld [vmem:[%s1470 + $0x4] sm:$0xf]
        %v1473 = vld [vmem:[%s1470 + $0x8] sm:$0xf]
        %v1474 = vld [vmem:[%s1470 + $0xc] sm:$0xf]
        %s1475 = scalar_lea.vmem %s1013, 1
        %v1476 = vld [vmem:[%s1475] sm:$0x1]
        %v1478 = vlaneseq
        %v1479 = vshrl.u32 %v1478, 7
        %v1480 = vsub.s32 0, %v1479
        %v1481 = vrot.slane %v1476, %v1480
        %v1487 = vunpack.c.l.b16 %v1471
        %v1488 = vunpack.c.l.b16 %v1472
        %v1489 = vunpack.c.l.b16 %v1473
        %v1490 = vunpack.c.l.b16 %v1474
        %v1491 = vpack.c.b16 %v1488, %v1487
        %v1492 = vpack.c.b16 %v1490, %v1489
        %1495 = vmatprep.subr.bf16.mxu0 0
        %1496 = vmatpush1.bf16.msra.mxu0 %v1491
        %1497 = vmatprep.subr.bf16.mxu0 0
        %1498 = vmatpush1.bf16.msra.mxu0 %v1492
        %1499 = vmatprep.subr.bf16.mxu0 0
        %1500 = vmatpush1.bf16.msra.mxu0 0
        %1501 = vmatprep.subr.bf16.mxu0 0
        %1502 = vmatpush1.bf16.msra.mxu0 0
        %1503 = vmatprep.subr.bf16.mxu0 0
        %1504 = vmatpush1.bf16.msra.mxu0 0
        %1505 = vmatprep.subr.bf16.mxu0 0
        %1506 = vmatpush1.bf16.msra.mxu0 0
        %1507 = vmatprep.subr.bf16.mxu0 0
        %1508 = vmatpush1.bf16.msra.mxu0 0
        %1509 = vmatprep.subr.bf16.mxu0 0
        %1510 = vmatpush1.bf16.msra.mxu0 0
        %1511 = vmatprep.subr.bf16.mxu0 0
        %1512 = vmatpush1.bf16.msra.mxu0 0
        %1513 = vmatprep.subr.bf16.mxu0 0
        %1514 = vmatpush1.bf16.msra.mxu0 0
        %1515 = vmatprep.subr.bf16.mxu0 0
        %1516 = vmatpush1.bf16.msra.mxu0 0
        %1517 = vmatprep.subr.bf16.mxu0 0
        %1518 = vmatpush1.bf16.msra.mxu0 0
        %1519 = vmatprep.subr.bf16.mxu0 0
        %1520 = vmatpush1.bf16.msra.mxu0 0
        %1521 = vmatprep.subr.bf16.mxu0 0
        %1522 = vmatpush1.bf16.msra.mxu0 0
        %1523 = vmatprep.subr.bf16.mxu0 0
        %1524 = vmatpush1.bf16.msra.mxu0 0
        %1525 = vmatprep.subr.bf16.mxu0 0
        %1526 = vmatpush1.bf16.msra.mxu0 0
        %1527 = vmatprep.mubr.bf16.mxu0 0
        %1528 = vmatmul.mubr.bf16.gmra.mrb[0].mxu0 %v1119
        %v1529 = vpop.f32.mrb[0].mxu0
        %v1530 = vadd.f32 %v1481, %v1529
        %v1531 = vpop.f32.mrb[0].mxu0
        %v1532 = vpop.f32.mrb[0].mxu0
        %v1533 = vpop.f32.mrb[0].mxu0
        %1534 = vdwg.mxu0
        %s1535 = scalar_lea.vmem %s1005, 16
        %v1536 = vld [vmem:[%s1535] sm:$0xf]
        %v1537 = vld [vmem:[%s1535 + $0x4] sm:$0xf]
        %v1538 = vld [vmem:[%s1535 + $0x8] sm:$0xf]
        %v1539 = vld [vmem:[%s1535 + $0xc] sm:$0xf]
        %s1540 = scalar_lea.vmem %s1017, 1
        %v1541 = vld [vmem:[%s1540] sm:$0x1]
        %v1543 = vlaneseq
        %v1544 = vshrl.u32 %v1543, 7
        %v1545 = vsub.s32 0, %v1544
        %v1546 = vrot.slane %v1541, %v1545
        %v1552 = vunpack.c.l.b16 %v1536
        %v1553 = vunpack.c.l.b16 %v1537
        %v1554 = vunpack.c.l.b16 %v1538
        %v1555 = vunpack.c.l.b16 %v1539
        %v1556 = vpack.c.b16 %v1553, %v1552
        %v1557 = vpack.c.b16 %v1555, %v1554
        %1560 = vmatprep.subr.bf16.mxu0 0
        %1561 = vmatpush1.bf16.msra.mxu0 %v1556
        %1562 = vmatprep.subr.bf16.mxu0 0
        %1563 = vmatpush1.bf16.msra.mxu0 %v1557
        %1564 = vmatprep.subr.bf16.mxu0 0
        %1565 = vmatpush1.bf16.msra.mxu0 0
        %1566 = vmatprep.subr.bf16.mxu0 0
        %1567 = vmatpush1.bf16.msra.mxu0 0
        %1568 = vmatprep.subr.bf16.mxu0 0
        %1569 = vmatpush1.bf16.msra.mxu0 0
        %1570 = vmatprep.subr.bf16.mxu0 0
        %1571 = vmatpush1.bf16.msra.mxu0 0
        %1572 = vmatprep.subr.bf16.mxu0 0
        %1573 = vmatpush1.bf16.msra.mxu0 0
        %1574 = vmatprep.subr.bf16.mxu0 0
        %1575 = vmatpush1.bf16.msra.mxu0 0
        %1576 = vmatprep.subr.bf16.mxu0 0
        %1577 = vmatpush1.bf16.msra.mxu0 0
        %1578 = vmatprep.subr.bf16.mxu0 0
        %1579 = vmatpush1.bf16.msra.mxu0 0
        %1580 = vmatprep.subr.bf16.mxu0 0
        %1581 = vmatpush1.bf16.msra.mxu0 0
        %1582 = vmatprep.subr.bf16.mxu0 0
        %1583 = vmatpush1.bf16.msra.mxu0 0
        %1584 = vmatprep.subr.bf16.mxu0 0
        %1585 = vmatpush1.bf16.msra.mxu0 0
        %1586 = vmatprep.subr.bf16.mxu0 0
        %1587 = vmatpush1.bf16.msra.mxu0 0
        %1588 = vmatprep.subr.bf16.mxu0 0
        %1589 = vmatpush1.bf16.msra.mxu0 0
        %1590 = vmatprep.subr.bf16.mxu0 0
        %1591 = vmatpush1.bf16.msra.mxu0 0
        %1592 = vmatprep.mubr.bf16.mxu0 0
        %1593 = vmatmul.mubr.bf16.gmra.mrb[0].mxu0 %v1119
        %v1594 = vpop.f32.mrb[0].mxu0
        %v1595 = vadd.f32 %v1546, %v1594
        %v1596 = vpop.f32.mrb[0].mxu0
        %v1597 = vpop.f32.mrb[0].mxu0
        %v1598 = vpop.f32.mrb[0].mxu0
        %1599 = vdwg.mxu0
        %v1600 = vpack.c.bf16 %v1465, %v1465
        %v1601 = vpack.c.bf16 %v1530, %v1530
        %v1603 = vsel %vm1289, %v1600, 0
        %v1606 = vsel %vm1289, %v1601, 0
        %1608 = vmatprep.subr.bf16.mxu0 0
        %1609 = vmatpush1.bf16.xpose.msra.mxu0 %v1606
        %1610 = vmatprep.subr.bf16.mxu0 0
        %1611 = vmatpush1.bf16.xpose.msra.mxu0 0
        %1612 = vmatprep.subr.bf16.mxu0 0
        %1613 = vmatpush1.bf16.xpose.msra.mxu0 0
        %1614 = vmatprep.subr.bf16.mxu0 0
        %1615 = vmatpush1.bf16.xpose.msra.mxu0 0
        %1616 = vmatprep.subr.bf16.mxu0 0
        %1617 = vmatpush1.bf16.xpose.msra.mxu0 0
        %1618 = vmatprep.subr.bf16.mxu0 0
        %1619 = vmatpush1.bf16.xpose.msra.mxu0 0
        %1620 = vmatprep.subr.bf16.mxu0 0
        %1621 = vmatpush1.bf16.xpose.msra.mxu0 0
        %1622 = vmatprep.subr.bf16.mxu0 0
        %1623 = vmatpush1.bf16.xpose.msra.mxu0 0
        %1624 = vmatprep.subr.bf16.mxu0 0
        %1625 = vmatpush1.bf16.xpose.msra.mxu0 0
        %1626 = vmatprep.subr.bf16.mxu0 0
        %1627 = vmatpush1.bf16.xpose.msra.mxu0 0
        %1628 = vmatprep.subr.bf16.mxu0 0
        %1629 = vmatpush1.bf16.xpose.msra.mxu0 0
        %1630 = vmatprep.subr.bf16.mxu0 0
        %1631 = vmatpush1.bf16.xpose.msra.mxu0 0
        %1632 = vmatprep.subr.bf16.mxu0 0
        %1633 = vmatpush1.bf16.xpose.msra.mxu0 0
        %1634 = vmatprep.subr.bf16.mxu0 0
        %1635 = vmatpush1.bf16.xpose.msra.mxu0 0
        %1636 = vmatprep.subr.bf16.mxu0 0
        %1637 = vmatpush1.bf16.xpose.msra.mxu0 0
        %1638 = vmatprep.subr.bf16.mxu0 0
        %1639 = vmatpush1.bf16.xpose.msra.mxu0 0
        %1640 = vmatprep.mubr.bf16.mxu0 0
        %1641 = vmatmul.mubr.bf16.gmra.mrb[0].mxu0 %v1603
        %v1642 = vpop.f32.mrb[0].mxu0
        %v1643 = vadd.f32 0.0, %v1642
        %v1644 = vpop.f32.mrb[0].mxu0
        %v1645 = vpop.f32.mrb[0].mxu0
        %v1646 = vpop.f32.mrb[0].mxu0
        %1647 = vdwg.mxu0
        %v1648 = vmul.f32 %v1643, 0.25
        %v1649 = vadd.f32 %v1648, %v1341
        %v1650 = vsel %vm1344, %v1649, -inf
        %1651 = vmax.xlane.f32.xlu0 %v1650
        %v1652 = vpop.xlane.xlu0 %1651
        %v1653 = vsub.f32 %v1649, %v1652
        %v1654 = vmul.f32 %v1653, 1.442695
        %v1655 = vpow.pop %v1654
        %v1656 = vsel %vm1344, %v1655, 0.0
        %1657 = vadd.xlane.f32.xlu0 %v1656
        %v1658 = vpop.xlane.xlu0 %1657
        %v1659 = vrcp.pop %v1658
        %v1660 = vmul.f32 %v1655, %v1659
        %v1661 = vpack.c.bf16 %v1660, %v1660
        %v1662 = vpack.c.bf16 %v1595, %v1595
        %v1664 = vsel %vm1344, %v1661, 0
        %v1667 = vsel %vm1361, %v1662, 0
        %1669 = vmatprep.subr.bf16.mxu0 0
        %1670 = vmatpush1.bf16.msra.mxu0 %v1667
        %1671 = vmatprep.subr.bf16.mxu0 0
        %1672 = vmatpush1.bf16.msra.mxu0 0
        %1673 = vmatprep.subr.bf16.mxu0 0
        %1674 = vmatpush1.bf16.msra.mxu0 0
        %1675 = vmatprep.subr.bf16.mxu0 0
        %1676 = vmatpush1.bf16.msra.mxu0 0
        %1677 = vmatprep.subr.bf16.mxu0 0
        %1678 = vmatpush1.bf16.msra.mxu0 0
        %1679 = vmatprep.subr.bf16.mxu0 0
        %1680 = vmatpush1.bf16.msra.mxu0 0
        %1681 = vmatprep.subr.bf16.mxu0 0
        %1682 = vmatpush1.bf16.msra.mxu0 0
        %1683 = vmatprep.subr.bf16.mxu0 0
        %1684 = vmatpush1.bf16.msra.mxu0 0
        %1685 = vmatprep.subr.bf16.mxu0 0
        %1686 = vmatpush1.bf16.msra.mxu0 0
        %1687 = vmatprep.subr.bf16.mxu0 0
        %1688 = vmatpush1.bf16.msra.mxu0 0
        %1689 = vmatprep.subr.bf16.mxu0 0
        %1690 = vmatpush1.bf16.msra.mxu0 0
        %1691 = vmatprep.subr.bf16.mxu0 0
        %1692 = vmatpush1.bf16.msra.mxu0 0
        %1693 = vmatprep.subr.bf16.mxu0 0
        %1694 = vmatpush1.bf16.msra.mxu0 0
        %1695 = vmatprep.subr.bf16.mxu0 0
        %1696 = vmatpush1.bf16.msra.mxu0 0
        %1697 = vmatprep.subr.bf16.mxu0 0
        %1698 = vmatpush1.bf16.msra.mxu0 0
        %1699 = vmatprep.subr.bf16.mxu0 0
        %1700 = vmatpush1.bf16.msra.mxu0 0
        %1701 = vmatprep.mubr.bf16.mxu0 0
        %1702 = vmatmul.mubr.bf16.gmra.mrb[0].mxu0 %v1664
        %v1703 = vpop.f32.mrb[0].mxu0
        %v1704 = vadd.f32 0.0, %v1703
        %v1705 = vpop.f32.mrb[0].mxu0
        %v1706 = vpop.f32.mrb[0].mxu0
        %v1707 = vpop.f32.mrb[0].mxu0
        %1708 = vdwg.mxu0
        %1710 = vrot.lane.b32.xlu0 %v1704, 16
        %v1711 = vpop.permute.xlu0 %1710
        %v1713 = vsel %vm1289, %v1400, %v1711
        %v1714 = vpack.c.bf16 %v1713, %v1713
        %v1715 = vld [vmem:[%s1022] sm:$0xf]
        %v1716 = vld [vmem:[%s1022 + $0x4] sm:$0xf]
        %v1717 = vld [vmem:[%s1022 + $0x8] sm:$0xf]
        %v1718 = vld [vmem:[%s1022 + $0xc] sm:$0xf]
        %v1719 = vld [vmem:[%s1025] sm:$0x1]
        %v1721 = vlaneseq
        %v1722 = vshrl.u32 %v1721, 7
        %v1723 = vsub.s32 0, %v1722
        %v1724 = vrot.slane %v1719, %v1723
        %v1730 = vunpack.c.l.b16 %v1715
        %v1731 = vunpack.c.l.b16 %v1716
        %v1732 = vunpack.c.l.b16 %v1717
        %v1733 = vunpack.c.l.b16 %v1718
        %v1734 = vpack.c.b16 %v1731, %v1730
        %v1735 = vpack.c.b16 %v1733, %v1732
        %v1739 = vsel %vm1117, %v1714, 0
        %1741 = vmatprep.subr.bf16.mxu0 0
        %1742 = vmatpush1.bf16.msra.mxu0 %v1734
        %1743 = vmatprep.subr.bf16.mxu0 0
        %1744 = vmatpush1.bf16.msra.mxu0 %v1735
        %1745 = vmatprep.subr.bf16.mxu0 0
        %1746 = vmatpush1.bf16.msra.mxu0 0
        %1747 = vmatprep.subr.bf16.mxu0 0
        %1748 = vmatpush1.bf16.msra.mxu0 0
        %1749 = vmatprep.subr.bf16.mxu0 0
        %1750 = vmatpush1.bf16.msra.mxu0 0
        %1751 = vmatprep.subr.bf16.mxu0 0
        %1752 = vmatpush1.bf16.msra.mxu0 0
        %1753 = vmatprep.subr.bf16.mxu0 0
        %1754 = vmatpush1.bf16.msra.mxu0 0
        %1755 = vmatprep.subr.bf16.mxu0 0
        %1756 = vmatpush1.bf16.msra.mxu0 0
        %1757 = vmatprep.subr.bf16.mxu0 0
        %1758 = vmatpush1.bf16.msra.mxu0 0
        %1759 = vmatprep.subr.bf16.mxu0 0
        %1760 = vmatpush1.bf16.msra.mxu0 0
        %1761 = vmatprep.subr.bf16.mxu0 0
        %1762 = vmatpush1.bf16.msra.mxu0 0
        %1763 = vmatprep.subr.bf16.mxu0 0
        %1764 = vmatpush1.bf16.msra.mxu0 0
        %1765 = vmatprep.subr.bf16.mxu0 0
        %1766 = vmatpush1.bf16.msra.mxu0 0
        %1767 = vmatprep.subr.bf16.mxu0 0
        %1768 = vmatpush1.bf16.msra.mxu0 0
        %1769 = vmatprep.subr.bf16.mxu0 0
        %1770 = vmatpush1.bf16.msra.mxu0 0
        %1771 = vmatprep.subr.bf16.mxu0 0
        %1772 = vmatpush1.bf16.msra.mxu0 0
        %1773 = vmatprep.mubr.bf16.mxu0 0
        %1774 = vmatmul.mubr.bf16.gmra.mrb[0].mxu0 %v1739
        %v1775 = vpop.f32.mrb[0].mxu0
        %v1776 = vadd.f32 %v1724, %v1775
        %v1777 = vpop.f32.mrb[0].mxu0
        %v1778 = vpop.f32.mrb[0].mxu0
        %v1779 = vpop.f32.mrb[0].mxu0
        %1780 = vdwg.mxu0
        %v1781 = vadd.f32 %v1776, %v1091
        %v1782 = vld [vmem:[%s1028] sm:$0x1]
        %v1783 = vld [vmem:[%s1031] sm:$0x1]
        %v1784 = vsel %vm1117, %v1781, 0.0
        %1785 = vadd.xlane.f32.xlu0 %v1784
        %v1786 = vpop.xlane.xlu0 %1785
        %v1787 = vrcp.pop 32.0
        %v1788 = vmul.f32 %v1786, %v1787
        %v1789 = vsub.f32 %v1781, %v1788
        %v1790 = vmul.f32 %v1789, %v1789
        %v1791 = vsel %vm1117, %v1790, 0.0
        %1792 = vadd.xlane.f32.xlu0 %v1791
        %v1793 = vpop.xlane.xlu0 %1792
        %v1794 = vmul.f32 %v1793, %v1787
        %v1795 = vadd.f32 %v1794, 1e-12
        %v1796 = vrsqrt.pop %v1795
        %v1797 = vmul.f32 %v1789, %v1796
        %v1799 = vlaneseq
        %v1800 = vshrl.u32 %v1799, 7
        %v1801 = vsub.s32 0, %v1800
        %v1802 = vrot.slane %v1782, %v1801
        %v1804 = vmul.f32 %v1797, %v1802
        %v1806 = vlaneseq
        %v1807 = vshrl.u32 %v1806, 7
        %v1808 = vsub.s32 0, %v1807
        %v1809 = vrot.slane %v1783, %v1808
        %v1811 = vadd.f32 %v1804, %v1809
        %v1812 = vpack.c.bf16 %v1811, %v1811
        %v1813 = vld [vmem:[%s845] sm:$0xf]
        %v1814 = vld [vmem:[%s845 + $0x4] sm:$0xf]
        %v1815 = vld [vmem:[%s845 + $0x8] sm:$0xf]
        %v1816 = vld [vmem:[%s845 + $0xc] sm:$0xf]
        %v1817 = vld [vmem:[%s1034] sm:$0x1]
        %v1819 = vlaneseq
        %v1820 = vshrl.u32 %v1819, 7
        %v1821 = vsub.s32 0, %v1820
        %v1822 = vrot.slane %v1817, %v1821
        %v1828 = vunpack.c.l.b16 %v1813
        %v1829 = vunpack.c.l.b16 %v1814
        %v1830 = vunpack.c.l.b16 %v1815
        %v1831 = vunpack.c.l.b16 %v1816
        %v1832 = vpack.c.b16 %v1829, %v1828
        %v1833 = vpack.c.b16 %v1831, %v1830
        %v1837 = vsel %vm1117, %v1812, 0
        %1839 = vmatprep.subr.bf16.mxu0 0
        %1840 = vmatpush1.bf16.msra.mxu0 %v1832
        %1841 = vmatprep.subr.bf16.mxu0 0
        %1842 = vmatpush1.bf16.msra.mxu0 %v1833
        %1843 = vmatprep.subr.bf16.mxu0 0
        %1844 = vmatpush1.bf16.msra.mxu0 0
        %1845 = vmatprep.subr.bf16.mxu0 0
        %1846 = vmatpush1.bf16.msra.mxu0 0
        %1847 = vmatprep.subr.bf16.mxu0 0
        %1848 = vmatpush1.bf16.msra.mxu0 0
        %1849 = vmatprep.subr.bf16.mxu0 0
        %1850 = vmatpush1.bf16.msra.mxu0 0
        %1851 = vmatprep.subr.bf16.mxu0 0
        %1852 = vmatpush1.bf16.msra.mxu0 0
        %1853 = vmatprep.subr.bf16.mxu0 0
        %1854 = vmatpush1.bf16.msra.mxu0 0
        %1855 = vmatprep.subr.bf16.mxu0 0
        %1856 = vmatpush1.bf16.msra.mxu0 0
        %1857 = vmatprep.subr.bf16.mxu0 0
        %1858 = vmatpush1.bf16.msra.mxu0 0
        %1859 = vmatprep.subr.bf16.mxu0 0
        %1860 = vmatpush1.bf16.msra.mxu0 0
        %1861 = vmatprep.subr.bf16.mxu0 0
        %1862 = vmatpush1.bf16.msra.mxu0 0
        %1863 = vmatprep.subr.bf16.mxu0 0
        %1864 = vmatpush1.bf16.msra.mxu0 0
        %1865 = vmatprep.subr.bf16.mxu0 0
        %1866 = vmatpush1.bf16.msra.mxu0 0
        %1867 = vmatprep.subr.bf16.mxu0 0
        %1868 = vmatpush1.bf16.msra.mxu0 0
        %1869 = vmatprep.subr.bf16.mxu0 0
        %1870 = vmatpush1.bf16.msra.mxu0 0
        %1871 = vmatprep.mubr.bf16.mxu0 0
        %1872 = vmatmul.mubr.bf16.gmra.mrb[0].mxu0 %v1837
        %v1873 = vpop.f32.mrb[0].mxu0
        %v1874 = vadd.f32 %v1822, %v1873
        %v1875 = vpop.f32.mrb[0].mxu0
        %v1876 = vpop.f32.mrb[0].mxu0
        %v1877 = vpop.f32.mrb[0].mxu0
        %1878 = vdwg.mxu0
        %v1879 = vmul.f32 %v1874, %v1874
        %v1880 = vmul.f32 %v1874, %v1879
        %v1881 = vmul.f32 %v1880, 0.044715
        %v1882 = vadd.f32 %v1874, %v1881
        %v1883 = vmul.f32 %v1882, 0.7978846
        %v1884 = vtanh.pop %v1883
        %v1885 = vadd.f32 %v1884, 1.0
        %v1886 = vmul.f32 %v1885, 0.5
        %v1887 = vmul.f32 %v1874, %v1886
        %v1888 = vpack.c.bf16 %v1887, %v1887
        %v1889 = vld [vmem:[%s1039] sm:$0xf]
        %v1890 = vld [vmem:[%s1039 + $0x4] sm:$0xf]
        %v1891 = vld [vmem:[%s1039 + $0x8] sm:$0xf]
        %v1892 = vld [vmem:[%s1039 + $0xc] sm:$0xf]
        %v1893 = vld [vmem:[%s1039 + $0x10] sm:$0xf]
        %v1894 = vld [vmem:[%s1039 + $0x14] sm:$0xf]
        %v1895 = vld [vmem:[%s1039 + $0x18] sm:$0xf]
        %v1896 = vld [vmem:[%s1039 + $0x1c] sm:$0xf]
        %v1897 = vld [vmem:[%s1042] sm:$0x1]
        %v1899 = vlaneseq
        %v1900 = vshrl.u32 %v1899, 7
        %v1901 = vsub.s32 0, %v1900
        %v1902 = vrot.slane %v1897, %v1901
        %v1912 = vunpack.c.l.b16 %v1889
        %v1913 = vunpack.c.l.b16 %v1890
        %v1914 = vunpack.c.l.b16 %v1891
        %v1915 = vunpack.c.l.b16 %v1892
        %v1916 = vunpack.c.l.b16 %v1893
        %v1917 = vunpack.c.l.b16 %v1894
        %v1918 = vunpack.c.l.b16 %v1895
        %v1919 = vunpack.c.l.b16 %v1896
        %v1920 = vpack.c.b16 %v1913, %v1912
        %v1921 = vpack.c.b16 %v1915, %v1914
        %v1922 = vpack.c.b16 %v1917, %v1916
        %v1923 = vpack.c.b16 %v1919, %v1918
        %vm1928 = vcmask 523264
        %v1930 = vsel %vm1928, %v1888, 0
        %1932 = vmatprep.subr.bf16.mxu0 0
        %1933 = vmatpush1.bf16.msra.mxu0 %v1920
        %1934 = vmatprep.subr.bf16.mxu0 0
        %1935 = vmatpush1.bf16.msra.mxu0 %v1921
        %1936 = vmatprep.subr.bf16.mxu0 0
        %1937 = vmatpush1.bf16.msra.mxu0 %v1922
        %1938 = vmatprep.subr.bf16.mxu0 0
        %1939 = vmatpush1.bf16.msra.mxu0 %v1923
        %1940 = vmatprep.subr.bf16.mxu0 0
        %1941 = vmatpush1.bf16.msra.mxu0 0
        %1942 = vmatprep.subr.bf16.mxu0 0
        %1943 = vmatpush1.bf16.msra.mxu0 0
        %1944 = vmatprep.subr.bf16.mxu0 0
        %1945 = vmatpush1.bf16.msra.mxu0 0
        %1946 = vmatprep.subr.bf16.mxu0 0
        %1947 = vmatpush1.bf16.msra.mxu0 0
        %1948 = vmatprep.subr.bf16.mxu0 0
        %1949 = vmatpush1.bf16.msra.mxu0 0
        %1950 = vmatprep.subr.bf16.mxu0 0
        %1951 = vmatpush1.bf16.msra.mxu0 0
        %1952 = vmatprep.subr.bf16.mxu0 0
        %1953 = vmatpush1.bf16.msra.mxu0 0
        %1954 = vmatprep.subr.bf16.mxu0 0
        %1955 = vmatpush1.bf16.msra.mxu0 0
        %1956 = vmatprep.subr.bf16.mxu0 0
        %1957 = vmatpush1.bf16.msra.mxu0 0
        %1958 = vmatprep.subr.bf16.mxu0 0
        %1959 = vmatpush1.bf16.msra.mxu0 0
        %1960 = vmatprep.subr.bf16.mxu0 0
        %1961 = vmatpush1.bf16.msra.mxu0 0
        %1962 = vmatprep.subr.bf16.mxu0 0
        %1963 = vmatpush1.bf16.msra.mxu0 0
        %1964 = vmatprep.mubr.bf16.mxu0 0
        %1965 = vmatmul.mubr.bf16.gmra.mrb[0].mxu0 %v1930
        %v1966 = vpop.f32.mrb[0].mxu0
        %v1967 = vadd.f32 %v1902, %v1966
        %v1968 = vpop.f32.mrb[0].mxu0
        %v1969 = vpop.f32.mrb[0].mxu0
        %v1970 = vpop.f32.mrb[0].mxu0
        %1971 = vdwg.mxu0
        %v1972 = vadd.f32 %v1967, %v1811
        %v1973 = vld [vmem:[%s1045] sm:$0x1]
        %v1974 = vld [vmem:[%s1048] sm:$0x1]
        %v1975 = vsel %vm1117, %v1972, 0.0
        %1976 = vadd.xlane.f32.xlu0 %v1975
        %v1977 = vpop.xlane.xlu0 %1976
        %v1978 = vmul.f32 %v1977, %v1787
        %v1979 = vsub.f32 %v1972, %v1978
        %v1980 = vmul.f32 %v1979, %v1979
        %v1981 = vsel %vm1117, %v1980, 0.0
        %1982 = vadd.xlane.f32.xlu0 %v1981
        %v1983 = vpop.xlane.xlu0 %1982
        %v1984 = vmul.f32 %v1983, %v1787
        %v1985 = vadd.f32 %v1984, 1e-12
        %v1986 = vrsqrt.pop %v1985
        %v1987 = vmul.f32 %v1979, %v1986
        %v1989 = vlaneseq
        %v1990 = vshrl.u32 %v1989, 7
        %v1991 = vsub.s32 0, %v1990
        %v1992 = vrot.slane %v1973, %v1991
        %v1994 = vmul.f32 %v1987, %v1992
        %v1996 = vlaneseq
        %v1997 = vshrl.u32 %v1996, 7
        %v1998 = vsub.s32 0, %v1997
        %v1999 = vrot.slane %v1974, %v1998
        %v2001 = vadd.f32 %v1994, %v1999
        %2002 = vst.msk [vmem:[#allocation2] sm:$0xff] %vm1117, %v2001
        %p2003 = scmp.eq.s32.totalorder %s43, 1
        // Predicated region
        $region125: #{custom_conditional_bert_forward.2} parent=111 // pred_check
          %p2004 = pneg %p2003
        $region126: #{custom_conditional_bert_forward.2} parent=111 // pred_check_branch
          %2006 = sbr.rel (%p2004) target = $region128
        $region127: #{custom_conditional_bert_forward.2} parent=111 // pred_region
          %v2007 = vpack.c.bf16 %v2001, %v2001
          %v2008 = vld [vmem:[#allocation5] sm:$0xf]
          %v2009 = vld [vmem:[#allocation5 + $0x4] sm:$0xf]
          %v2010 = vld [vmem:[#allocation5 + $0x8] sm:$0xf]
          %v2011 = vld [vmem:[#allocation5 + $0xc] sm:$0xf]
          %v2012 = vld [vmem:[%s22] sm:$0x1]
          %v2014 = vlaneseq
          %v2015 = vshrl.u32 %v2014, 7
          %v2016 = vsub.s32 0, %v2015
          %v2017 = vrot.slane %v2012, %v2016
          %v2023 = vunpack.c.l.b16 %v2008
          %v2024 = vunpack.c.l.b16 %v2009
          %v2025 = vunpack.c.l.b16 %v2010
          %v2026 = vunpack.c.l.b16 %v2011
          %v2027 = vpack.c.b16 %v2024, %v2023
          %v2028 = vpack.c.b16 %v2026, %v2025
          %v2032 = vsel %vm1117, %v2007, 0
          %2034 = vmatprep.subr.bf16.mxu0 0
          %2035 = vmatpush1.bf16.msra.mxu0 %v2027
          %2036 = vmatprep.subr.bf16.mxu0 0
          %2037 = vmatpush1.bf16.msra.mxu0 %v2028
          %2038 = vmatprep.subr.bf16.mxu0 0
          %2039 = vmatpush1.bf16.msra.mxu0 0
          %2040 = vmatprep.subr.bf16.mxu0 0
          %2041 = vmatpush1.bf16.msra.mxu0 0
          %2042 = vmatprep.subr.bf16.mxu0 0
          %2043 = vmatpush1.bf16.msra.mxu0 0
          %2044 = vmatprep.subr.bf16.mxu0 0
          %2045 = vmatpush1.bf16.msra.mxu0 0
          %2046 = vmatprep.subr.bf16.mxu0 0
          %2047 = vmatpush1.bf16.msra.mxu0 0
          %2048 = vmatprep.subr.bf16.mxu0 0
          %2049 = vmatpush1.bf16.msra.mxu0 0
          %2050 = vmatprep.subr.bf16.mxu0 0
          %2051 = vmatpush1.bf16.msra.mxu0 0
          %2052 = vmatprep.subr.bf16.mxu0 0
          %2053 = vmatpush1.bf16.msra.mxu0 0
          %2054 = vmatprep.subr.bf16.mxu0 0
          %2055 = vmatpush1.bf16.msra.mxu0 0
          %2056 = vmatprep.subr.bf16.mxu0 0
          %2057 = vmatpush1.bf16.msra.mxu0 0
          %2058 = vmatprep.subr.bf16.mxu0 0
          %2059 = vmatpush1.bf16.msra.mxu0 0
          %2060 = vmatprep.subr.bf16.mxu0 0
          %2061 = vmatpush1.bf16.msra.mxu0 0
          %2062 = vmatprep.subr.bf16.mxu0 0
          %2063 = vmatpush1.bf16.msra.mxu0 0
          %2064 = vmatprep.subr.bf16.mxu0 0
          %2065 = vmatpush1.bf16.msra.mxu0 0
          %2066 = vmatprep.mubr.bf16.mxu0 0
          %2067 = vmatmul.mubr.bf16.gmra.mrb[0].mxu0 %v2032
          %v2068 = vpop.f32.mrb[0].mxu0
          %v2069 = vadd.f32 %v2017, %v2068
          %v2070 = vpop.f32.mrb[0].mxu0
          %v2071 = vpop.f32.mrb[0].mxu0
          %v2072 = vpop.f32.mrb[0].mxu0
          %2073 = vdwg.mxu0
          %2074 = vmax.xlane.f32.xlu0 %v2069
          %v2075 = vpop.xlane.xlu0 %2074
          %v2076 = vlaneseq
          %v2077 = vand.u32 %v2076, 127
          %vm2078 = vcmp.eq.f32.partialorder %v2069, %v2075
          %v2079 = vsel %vm2078, %v2077, 128
          %v2080 = vand.u32 %v2079, 65535
          %v2081 = vshra.s32 %v2079, 16
          %v2082 = vcvt.s32.f32 %v2080
          %v2083 = vcvt.s32.f32 %v2081
          %2084 = vmin.xlane.f32.xlu0 %v2083
          %v2085 = vpop.xlane.xlu0 %2084
          %vm2086 = vcmp.eq.f32.partialorder %v2083, %v2085
          %v2087 = vsel %vm2086, %v2082, inf
          %2088 = vmin.xlane.f32.xlu0 %v2087
          %v2089 = vpop.xlane.xlu0 %2088
          %v2090 = vcvt.f32.s32 %v2089
          %v2091 = vcvt.f32.s32 %v2085
          %v2092 = vshll.u32 %v2091, 16
          %v2093 = vadd.s32 %v2092, %v2090
          %v2094 = vld [vmem:[%s990] sm:$0xff]
          %vm2095 = vcmp.eq.s32.totalorder %v2094, 0
          %v2096 = vsel %vm2095, 0, %v2093
          %vm2097 = vcmp.ne.s32.totalorder %v2096, 0
          %v2098 = vsel %vm2097, 103, %v2094
          %vm2099 = vcmask 7168
          %2100 = vst.msk [vmem:[%s1052] sm:$0xff] %vm2099, %v2098
        $region128: #{custom_conditional_bert_forward.2} parent=111 // pred_fallthru
          _
        %p2101 = scmp.lt.s32.totalorder %s42, 1
        %s2102 = scalar_select %p2101, %s42, 1
        %s2103 = smul.addr %s2102, 8
        %s2104 = scalar_lea.vmem %s23, %s2103
        // Predicated region
        $region129: #{custom_conditional_bert_forward.2} parent=111 // pred_check
          %p2105 = pneg %p646
        $region130: #{custom_conditional_bert_forward.2} parent=111 // pred_check_branch
          %2107 = sbr.rel (%p2105) target = $region132
        $region131: #{custom_conditional_bert_forward.2} parent=111 // pred_region
          _
        $region132: #{custom_conditional_bert_forward.2} parent=111 // pred_fallthru
          _
      $region112: #{custom_conditional_bert_forward.2} parent=5 // pred_fallthru
        _
      %p2108 = scmp.le.s32.totalorder 2, %s33
      // Predicated region
      $region133: #{custom_conditional_bert_forward.2} parent=5 // pred_check
        %p2109 = pneg %p2108
      $region134: #{custom_conditional_bert_forward.2} parent=5 // pred_check_branch
        %2111 = sbr.rel (%p2109) target = $region136
      $region135: #{custom_conditional_bert_forward.2} parent=5 // pred_region
        %s2112 = ssub.s32 %s33, 2
        // Predicated region
        $region137: #{custom_conditional_bert_forward.2} parent=135 // pred_check
          %p2113 = pneg %p652
        $region138: #{custom_conditional_bert_forward.2} parent=135 // pred_check_branch
          %2115 = sbr.rel (%p2113) target = $region140
        $region139: #{custom_conditional_bert_forward.2} parent=135 // pred_region
          %p2116 = scmp.lt.s32.totalorder %s44, 1
          %s2117 = scalar_select %p2116, %s44, 1
          %s2118 = smul.addr %s2117, 8
          %s2119 = scalar_lea.vmem %s23, %s2118
        $region140: #{custom_conditional_bert_forward.2} parent=135 // pred_fallthru
          _
      $region136: #{custom_conditional_bert_forward.2} parent=5 // pred_fallthru
        _
    $region6: #{custom_conditional_bert_forward.2} parent=1 // loop_footer
      %s37 = sadd.s32 1, %s33
    $region7: #{custom_conditional_bert_forward.2} parent=1 // loop_footer_branch
      %32 = sbr.rel target = $region3
    $region8: #{custom_conditional_bert_forward.2} parent=1 // loop_exit
      _
    %2120 = vsyncpa [#allocation4], 1
    %s2121 = scalar_lea.sflag [#allocation4], 1
    %2122 = vsyncpa %s2121, 1
    %2123 = vsyncpa [#allocation6], 1

// kernel: custom_conditional_bert_forward.3
$region0: #{custom_conditional_bert_forward.3}
  #allocation0 [shape = 'u32[]', space=smem, size = 0x4, offset = 0x4, fixed_abs, tag = 'smem constant byte address 0x4 - core index']
  #allocation1 [shape = 'u32[144,128]{1,0:T(1,128)}', space=vmem, size = 0x12000, scoped, tag = 'internal scratch']
  #allocation2 [shape = 'f32[8,32]{1,0:T(8,128)}', space=vmem, size = 0x1000, scoped, tag = 'scratch operand']
  %s0 = inlined_call_operand.vmem [shape: f32[16,32], index: 0, kind: input, shape index: {}]
  %s1 = inlined_call_operand.vmem [shape: f32[2,1,8], index: 1, kind: input, shape index: {}]
  %s2 = inlined_call_operand.vmem [shape: f32[1,32], index: 2, kind: input, shape index: {}, may-alias: {2,22}]
  %s3 = inlined_call_operand.vmem [shape: f32[1,32], index: 3, kind: input, shape index: {}, may-alias: {3,21,23}]
  %s4 = inlined_call_operand.vmem [shape: bf16[2,2,32,16], index: 4, kind: input, shape index: {}]
  %s5 = inlined_call_operand.vmem [shape: bf16[2,2,32,16], index: 5, kind: input, shape index: {}]
  %s6 = inlined_call_operand.vmem [shape: bf16[2,2,32,16], index: 6, kind: input, shape index: {}]
  %s7 = inlined_call_operand.vmem [shape: f32[2,2,1,16], index: 7, kind: input, shape index: {}, may-alias: {7,8,9}]
  %s8 = inlined_call_operand.vmem [shape: f32[2,2,1,16], index: 8, kind: input, shape index: {}, may-alias: {7,8,9}]
  %s9 = inlined_call_operand.vmem [shape: f32[2,2,1,16], index: 9, kind: input, shape index: {}, may-alias: {7,8,9}]
  %s10 = inlined_call_operand.vmem [shape: bf16[2,32,32], index: 10, kind: input, shape index: {}]
  %s11 = inlined_call_operand.vmem [shape: f32[2,1,32], index: 11, kind: input, shape index: {}, may-alias: {11,13,17,19}]
  %s12 = inlined_call_operand.vmem [shape: f32[2,1,32], index: 12, kind: input, shape index: {}, may-alias: {12,18}]
  %s13 = inlined_call_operand.vmem [shape: f32[2,1,32], index: 13, kind: input, shape index: {}, may-alias: {11,13,17,19}]
  %s14 = inlined_call_operand.vmem [shape: bf16[2,32,64], index: 14, kind: input, shape index: {}]
  %s15 = inlined_call_operand.vmem [shape: f32[2,1,64], index: 15, kind: input, shape index: {}]
  %s16 = inlined_call_operand.vmem [shape: bf16[2,64,32], index: 16, kind: input, shape index: {}]
  %s17 = inlined_call_operand.vmem [shape: f32[2,1,32], index: 17, kind: input, shape index: {}, may-alias: {11,13,17,19}]
  %s18 = inlined_call_operand.vmem [shape: f32[2,1,32], index: 18, kind: input, shape index: {}, may-alias: {12,18}]
  %s19 = inlined_call_operand.vmem [shape: f32[2,1,32], index: 19, kind: input, shape index: {}, may-alias: {11,13,17,19}]
  %s20 = inlined_call_operand.vmem [shape: bf16[32,32], index: 20, kind: input, shape index: {}]
  %s21 = inlined_call_operand.vmem [shape: f32[1,32], index: 21, kind: input, shape index: {}, may-alias: {3,21,23}]
  %s22 = inlined_call_operand.vmem [shape: f32[1,32], index: 22, kind: input, shape index: {}, may-alias: {2,22}]
  %s23 = inlined_call_operand.vmem [shape: f32[1,32], index: 23, kind: input, shape index: {}, may-alias: {3,21,23}]
  %s24 = inlined_call_operand.vmem [shape: bf16[32,128], index: 24, kind: input, shape index: {}]
  %s25 = inlined_call_operand.vmem [shape: f32[1,128], index: 25, kind: input, shape index: {}]
  %s26 = inlined_call_operand.hbm [shape: f32[16,128], index: 26, kind: output, shape index: {}]
  %s27 = sld [smem:[#allocation0]]
  $region145: #{custom_conditional_bert_forward.3} parent=0
    _
  %s29 = ssub.s32 1, %s27
  %s30 = scalar_select 0, %s29, %s27
  $region1: #{custom_conditional_bert_forward.3} parent=0
    #allocation3 [shape = 'u8[8192]{0}', space=vmem, size = 0x2000, scoped, tag = 'output window, operand 0']
    #allocation4 [shape = 's32[2]{0}', space=sflag, size = 0x8, scoped, tag = 'scoped memory for custom_conditional_bert_forward.3']
    %31 = vsyncpa [#allocation4], 0
    %s32 = scalar_lea.sflag [#allocation4], 1
    %33 = vsyncpa %s32, 0
    loop: start=0, step=1, limit=6
    $region2: #{custom_conditional_bert_forward.3} parent=1 // loop_pre_header
      _
    $region3: #{custom_conditional_bert_forward.3} parent=1 // loop_header
      %s35 = sphi 0, %s39
      %p36 = scmp.ge.s32.totalorder %s35, 6
      %s42 = sphi 0, %s54
      %s43 = sphi 0, %s50
      %s44 = sphi 0, %s42
      %s45 = sphi 0, %s43
      %s46 = sphi 0, %s44
      %s47 = sphi 0, %s45
      %s57 = sphi 0, %s59
      %s60 = sphi 0, %s57
      %s61 = sphi 0, %s60
      %s77 = sphi 0, %s61
      %s83 = sphi 0, %s85
      %s86 = sphi 0, %s83
      %s87 = sphi 0, %s86
      %s103 = sphi 0, %s87
      %s107 = sphi 0, %s107
      %s109 = sphi 0, %s107
      %s110 = sphi 0, %s109
      %s124 = sphi 0, %s110
      %s128 = sphi 0, %s128
      %s130 = sphi 0, %s128
      %s131 = sphi 0, %s130
      %s145 = sphi 0, %s131
      %s151 = sphi 0, %s153
      %s154 = sphi 0, %s151
      %s155 = sphi 0, %s154
      %s171 = sphi 0, %s155
      %s177 = sphi 0, %s179
      %s180 = sphi 0, %s177
      %s181 = sphi 0, %s180
      %s197 = sphi 0, %s181
      %s203 = sphi 0, %s205
      %s206 = sphi 0, %s203
      %s207 = sphi 0, %s206
      %s223 = sphi 0, %s207
      %s229 = sphi 0, %s231
      %s232 = sphi 0, %s229
      %s233 = sphi 0, %s232
      %s249 = sphi 0, %s233
      %s255 = sphi 0, %s257
      %s258 = sphi 0, %s255
      %s259 = sphi 0, %s258
      %s275 = sphi 0, %s259
      %s281 = sphi 0, %s283
      %s284 = sphi 0, %s281
      %s285 = sphi 0, %s284
      %s301 = sphi 0, %s285
      %s307 = sphi 0, %s309
      %s310 = sphi 0, %s307
      %s311 = sphi 0, %s310
      %s327 = sphi 0, %s311
      %s333 = sphi 0, %s335
      %s336 = sphi 0, %s333
      %s337 = sphi 0, %s336
      %s353 = sphi 0, %s337
      %s359 = sphi 0, %s361
      %s362 = sphi 0, %s359
      %s363 = sphi 0, %s362
      %s379 = sphi 0, %s363
      %s385 = sphi 0, %s387
      %s388 = sphi 0, %s385
      %s389 = sphi 0, %s388
      %s405 = sphi 0, %s389
      %s411 = sphi 0, %s413
      %s414 = sphi 0, %s411
      %s415 = sphi 0, %s414
      %s431 = sphi 0, %s415
      %s437 = sphi 0, %s439
      %s440 = sphi 0, %s437
      %s441 = sphi 0, %s440
      %s457 = sphi 0, %s441
      %s463 = sphi 0, %s465
      %s466 = sphi 0, %s463
      %s467 = sphi 0, %s466
      %s483 = sphi 0, %s467
      %s489 = sphi 0, %s491
      %s492 = sphi 0, %s489
      %s493 = sphi 0, %s492
      %s509 = sphi 0, %s493
      %s515 = sphi 0, %s517
      %s518 = sphi 0, %s515
      %s519 = sphi 0, %s518
      %s535 = sphi 0, %s519
      %s541 = sphi 0, %s543
      %s544 = sphi 0, %s541
      %s545 = sphi 0, %s544
      %s561 = sphi 0, %s545
      %s565 = sphi 0, %s565
      %s567 = sphi 0, %s565
      %s568 = sphi 0, %s567
      %s582 = sphi 0, %s568
      %s586 = sphi 0, %s586
      %s588 = sphi 0, %s586
      %s589 = sphi 0, %s588
      %s603 = sphi 0, %s589
      %s607 = sphi 0, %s607
      %s609 = sphi 0, %s607
      %s610 = sphi 0, %s609
      %s624 = sphi 0, %s610
      %s628 = sphi 0, %s628
      %s630 = sphi 0, %s628
      %s631 = sphi 0, %s630
      %s645 = sphi 0, %s631
      %s649 = sphi 0, %s649
      %s651 = sphi 0, %s649
      %s652 = sphi 0, %s651
      %s666 = sphi 0, %s652
      %s670 = sphi 0, %s670
      %s672 = sphi 0, %s670
      %s673 = sphi 0, %s672
      %s687 = sphi 0, %s673
      %s693 = sphi 0, %s695
      %s696 = sphi 0, %s693
      %s697 = sphi 0, %s696
      %s713 = sphi 0, %s697
    $region4: #{custom_conditional_bert_forward.3} parent=1 // loop_header_branch
      %38 = sbr.rel (%p36) target = $region8
    $region5: #{custom_conditional_bert_forward.3} parent=1 // loop_body
      %s40 = ssub.s32 %s35, 1
      %s41 = ssub.s32 %s35, 2
      %s48 = sadd.s32 1, %s43
      %p49 = scmp.ge.s32.totalorder %s48, 2
      %s50 = scalar_select %p49, 0, %s48
      %s51 = sadd.s32 1, %s42
      %s52 = scalar_select %p49, %s51, %s42
      %p53 = scmp.ge.s32.totalorder %s52, 2
      %s54 = scalar_select %p53, 0, %s52
      %s55 = ssub.s32 %s42, %s54
      %p56 = scmp.eq.s32.totalorder %s55, 0
      %s58 = sadd.s32 %s57, 1
      %s59 = scalar_select %p56, %s57, %s58
      %p62 = pneg %p56
      %p63 = scmp.eq.s32.totalorder %s35, 3
      %p64 = por %p62, %p63
      %p65 = scmp.ne.s32.totalorder %s57, %s60
      %p66 = scmp.eq.s32.totalorder %s35, 0
      %p67 = por %p65, %p66
      %p68 = scmp.ne.s32.totalorder %s57, %s60
      %p69 = scmp.eq.s32.totalorder %s40, 3
      %p70 = por %p68, %p69
      %p71 = scmp.ne.s32.totalorder %s60, %s61
      %p72 = scmp.eq.s32.totalorder %s40, 0
      %p73 = por %p71, %p72
      %p74 = scmp.ne.s32.totalorder %s60, %s61
      %p75 = scmp.eq.s32.totalorder %s41, 3
      %p76 = por %p74, %p75
      %p78 = scmp.ne.s32.totalorder %s61, %s77
      %p79 = scmp.eq.s32.totalorder %s41, 0
      %p80 = por %p78, %p79
      %s81 = ssub.s32 %s42, %s54
      %p82 = scmp.eq.s32.totalorder %s81, 0
      %s84 = sadd.s32 %s83, 1
      %s85 = scalar_select %p82, %s83, %s84
      %p88 = pneg %p82
      %p89 = scmp.eq.s32.totalorder %s35, 3
      %p90 = por %p88, %p89
      %p91 = scmp.ne.s32.totalorder %s83, %s86
      %p92 = scmp.eq.s32.totalorder %s35, 0
      %p93 = por %p91, %p92
      %p94 = scmp.ne.s32.totalorder %s83, %s86
      %p95 = scmp.eq.s32.totalorder %s40, 3
      %p96 = por %p94, %p95
      %p97 = scmp.ne.s32.totalorder %s86, %s87
      %p98 = scmp.eq.s32.totalorder %s40, 0
      %p99 = por %p97, %p98
      %p100 = scmp.ne.s32.totalorder %s86, %s87
      %p101 = scmp.eq.s32.totalorder %s41, 3
      %p102 = por %p100, %p101
      %p104 = scmp.ne.s32.totalorder %s87, %s103
      %p105 = scmp.eq.s32.totalorder %s41, 0
      %p106 = por %p104, %p105
      %s108 = sadd.s32 %s107, 1
      %p111 = scmp.eq.s32.totalorder %s35, 3
      %p112 = scmp.ne.s32.totalorder %s107, %s109
      %p113 = scmp.eq.s32.totalorder %s35, 0
      %p114 = por %p112, %p113
      %p115 = scmp.ne.s32.totalorder %s107, %s109
      %p116 = scmp.eq.s32.totalorder %s40, 3
      %p117 = por %p115, %p116
      %p118 = scmp.ne.s32.totalorder %s109, %s110
      %p119 = scmp.eq.s32.totalorder %s40, 0
      %p120 = por %p118, %p119
      %p121 = scmp.ne.s32.totalorder %s109, %s110
      %p122 = scmp.eq.s32.totalorder %s41, 3
      %p123 = por %p121, %p122
      %p125 = scmp.ne.s32.totalorder %s110, %s124
      %p126 = scmp.eq.s32.totalorder %s41, 0
      %p127 = por %p125, %p126
      %s129 = sadd.s32 %s128, 1
      %p132 = scmp.eq.s32.totalorder %s35, 3
      %p133 = scmp.ne.s32.totalorder %s128, %s130
      %p134 = scmp.eq.s32.totalorder %s35, 0
      %p135 = por %p133, %p134
      %p136 = scmp.ne.s32.totalorder %s128, %s130
      %p137 = scmp.eq.s32.totalorder %s40, 3
      %p138 = por %p136, %p137
      %p139 = scmp.ne.s32.totalorder %s130, %s131
      %p140 = scmp.eq.s32.totalorder %s40, 0
      %p141 = por %p139, %p140
      %p142 = scmp.ne.s32.totalorder %s130, %s131
      %p143 = scmp.eq.s32.totalorder %s41, 3
      %p144 = por %p142, %p143
      %p146 = scmp.ne.s32.totalorder %s131, %s145
      %p147 = scmp.eq.s32.totalorder %s41, 0
      %p148 = por %p146, %p147
      %s149 = ssub.s32 %s43, %s50
      %p150 = scmp.eq.s32.totalorder %s149, 0
      %s152 = sadd.s32 %s151, 1
      %s153 = scalar_select %p150, %s151, %s152
      %p156 = pneg %p150
      %p157 = scmp.eq.s32.totalorder %s35, 3
      %p158 = por %p156, %p157
      %p159 = scmp.ne.s32.totalorder %s151, %s154
      %p160 = scmp.eq.s32.totalorder %s35, 0
      %p161 = por %p159, %p160
      %p162 = scmp.ne.s32.totalorder %s151, %s154
      %p163 = scmp.eq.s32.totalorder %s40, 3
      %p164 = por %p162, %p163
      %p165 = scmp.ne.s32.totalorder %s154, %s155
      %p166 = scmp.eq.s32.totalorder %s40, 0
      %p167 = por %p165, %p166
      %p168 = scmp.ne.s32.totalorder %s154, %s155
      %p169 = scmp.eq.s32.totalorder %s41, 3
      %p170 = por %p168, %p169
      %p172 = scmp.ne.s32.totalorder %s155, %s171
      %p173 = scmp.eq.s32.totalorder %s41, 0
      %p174 = por %p172, %p173
      %s175 = ssub.s32 %s43, %s50
      %p176 = scmp.eq.s32.totalorder %s175, 0
      %s178 = sadd.s32 %s177, 1
      %s179 = scalar_select %p176, %s177, %s178
      %p182 = pneg %p176
      %p183 = scmp.eq.s32.totalorder %s35, 3
      %p184 = por %p182, %p183
      %p185 = scmp.ne.s32.totalorder %s177, %s180
      %p186 = scmp.eq.s32.totalorder %s35, 0
      %p187 = por %p185, %p186
      %p188 = scmp.ne.s32.totalorder %s177, %s180
      %p189 = scmp.eq.s32.totalorder %s40, 3
      %p190 = por %p188, %p189
      %p191 = scmp.ne.s32.totalorder %s180, %s181
      %p192 = scmp.eq.s32.totalorder %s40, 0
      %p193 = por %p191, %p192
      %p194 = scmp.ne.s32.totalorder %s180, %s181
      %p195 = scmp.eq.s32.totalorder %s41, 3
      %p196 = por %p194, %p195
      %p198 = scmp.ne.s32.totalorder %s181, %s197
      %p199 = scmp.eq.s32.totalorder %s41, 0
      %p200 = por %p198, %p199
      %s201 = ssub.s32 %s43, %s50
      %p202 = scmp.eq.s32.totalorder %s201, 0
      %s204 = sadd.s32 %s203, 1
      %s205 = scalar_select %p202, %s203, %s204
      %p208 = pneg %p202
      %p209 = scmp.eq.s32.totalorder %s35, 3
      %p210 = por %p208, %p209
      %p211 = scmp.ne.s32.totalorder %s203, %s206
      %p212 = scmp.eq.s32.totalorder %s35, 0
      %p213 = por %p211, %p212
      %p214 = scmp.ne.s32.totalorder %s203, %s206
      %p215 = scmp.eq.s32.totalorder %s40, 3
      %p216 = por %p214, %p215
      %p217 = scmp.ne.s32.totalorder %s206, %s207
      %p218 = scmp.eq.s32.totalorder %s40, 0
      %p219 = por %p217, %p218
      %p220 = scmp.ne.s32.totalorder %s206, %s207
      %p221 = scmp.eq.s32.totalorder %s41, 3
      %p222 = por %p220, %p221
      %p224 = scmp.ne.s32.totalorder %s207, %s223
      %p225 = scmp.eq.s32.totalorder %s41, 0
      %p226 = por %p224, %p225
      %s227 = ssub.s32 %s43, %s50
      %p228 = scmp.eq.s32.totalorder %s227, 0
      %s230 = sadd.s32 %s229, 1
      %s231 = scalar_select %p228, %s229, %s230
      %p234 = pneg %p228
      %p235 = scmp.eq.s32.totalorder %s35, 3
      %p236 = por %p234, %p235
      %p237 = scmp.ne.s32.totalorder %s229, %s232
      %p238 = scmp.eq.s32.totalorder %s35, 0
      %p239 = por %p237, %p238
      %p240 = scmp.ne.s32.totalorder %s229, %s232
      %p241 = scmp.eq.s32.totalorder %s40, 3
      %p242 = por %p240, %p241
      %p243 = scmp.ne.s32.totalorder %s232, %s233
      %p244 = scmp.eq.s32.totalorder %s40, 0
      %p245 = por %p243, %p244
      %p246 = scmp.ne.s32.totalorder %s232, %s233
      %p247 = scmp.eq.s32.totalorder %s41, 3
      %p248 = por %p246, %p247
      %p250 = scmp.ne.s32.totalorder %s233, %s249
      %p251 = scmp.eq.s32.totalorder %s41, 0
      %p252 = por %p250, %p251
      %s253 = ssub.s32 %s43, %s50
      %p254 = scmp.eq.s32.totalorder %s253, 0
      %s256 = sadd.s32 %s255, 1
      %s257 = scalar_select %p254, %s255, %s256
      %p260 = pneg %p254
      %p261 = scmp.eq.s32.totalorder %s35, 3
      %p262 = por %p260, %p261
      %p263 = scmp.ne.s32.totalorder %s255, %s258
      %p264 = scmp.eq.s32.totalorder %s35, 0
      %p265 = por %p263, %p264
      %p266 = scmp.ne.s32.totalorder %s255, %s258
      %p267 = scmp.eq.s32.totalorder %s40, 3
      %p268 = por %p266, %p267
      %p269 = scmp.ne.s32.totalorder %s258, %s259
      %p270 = scmp.eq.s32.totalorder %s40, 0
      %p271 = por %p269, %p270
      %p272 = scmp.ne.s32.totalorder %s258, %s259
      %p273 = scmp.eq.s32.totalorder %s41, 3
      %p274 = por %p272, %p273
      %p276 = scmp.ne.s32.totalorder %s259, %s275
      %p277 = scmp.eq.s32.totalorder %s41, 0
      %p278 = por %p276, %p277
      %s279 = ssub.s32 %s43, %s50
      %p280 = scmp.eq.s32.totalorder %s279, 0
      %s282 = sadd.s32 %s281, 1
      %s283 = scalar_select %p280, %s281, %s282
      %p286 = pneg %p280
      %p287 = scmp.eq.s32.totalorder %s35, 3
      %p288 = por %p286, %p287
      %p289 = scmp.ne.s32.totalorder %s281, %s284
      %p290 = scmp.eq.s32.totalorder %s35, 0
      %p291 = por %p289, %p290
      %p292 = scmp.ne.s32.totalorder %s281, %s284
      %p293 = scmp.eq.s32.totalorder %s40, 3
      %p294 = por %p292, %p293
      %p295 = scmp.ne.s32.totalorder %s284, %s285
      %p296 = scmp.eq.s32.totalorder %s40, 0
      %p297 = por %p295, %p296
      %p298 = scmp.ne.s32.totalorder %s284, %s285
      %p299 = scmp.eq.s32.totalorder %s41, 3
      %p300 = por %p298, %p299
      %p302 = scmp.ne.s32.totalorder %s285, %s301
      %p303 = scmp.eq.s32.totalorder %s41, 0
      %p304 = por %p302, %p303
      %s305 = ssub.s32 %s43, %s50
      %p306 = scmp.eq.s32.totalorder %s305, 0
      %s308 = sadd.s32 %s307, 1
      %s309 = scalar_select %p306, %s307, %s308
      %p312 = pneg %p306
      %p313 = scmp.eq.s32.totalorder %s35, 3
      %p314 = por %p312, %p313
      %p315 = scmp.ne.s32.totalorder %s307, %s310
      %p316 = scmp.eq.s32.totalorder %s35, 0
      %p317 = por %p315, %p316
      %p318 = scmp.ne.s32.totalorder %s307, %s310
      %p319 = scmp.eq.s32.totalorder %s40, 3
      %p320 = por %p318, %p319
      %p321 = scmp.ne.s32.totalorder %s310, %s311
      %p322 = scmp.eq.s32.totalorder %s40, 0
      %p323 = por %p321, %p322
      %p324 = scmp.ne.s32.totalorder %s310, %s311
      %p325 = scmp.eq.s32.totalorder %s41, 3
      %p326 = por %p324, %p325
      %p328 = scmp.ne.s32.totalorder %s311, %s327
      %p329 = scmp.eq.s32.totalorder %s41, 0
      %p330 = por %p328, %p329
      %s331 = ssub.s32 %s43, %s50
      %p332 = scmp.eq.s32.totalorder %s331, 0
      %s334 = sadd.s32 %s333, 1
      %s335 = scalar_select %p332, %s333, %s334
      %p338 = pneg %p332
      %p339 = scmp.eq.s32.totalorder %s35, 3
      %p340 = por %p338, %p339
      %p341 = scmp.ne.s32.totalorder %s333, %s336
      %p342 = scmp.eq.s32.totalorder %s35, 0
      %p343 = por %p341, %p342
      %p344 = scmp.ne.s32.totalorder %s333, %s336
      %p345 = scmp.eq.s32.totalorder %s40, 3
      %p346 = por %p344, %p345
      %p347 = scmp.ne.s32.totalorder %s336, %s337
      %p348 = scmp.eq.s32.totalorder %s40, 0
      %p349 = por %p347, %p348
      %p350 = scmp.ne.s32.totalorder %s336, %s337
      %p351 = scmp.eq.s32.totalorder %s41, 3
      %p352 = por %p350, %p351
      %p354 = scmp.ne.s32.totalorder %s337, %s353
      %p355 = scmp.eq.s32.totalorder %s41, 0
      %p356 = por %p354, %p355
      %s357 = ssub.s32 %s43, %s50
      %p358 = scmp.eq.s32.totalorder %s357, 0
      %s360 = sadd.s32 %s359, 1
      %s361 = scalar_select %p358, %s359, %s360
      %p364 = pneg %p358
      %p365 = scmp.eq.s32.totalorder %s35, 3
      %p366 = por %p364, %p365
      %p367 = scmp.ne.s32.totalorder %s359, %s362
      %p368 = scmp.eq.s32.totalorder %s35, 0
      %p369 = por %p367, %p368
      %p370 = scmp.ne.s32.totalorder %s359, %s362
      %p371 = scmp.eq.s32.totalorder %s40, 3
      %p372 = por %p370, %p371
      %p373 = scmp.ne.s32.totalorder %s362, %s363
      %p374 = scmp.eq.s32.totalorder %s40, 0
      %p375 = por %p373, %p374
      %p376 = scmp.ne.s32.totalorder %s362, %s363
      %p377 = scmp.eq.s32.totalorder %s41, 3
      %p378 = por %p376, %p377
      %p380 = scmp.ne.s32.totalorder %s363, %s379
      %p381 = scmp.eq.s32.totalorder %s41, 0
      %p382 = por %p380, %p381
      %s383 = ssub.s32 %s43, %s50
      %p384 = scmp.eq.s32.totalorder %s383, 0
      %s386 = sadd.s32 %s385, 1
      %s387 = scalar_select %p384, %s385, %s386
      %p390 = pneg %p384
      %p391 = scmp.eq.s32.totalorder %s35, 3
      %p392 = por %p390, %p391
      %p393 = scmp.ne.s32.totalorder %s385, %s388
      %p394 = scmp.eq.s32.totalorder %s35, 0
      %p395 = por %p393, %p394
      %p396 = scmp.ne.s32.totalorder %s385, %s388
      %p397 = scmp.eq.s32.totalorder %s40, 3
      %p398 = por %p396, %p397
      %p399 = scmp.ne.s32.totalorder %s388, %s389
      %p400 = scmp.eq.s32.totalorder %s40, 0
      %p401 = por %p399, %p400
      %p402 = scmp.ne.s32.totalorder %s388, %s389
      %p403 = scmp.eq.s32.totalorder %s41, 3
      %p404 = por %p402, %p403
      %p406 = scmp.ne.s32.totalorder %s389, %s405
      %p407 = scmp.eq.s32.totalorder %s41, 0
      %p408 = por %p406, %p407
      %s409 = ssub.s32 %s43, %s50
      %p410 = scmp.eq.s32.totalorder %s409, 0
      %s412 = sadd.s32 %s411, 1
      %s413 = scalar_select %p410, %s411, %s412
      %p416 = pneg %p410
      %p417 = scmp.eq.s32.totalorder %s35, 3
      %p418 = por %p416, %p417
      %p419 = scmp.ne.s32.totalorder %s411, %s414
      %p420 = scmp.eq.s32.totalorder %s35, 0
      %p421 = por %p419, %p420
      %p422 = scmp.ne.s32.totalorder %s411, %s414
      %p423 = scmp.eq.s32.totalorder %s40, 3
      %p424 = por %p422, %p423
      %p425 = scmp.ne.s32.totalorder %s414, %s415
      %p426 = scmp.eq.s32.totalorder %s40, 0
      %p427 = por %p425, %p426
      %p428 = scmp.ne.s32.totalorder %s414, %s415
      %p429 = scmp.eq.s32.totalorder %s41, 3
      %p430 = por %p428, %p429
      %p432 = scmp.ne.s32.totalorder %s415, %s431
      %p433 = scmp.eq.s32.totalorder %s41, 0
      %p434 = por %p432, %p433
      %s435 = ssub.s32 %s43, %s50
      %p436 = scmp.eq.s32.totalorder %s435, 0
      %s438 = sadd.s32 %s437, 1
      %s439 = scalar_select %p436, %s437, %s438
      %p442 = pneg %p436
      %p443 = scmp.eq.s32.totalorder %s35, 3
      %p444 = por %p442, %p443
      %p445 = scmp.ne.s32.totalorder %s437, %s440
      %p446 = scmp.eq.s32.totalorder %s35, 0
      %p447 = por %p445, %p446
      %p448 = scmp.ne.s32.totalorder %s437, %s440
      %p449 = scmp.eq.s32.totalorder %s40, 3
      %p450 = por %p448, %p449
      %p451 = scmp.ne.s32.totalorder %s440, %s441
      %p452 = scmp.eq.s32.totalorder %s40, 0
      %p453 = por %p451, %p452
      %p454 = scmp.ne.s32.totalorder %s440, %s441
      %p455 = scmp.eq.s32.totalorder %s41, 3
      %p456 = por %p454, %p455
      %p458 = scmp.ne.s32.totalorder %s441, %s457
      %p459 = scmp.eq.s32.totalorder %s41, 0
      %p460 = por %p458, %p459
      %s461 = ssub.s32 %s43, %s50
      %p462 = scmp.eq.s32.totalorder %s461, 0
      %s464 = sadd.s32 %s463, 1
      %s465 = scalar_select %p462, %s463, %s464
      %p468 = pneg %p462
      %p469 = scmp.eq.s32.totalorder %s35, 3
      %p470 = por %p468, %p469
      %p471 = scmp.ne.s32.totalorder %s463, %s466
      %p472 = scmp.eq.s32.totalorder %s35, 0
      %p473 = por %p471, %p472
      %p474 = scmp.ne.s32.totalorder %s463, %s466
      %p475 = scmp.eq.s32.totalorder %s40, 3
      %p476 = por %p474, %p475
      %p477 = scmp.ne.s32.totalorder %s466, %s467
      %p478 = scmp.eq.s32.totalorder %s40, 0
      %p479 = por %p477, %p478
      %p480 = scmp.ne.s32.totalorder %s466, %s467
      %p481 = scmp.eq.s32.totalorder %s41, 3
      %p482 = por %p480, %p481
      %p484 = scmp.ne.s32.totalorder %s467, %s483
      %p485 = scmp.eq.s32.totalorder %s41, 0
      %p486 = por %p484, %p485
      %s487 = ssub.s32 %s43, %s50
      %p488 = scmp.eq.s32.totalorder %s487, 0
      %s490 = sadd.s32 %s489, 1
      %s491 = scalar_select %p488, %s489, %s490
      %p494 = pneg %p488
      %p495 = scmp.eq.s32.totalorder %s35, 3
      %p496 = por %p494, %p495
      %p497 = scmp.ne.s32.totalorder %s489, %s492
      %p498 = scmp.eq.s32.totalorder %s35, 0
      %p499 = por %p497, %p498
      %p500 = scmp.ne.s32.totalorder %s489, %s492
      %p501 = scmp.eq.s32.totalorder %s40, 3
      %p502 = por %p500, %p501
      %p503 = scmp.ne.s32.totalorder %s492, %s493
      %p504 = scmp.eq.s32.totalorder %s40, 0
      %p505 = por %p503, %p504
      %p506 = scmp.ne.s32.totalorder %s492, %s493
      %p507 = scmp.eq.s32.totalorder %s41, 3
      %p508 = por %p506, %p507
      %p510 = scmp.ne.s32.totalorder %s493, %s509
      %p511 = scmp.eq.s32.totalorder %s41, 0
      %p512 = por %p510, %p511
      %s513 = ssub.s32 %s43, %s50
      %p514 = scmp.eq.s32.totalorder %s513, 0
      %s516 = sadd.s32 %s515, 1
      %s517 = scalar_select %p514, %s515, %s516
      %p520 = pneg %p514
      %p521 = scmp.eq.s32.totalorder %s35, 3
      %p522 = por %p520, %p521
      %p523 = scmp.ne.s32.totalorder %s515, %s518
      %p524 = scmp.eq.s32.totalorder %s35, 0
      %p525 = por %p523, %p524
      %p526 = scmp.ne.s32.totalorder %s515, %s518
      %p527 = scmp.eq.s32.totalorder %s40, 3
      %p528 = por %p526, %p527
      %p529 = scmp.ne.s32.totalorder %s518, %s519
      %p530 = scmp.eq.s32.totalorder %s40, 0
      %p531 = por %p529, %p530
      %p532 = scmp.ne.s32.totalorder %s518, %s519
      %p533 = scmp.eq.s32.totalorder %s41, 3
      %p534 = por %p532, %p533
      %p536 = scmp.ne.s32.totalorder %s519, %s535
      %p537 = scmp.eq.s32.totalorder %s41, 0
      %p538 = por %p536, %p537
      %s539 = ssub.s32 %s43, %s50
      %p540 = scmp.eq.s32.totalorder %s539, 0
      %s542 = sadd.s32 %s541, 1
      %s543 = scalar_select %p540, %s541, %s542
      %p546 = pneg %p540
      %p547 = scmp.eq.s32.totalorder %s35, 3
      %p548 = por %p546, %p547
      %p549 = scmp.ne.s32.totalorder %s541, %s544
      %p550 = scmp.eq.s32.totalorder %s35, 0
      %p551 = por %p549, %p550
      %p552 = scmp.ne.s32.totalorder %s541, %s544
      %p553 = scmp.eq.s32.totalorder %s40, 3
      %p554 = por %p552, %p553
      %p555 = scmp.ne.s32.totalorder %s544, %s545
      %p556 = scmp.eq.s32.totalorder %s40, 0
      %p557 = por %p555, %p556
      %p558 = scmp.ne.s32.totalorder %s544, %s545
      %p559 = scmp.eq.s32.totalorder %s41, 3
      %p560 = por %p558, %p559
      %p562 = scmp.ne.s32.totalorder %s545, %s561
      %p563 = scmp.eq.s32.totalorder %s41, 0
      %p564 = por %p562, %p563
      %s566 = sadd.s32 %s565, 1
      %p569 = scmp.eq.s32.totalorder %s35, 3
      %p570 = scmp.ne.s32.totalorder %s565, %s567
      %p571 = scmp.eq.s32.totalorder %s35, 0
      %p572 = por %p570, %p571
      %p573 = scmp.ne.s32.totalorder %s565, %s567
      %p574 = scmp.eq.s32.totalorder %s40, 3
      %p575 = por %p573, %p574
      %p576 = scmp.ne.s32.totalorder %s567, %s568
      %p577 = scmp.eq.s32.totalorder %s40, 0
      %p578 = por %p576, %p577
      %p579 = scmp.ne.s32.totalorder %s567, %s568
      %p580 = scmp.eq.s32.totalorder %s41, 3
      %p581 = por %p579, %p580
      %p583 = scmp.ne.s32.totalorder %s568, %s582
      %p584 = scmp.eq.s32.totalorder %s41, 0
      %p585 = por %p583, %p584
      %s587 = sadd.s32 %s586, 1
      %p590 = scmp.eq.s32.totalorder %s35, 3
      %p591 = scmp.ne.s32.totalorder %s586, %s588
      %p592 = scmp.eq.s32.totalorder %s35, 0
      %p593 = por %p591, %p592
      %p594 = scmp.ne.s32.totalorder %s586, %s588
      %p595 = scmp.eq.s32.totalorder %s40, 3
      %p596 = por %p594, %p595
      %p597 = scmp.ne.s32.totalorder %s588, %s589
      %p598 = scmp.eq.s32.totalorder %s40, 0
      %p599 = por %p597, %p598
      %p600 = scmp.ne.s32.totalorder %s588, %s589
      %p601 = scmp.eq.s32.totalorder %s41, 3
      %p602 = por %p600, %p601
      %p604 = scmp.ne.s32.totalorder %s589, %s603
      %p605 = scmp.eq.s32.totalorder %s41, 0
      %p606 = por %p604, %p605
      %s608 = sadd.s32 %s607, 1
      %p611 = scmp.eq.s32.totalorder %s35, 3
      %p612 = scmp.ne.s32.totalorder %s607, %s609
      %p613 = scmp.eq.s32.totalorder %s35, 0
      %p614 = por %p612, %p613
      %p615 = scmp.ne.s32.totalorder %s607, %s609
      %p616 = scmp.eq.s32.totalorder %s40, 3
      %p617 = por %p615, %p616
      %p618 = scmp.ne.s32.totalorder %s609, %s610
      %p619 = scmp.eq.s32.totalorder %s40, 0
      %p620 = por %p618, %p619
      %p621 = scmp.ne.s32.totalorder %s609, %s610
      %p622 = scmp.eq.s32.totalorder %s41, 3
      %p623 = por %p621, %p622
      %p625 = scmp.ne.s32.totalorder %s610, %s624
      %p626 = scmp.eq.s32.totalorder %s41, 0
      %p627 = por %p625, %p626
      %s629 = sadd.s32 %s628, 1
      %p632 = scmp.eq.s32.totalorder %s35, 3
      %p633 = scmp.ne.s32.totalorder %s628, %s630
      %p634 = scmp.eq.s32.totalorder %s35, 0
      %p635 = por %p633, %p634
      %p636 = scmp.ne.s32.totalorder %s628, %s630
      %p637 = scmp.eq.s32.totalorder %s40, 3
      %p638 = por %p636, %p637
      %p639 = scmp.ne.s32.totalorder %s630, %s631
      %p640 = scmp.eq.s32.totalorder %s40, 0
      %p641 = por %p639, %p640
      %p642 = scmp.ne.s32.totalorder %s630, %s631
      %p643 = scmp.eq.s32.totalorder %s41, 3
      %p644 = por %p642, %p643
      %p646 = scmp.ne.s32.totalorder %s631, %s645
      %p647 = scmp.eq.s32.totalorder %s41, 0
      %p648 = por %p646, %p647
      %s650 = sadd.s32 %s649, 1
      %p653 = scmp.eq.s32.totalorder %s35, 3
      %p654 = scmp.ne.s32.totalorder %s649, %s651
      %p655 = scmp.eq.s32.totalorder %s35, 0
      %p656 = por %p654, %p655
      %p657 = scmp.ne.s32.totalorder %s649, %s651
      %p658 = scmp.eq.s32.totalorder %s40, 3
      %p659 = por %p657, %p658
      %p660 = scmp.ne.s32.totalorder %s651, %s652
      %p661 = scmp.eq.s32.totalorder %s40, 0
      %p662 = por %p660, %p661
      %p663 = scmp.ne.s32.totalorder %s651, %s652
      %p664 = scmp.eq.s32.totalorder %s41, 3
      %p665 = por %p663, %p664
      %p667 = scmp.ne.s32.totalorder %s652, %s666
      %p668 = scmp.eq.s32.totalorder %s41, 0
      %p669 = por %p667, %p668
      %s671 = sadd.s32 %s670, 1
      %p674 = scmp.eq.s32.totalorder %s35, 3
      %p675 = scmp.ne.s32.totalorder %s670, %s672
      %p676 = scmp.eq.s32.totalorder %s35, 0
      %p677 = por %p675, %p676
      %p678 = scmp.ne.s32.totalorder %s670, %s672
      %p679 = scmp.eq.s32.totalorder %s40, 3
      %p680 = por %p678, %p679
      %p681 = scmp.ne.s32.totalorder %s672, %s673
      %p682 = scmp.eq.s32.totalorder %s40, 0
      %p683 = por %p681, %p682
      %p684 = scmp.ne.s32.totalorder %s672, %s673
      %p685 = scmp.eq.s32.totalorder %s41, 3
      %p686 = por %p684, %p685
      %p688 = scmp.ne.s32.totalorder %s673, %s687
      %p689 = scmp.eq.s32.totalorder %s41, 0
      %p690 = por %p688, %p689
      %s691 = ssub.s32 %s42, %s54
      %p692 = scmp.eq.s32.totalorder %s691, 0
      %s694 = sadd.s32 %s693, 1
      %s695 = scalar_select %p692, %s693, %s694
      %p698 = pneg %p692
      %p699 = scmp.eq.s32.totalorder %s35, 3
      %p700 = por %p698, %p699
      %p701 = scmp.ne.s32.totalorder %s693, %s696
      %p702 = scmp.eq.s32.totalorder %s35, 0
      %p703 = por %p701, %p702
      %p704 = scmp.ne.s32.totalorder %s693, %s696
      %p705 = scmp.eq.s32.totalorder %s40, 3
      %p706 = por %p704, %p705
      %p707 = scmp.ne.s32.totalorder %s696, %s697
      %p708 = scmp.eq.s32.totalorder %s40, 0
      %p709 = por %p707, %p708
      %p710 = scmp.ne.s32.totalorder %s696, %s697
      %p711 = scmp.eq.s32.totalorder %s41, 3
      %p712 = por %p710, %p711
      %p714 = scmp.ne.s32.totalorder %s697, %s713
      %p715 = scmp.eq.s32.totalorder %s41, 0
      %p716 = por %p714, %p715
      %p717 = scmp.le.s32.totalorder 1, %s35
      %p718 = scmp.lt.s32.totalorder %s35, 5
      %p719 = pnand %p717, %p718
      %p720 = pneg %p719
      // Predicated region
      $region9: #{custom_conditional_bert_forward.3} parent=5 // pred_check
        _
      $region10: #{custom_conditional_bert_forward.3} parent=5 // pred_check_branch
        %722 = sbr.rel (%p719) target = $region12
      $region11: #{custom_conditional_bert_forward.3} parent=5 // pred_region
        %s723 = ssub.s32 %s35, 1
        // Predicated region
        $region13: #{custom_conditional_bert_forward.3} parent=11 // pred_check
          %p724 = pneg %p120
        $region14: #{custom_conditional_bert_forward.3} parent=11 // pred_check_branch
          %726 = sbr.rel (%p724) target = $region16
        $region15: #{custom_conditional_bert_forward.3} parent=11 // pred_region
          _
        $region16: #{custom_conditional_bert_forward.3} parent=11 // pred_fallthru
          _
        // Predicated region
        $region17: #{custom_conditional_bert_forward.3} parent=11 // pred_check
          %p727 = pneg %p141
        $region18: #{custom_conditional_bert_forward.3} parent=11 // pred_check_branch
          %729 = sbr.rel (%p727) target = $region20
        $region19: #{custom_conditional_bert_forward.3} parent=11 // pred_region
          _
        $region20: #{custom_conditional_bert_forward.3} parent=11 // pred_fallthru
          _
        // Predicated region
        $region21: #{custom_conditional_bert_forward.3} parent=11 // pred_check
          %p730 = pneg %p578
        $region22: #{custom_conditional_bert_forward.3} parent=11 // pred_check_branch
          %732 = sbr.rel (%p730) target = $region24
        $region23: #{custom_conditional_bert_forward.3} parent=11 // pred_region
          _
        $region24: #{custom_conditional_bert_forward.3} parent=11 // pred_fallthru
          _
        // Predicated region
        $region25: #{custom_conditional_bert_forward.3} parent=11 // pred_check
          %p733 = pneg %p599
        $region26: #{custom_conditional_bert_forward.3} parent=11 // pred_check_branch
          %735 = sbr.rel (%p733) target = $region28
        $region27: #{custom_conditional_bert_forward.3} parent=11 // pred_region
          _
        $region28: #{custom_conditional_bert_forward.3} parent=11 // pred_fallthru
          _
        // Predicated region
        $region29: #{custom_conditional_bert_forward.3} parent=11 // pred_check
          %p736 = pneg %p620
        $region30: #{custom_conditional_bert_forward.3} parent=11 // pred_check_branch
          %738 = sbr.rel (%p736) target = $region32
        $region31: #{custom_conditional_bert_forward.3} parent=11 // pred_region
          _
        $region32: #{custom_conditional_bert_forward.3} parent=11 // pred_fallthru
          _
        // Predicated region
        $region33: #{custom_conditional_bert_forward.3} parent=11 // pred_check
          %p739 = pneg %p641
        $region34: #{custom_conditional_bert_forward.3} parent=11 // pred_check_branch
          %741 = sbr.rel (%p739) target = $region36
        $region35: #{custom_conditional_bert_forward.3} parent=11 // pred_region
          _
        $region36: #{custom_conditional_bert_forward.3} parent=11 // pred_fallthru
          _
        // Predicated region
        $region37: #{custom_conditional_bert_forward.3} parent=11 // pred_check
          %p742 = pneg %p662
        $region38: #{custom_conditional_bert_forward.3} parent=11 // pred_check_branch
          %744 = sbr.rel (%p742) target = $region40
        $region39: #{custom_conditional_bert_forward.3} parent=11 // pred_region
          _
        $region40: #{custom_conditional_bert_forward.3} parent=11 // pred_fallthru
          _
        // Predicated region
        $region41: #{custom_conditional_bert_forward.3} parent=11 // pred_check
          %p745 = pneg %p683
        $region42: #{custom_conditional_bert_forward.3} parent=11 // pred_check_branch
          %747 = sbr.rel (%p745) target = $region44
        $region43: #{custom_conditional_bert_forward.3} parent=11 // pred_region
          _
        $region44: #{custom_conditional_bert_forward.3} parent=11 // pred_fallthru
          _
      $region12: #{custom_conditional_bert_forward.3} parent=5 // pred_fallthru
        _
      %p748 = scmp.lt.s32.totalorder %s35, 4
      // Predicated region
      $region45: #{custom_conditional_bert_forward.3} parent=5 // pred_check
        %p749 = pneg %p748
      $region46: #{custom_conditional_bert_forward.3} parent=5 // pred_check_branch
        %751 = sbr.rel (%p749) target = $region48
      $region47: #{custom_conditional_bert_forward.3} parent=5 // pred_region
        // Predicated region
        $region49: #{custom_conditional_bert_forward.3} parent=47 // pred_check
          %p752 = pneg %p67
        $region50: #{custom_conditional_bert_forward.3} parent=47 // pred_check_branch
          %754 = sbr.rel (%p752) target = $region52
        $region51: #{custom_conditional_bert_forward.3} parent=47 // pred_region
          %p755 = scmp.lt.s32.totalorder %s42, 1
          %s756 = scalar_select %p755, %s42, 1
          %s757 = smul.addr %s756, 8
          %s758 = scalar_lea.vmem %s0, %s757
        $region52: #{custom_conditional_bert_forward.3} parent=47 // pred_fallthru
          _
        // Predicated region
        $region53: #{custom_conditional_bert_forward.3} parent=47 // pred_check
          %p759 = pneg %p93
        $region54: #{custom_conditional_bert_forward.3} parent=47 // pred_check_branch
          %761 = sbr.rel (%p759) target = $region56
        $region55: #{custom_conditional_bert_forward.3} parent=47 // pred_region
          %p762 = scmp.lt.s32.totalorder %s42, 1
          %s763 = scalar_select %p762, %s42, 1
          %s764 = scalar_lea.vmem %s1, %s763
        $region56: #{custom_conditional_bert_forward.3} parent=47 // pred_fallthru
          _
        // Predicated region
        $region57: #{custom_conditional_bert_forward.3} parent=47 // pred_check
          %p765 = pneg %p161
        $region58: #{custom_conditional_bert_forward.3} parent=47 // pred_check_branch
          %767 = sbr.rel (%p765) target = $region60
        $region59: #{custom_conditional_bert_forward.3} parent=47 // pred_region
          %p768 = scmp.lt.s32.totalorder %s43, 1
          %s769 = scalar_select %p768, %s43, 1
          %s770 = smul.addr %s769, 8
          %s771 = smul.addr %s770, 4
          %s772 = scalar_lea.vmem %s4, %s771
        $region60: #{custom_conditional_bert_forward.3} parent=47 // pred_fallthru
          _
        // Predicated region
        $region61: #{custom_conditional_bert_forward.3} parent=47 // pred_check
          %p773 = pneg %p187
        $region62: #{custom_conditional_bert_forward.3} parent=47 // pred_check_branch
          %775 = sbr.rel (%p773) target = $region64
        $region63: #{custom_conditional_bert_forward.3} parent=47 // pred_region
          %p776 = scmp.lt.s32.totalorder %s43, 1
          %s777 = scalar_select %p776, %s43, 1
          %s778 = smul.addr %s777, 8
          %s779 = smul.addr %s778, 4
          %s780 = scalar_lea.vmem %s5, %s779
        $region64: #{custom_conditional_bert_forward.3} parent=47 // pred_fallthru
          _
        // Predicated region
        $region65: #{custom_conditional_bert_forward.3} parent=47 // pred_check
          %p781 = pneg %p213
        $region66: #{custom_conditional_bert_forward.3} parent=47 // pred_check_branch
          %783 = sbr.rel (%p781) target = $region68
        $region67: #{custom_conditional_bert_forward.3} parent=47 // pred_region
          %p784 = scmp.lt.s32.totalorder %s43, 1
          %s785 = scalar_select %p784, %s43, 1
          %s786 = smul.addr %s785, 8
          %s787 = smul.addr %s786, 4
          %s788 = scalar_lea.vmem %s6, %s787
        $region68: #{custom_conditional_bert_forward.3} parent=47 // pred_fallthru
          _
        // Predicated region
        $region69: #{custom_conditional_bert_forward.3} parent=47 // pred_check
          %p789 = pneg %p239
        $region70: #{custom_conditional_bert_forward.3} parent=47 // pred_check_branch
          %791 = sbr.rel (%p789) target = $region72
        $region71: #{custom_conditional_bert_forward.3} parent=47 // pred_region
          %p792 = scmp.lt.s32.totalorder %s43, 1
          %s793 = scalar_select %p792, %s43, 1
          %s794 = smul.addr %s793, 2
          %s795 = scalar_lea.vmem %s7, %s794
        $region72: #{custom_conditional_bert_forward.3} parent=47 // pred_fallthru
          _
        // Predicated region
        $region73: #{custom_conditional_bert_forward.3} parent=47 // pred_check
          %p796 = pneg %p265
        $region74: #{custom_conditional_bert_forward.3} parent=47 // pred_check_branch
          %798 = sbr.rel (%p796) target = $region76
        $region75: #{custom_conditional_bert_forward.3} parent=47 // pred_region
          %p799 = scmp.lt.s32.totalorder %s43, 1
          %s800 = scalar_select %p799, %s43, 1
          %s801 = smul.addr %s800, 2
          %s802 = scalar_lea.vmem %s8, %s801
        $region76: #{custom_conditional_bert_forward.3} parent=47 // pred_fallthru
          _
        // Predicated region
        $region77: #{custom_conditional_bert_forward.3} parent=47 // pred_check
          %p803 = pneg %p291
        $region78: #{custom_conditional_bert_forward.3} parent=47 // pred_check_branch
          %805 = sbr.rel (%p803) target = $region80
        $region79: #{custom_conditional_bert_forward.3} parent=47 // pred_region
          %p806 = scmp.lt.s32.totalorder %s43, 1
          %s807 = scalar_select %p806, %s43, 1
          %s808 = smul.addr %s807, 2
          %s809 = scalar_lea.vmem %s9, %s808
        $region80: #{custom_conditional_bert_forward.3} parent=47 // pred_fallthru
          _
        // Predicated region
        $region81: #{custom_conditional_bert_forward.3} parent=47 // pred_check
          %p810 = pneg %p317
        $region82: #{custom_conditional_bert_forward.3} parent=47 // pred_check_branch
          %812 = sbr.rel (%p810) target = $region84
        $region83: #{custom_conditional_bert_forward.3} parent=47 // pred_region
          %p813 = scmp.lt.s32.totalorder %s43, 1
          %s814 = scalar_select %p813, %s43, 1
          %s815 = smul.addr %s814, 4
          %s816 = smul.addr %s815, 4
          %s817 = scalar_lea.vmem %s10, %s816
        $region84: #{custom_conditional_bert_forward.3} parent=47 // pred_fallthru
          _
        // Predicated region
        $region85: #{custom_conditional_bert_forward.3} parent=47 // pred_check
          %p818 = pneg %p343
        $region86: #{custom_conditional_bert_forward.3} parent=47 // pred_check_branch
          %820 = sbr.rel (%p818) target = $region88
        $region87: #{custom_conditional_bert_forward.3} parent=47 // pred_region
          %p821 = scmp.lt.s32.totalorder %s43, 1
          %s822 = scalar_select %p821, %s43, 1
          %s823 = scalar_lea.vmem %s11, %s822
        $region88: #{custom_conditional_bert_forward.3} parent=47 // pred_fallthru
          _
        // Predicated region
        $region89: #{custom_conditional_bert_forward.3} parent=47 // pred_check
          %p824 = pneg %p369
        $region90: #{custom_conditional_bert_forward.3} parent=47 // pred_check_branch
          %826 = sbr.rel (%p824) target = $region92
        $region91: #{custom_conditional_bert_forward.3} parent=47 // pred_region
          %p827 = scmp.lt.s32.totalorder %s43, 1
          %s828 = scalar_select %p827, %s43, 1
          %s829 = scalar_lea.vmem %s12, %s828
        $region92: #{custom_conditional_bert_forward.3} parent=47 // pred_fallthru
          _
        // Predicated region
        $region93: #{custom_conditional_bert_forward.3} parent=47 // pred_check
          %p830 = pneg %p395
        $region94: #{custom_conditional_bert_forward.3} parent=47 // pred_check_branch
          %832 = sbr.rel (%p830) target = $region96
        $region95: #{custom_conditional_bert_forward.3} parent=47 // pred_region
          %p833 = scmp.lt.s32.totalorder %s43, 1
          %s834 = scalar_select %p833, %s43, 1
          %s835 = scalar_lea.vmem %s13, %s834
        $region96: #{custom_conditional_bert_forward.3} parent=47 // pred_fallthru
          _
        // Predicated region
        $region97: #{custom_conditional_bert_forward.3} parent=47 // pred_check
          %p836 = pneg %p421
        $region98: #{custom_conditional_bert_forward.3} parent=47 // pred_check_branch
          %838 = sbr.rel (%p836) target = $region100
        $region99: #{custom_conditional_bert_forward.3} parent=47 // pred_region
          %p839 = scmp.lt.s32.totalorder %s43, 1
          %s840 = scalar_select %p839, %s43, 1
          %s841 = smul.addr %s840, 4
          %s842 = smul.addr %s841, 4
          %s843 = scalar_lea.vmem %s14, %s842
        $region100: #{custom_conditional_bert_forward.3} parent=47 // pred_fallthru
          _
        // Predicated region
        $region101: #{custom_conditional_bert_forward.3} parent=47 // pred_check
          %p844 = pneg %p447
        $region102: #{custom_conditional_bert_forward.3} parent=47 // pred_check_branch
          %846 = sbr.rel (%p844) target = $region104
        $region103: #{custom_conditional_bert_forward.3} parent=47 // pred_region
          %p847 = scmp.lt.s32.totalorder %s43, 1
          %s848 = scalar_select %p847, %s43, 1
          %s849 = scalar_lea.vmem %s15, %s848
        $region104: #{custom_conditional_bert_forward.3} parent=47 // pred_fallthru
          _
        // Predicated region
        $region105: #{custom_conditional_bert_forward.3} parent=47 // pred_check
          %p850 = pneg %p473
        $region106: #{custom_conditional_bert_forward.3} parent=47 // pred_check_branch
          %852 = sbr.rel (%p850) target = $region108
        $region107: #{custom_conditional_bert_forward.3} parent=47 // pred_region
          %p853 = scmp.lt.s32.totalorder %s43, 1
          %s854 = scalar_select %p853, %s43, 1
          %s855 = smul.addr %s854, 8
          %s856 = smul.addr %s855, 4
          %s857 = scalar_lea.vmem %s16, %s856
        $region108: #{custom_conditional_bert_forward.3} parent=47 // pred_fallthru
          _
        // Predicated region
        $region109: #{custom_conditional_bert_forward.3} parent=47 // pred_check
          %p858 = pneg %p499
        $region110: #{custom_conditional_bert_forward.3} parent=47 // pred_check_branch
          %860 = sbr.rel (%p858) target = $region112
        $region111: #{custom_conditional_bert_forward.3} parent=47 // pred_region
          %p861 = scmp.lt.s32.totalorder %s43, 1
          %s862 = scalar_select %p861, %s43, 1
          %s863 = scalar_lea.vmem %s17, %s862
        $region112: #{custom_conditional_bert_forward.3} parent=47 // pred_fallthru
          _
        // Predicated region
        $region113: #{custom_conditional_bert_forward.3} parent=47 // pred_check
          %p864 = pneg %p525
        $region114: #{custom_conditional_bert_forward.3} parent=47 // pred_check_branch
          %866 = sbr.rel (%p864) target = $region116
        $region115: #{custom_conditional_bert_forward.3} parent=47 // pred_region
          %p867 = scmp.lt.s32.totalorder %s43, 1
          %s868 = scalar_select %p867, %s43, 1
          %s869 = scalar_lea.vmem %s18, %s868
        $region116: #{custom_conditional_bert_forward.3} parent=47 // pred_fallthru
          _
        // Predicated region
        $region117: #{custom_conditional_bert_forward.3} parent=47 // pred_check
          %p870 = pneg %p551
        $region118: #{custom_conditional_bert_forward.3} parent=47 // pred_check_branch
          %872 = sbr.rel (%p870) target = $region120
        $region119: #{custom_conditional_bert_forward.3} parent=47 // pred_region
          %p873 = scmp.lt.s32.totalorder %s43, 1
          %s874 = scalar_select %p873, %s43, 1
          %s875 = scalar_lea.vmem %s19, %s874
        $region120: #{custom_conditional_bert_forward.3} parent=47 // pred_fallthru
          _
      $region48: #{custom_conditional_bert_forward.3} parent=5 // pred_fallthru
        _
      %p876 = scmp.le.s32.totalorder 1, %s35
      %p877 = scmp.lt.s32.totalorder %s35, 5
      %p878 = pnand %p876, %p877
      %p879 = pneg %p878
      // Predicated region
      $region121: #{custom_conditional_bert_forward.3} parent=5 // pred_check
        _
      $region122: #{custom_conditional_bert_forward.3} parent=5 // pred_check_branch
        %881 = sbr.rel (%p878) target = $region124
      $region123: #{custom_conditional_bert_forward.3} parent=5 // pred_region
        %s882 = ssub.s32 %s35, 1
        %p883 = scmp.lt.s32.totalorder %s44, 1
        %s884 = scalar_select %p883, %s44, 1
        %s885 = smul.addr %s884, 8
        %s886 = scalar_lea.vmem %s0, %s885
        %p887 = pneg %p73
        %p888 = pneg %p70
        %p889 = scmp.lt.s32.totalorder %s44, 1
        %s890 = scalar_select %p889, %s44, 1
        %s891 = scalar_lea.vmem %s1, %s890
        %p892 = pneg %p99
        %p893 = pneg %p96
        %p894 = pneg %p120
        %p895 = pneg %p117
        %p896 = pneg %p141
        %p897 = pneg %p138
        %p898 = scmp.lt.s32.totalorder %s45, 1
        %s899 = scalar_select %p898, %s45, 1
        %s900 = smul.addr %s899, 8
        %s901 = smul.addr %s900, 4
        %s902 = scalar_lea.vmem %s4, %s901
        %p903 = pneg %p167
        %p904 = pneg %p164
        %p905 = scmp.lt.s32.totalorder %s45, 1
        %s906 = scalar_select %p905, %s45, 1
        %s907 = smul.addr %s906, 8
        %s908 = smul.addr %s907, 4
        %s909 = scalar_lea.vmem %s5, %s908
        %p910 = pneg %p193
        %p911 = pneg %p190
        %p912 = scmp.lt.s32.totalorder %s45, 1
        %s913 = scalar_select %p912, %s45, 1
        %s914 = smul.addr %s913, 8
        %s915 = smul.addr %s914, 4
        %s916 = scalar_lea.vmem %s6, %s915
        %p917 = pneg %p219
        %p918 = pneg %p216
        %p919 = scmp.lt.s32.totalorder %s45, 1
        %s920 = scalar_select %p919, %s45, 1
        %s921 = smul.addr %s920, 2
        %s922 = scalar_lea.vmem %s7, %s921
        %p923 = pneg %p245
        %p924 = pneg %p242
        %p925 = scmp.lt.s32.totalorder %s45, 1
        %s926 = scalar_select %p925, %s45, 1
        %s927 = smul.addr %s926, 2
        %s928 = scalar_lea.vmem %s8, %s927
        %p929 = pneg %p271
        %p930 = pneg %p268
        %p931 = scmp.lt.s32.totalorder %s45, 1
        %s932 = scalar_select %p931, %s45, 1
        %s933 = smul.addr %s932, 2
        %s934 = scalar_lea.vmem %s9, %s933
        %p935 = pneg %p297
        %p936 = pneg %p294
        %p937 = scmp.lt.s32.totalorder %s45, 1
        %s938 = scalar_select %p937, %s45, 1
        %s939 = smul.addr %s938, 4
        %s940 = smul.addr %s939, 4
        %s941 = scalar_lea.vmem %s10, %s940
        %p942 = pneg %p323
        %p943 = pneg %p320
        %p944 = scmp.lt.s32.totalorder %s45, 1
        %s945 = scalar_select %p944, %s45, 1
        %s946 = scalar_lea.vmem %s11, %s945
        %p947 = pneg %p349
        %p948 = pneg %p346
        %p949 = scmp.lt.s32.totalorder %s45, 1
        %s950 = scalar_select %p949, %s45, 1
        %s951 = scalar_lea.vmem %s12, %s950
        %p952 = pneg %p375
        %p953 = pneg %p372
        %p954 = scmp.lt.s32.totalorder %s45, 1
        %s955 = scalar_select %p954, %s45, 1
        %s956 = scalar_lea.vmem %s13, %s955
        %p957 = pneg %p401
        %p958 = pneg %p398
        %p959 = scmp.lt.s32.totalorder %s45, 1
        %s960 = scalar_select %p959, %s45, 1
        %s961 = smul.addr %s960, 4
        %s962 = smul.addr %s961, 4
        %s963 = scalar_lea.vmem %s14, %s962
        %p964 = pneg %p427
        %p965 = pneg %p424
        %p966 = scmp.lt.s32.totalorder %s45, 1
        %s967 = scalar_select %p966, %s45, 1
        %s968 = scalar_lea.vmem %s15, %s967
        %p969 = pneg %p453
        %p970 = pneg %p450
        %p971 = scmp.lt.s32.totalorder %s45, 1
        %s972 = scalar_select %p971, %s45, 1
        %s973 = smul.addr %s972, 8
        %s974 = smul.addr %s973, 4
        %s975 = scalar_lea.vmem %s16, %s974
        %p976 = pneg %p479
        %p977 = pneg %p476
        %p978 = scmp.lt.s32.totalorder %s45, 1
        %s979 = scalar_select %p978, %s45, 1
        %s980 = scalar_lea.vmem %s17, %s979
        %p981 = pneg %p505
        %p982 = pneg %p502
        %p983 = scmp.lt.s32.totalorder %s45, 1
        %s984 = scalar_select %p983, %s45, 1
        %s985 = scalar_lea.vmem %s18, %s984
        %p986 = pneg %p531
        %p987 = pneg %p528
        %p988 = scmp.lt.s32.totalorder %s45, 1
        %s989 = scalar_select %p988, %s45, 1
        %s990 = scalar_lea.vmem %s19, %s989
        %p991 = pneg %p557
        %p992 = pneg %p554
        %p993 = pneg %p578
        %p994 = pneg %p575
        %p995 = pneg %p599
        %p996 = pneg %p596
        %p997 = pneg %p620
        %p998 = pneg %p617
        %p999 = pneg %p641
        %p1000 = pneg %p638
        %p1001 = pneg %p662
        %p1002 = pneg %p659
        %p1003 = pneg %p683
        %p1004 = pneg %p680
        %p1005 = pneg %p709
        %p1006 = pneg %p706
        %s1007 = sand.u32 %s696, 1
        %s1008 = scalar_lea.sflag [#allocation4], %s1007
        %s1009 = sand.u32 %s696, 1
        %s1010 = smul.addr %s1009, 8
        %s1011 = scalar_lea.vmem [#allocation3], %s1010
        %p1012 = scmp.lt.s32.totalorder %s44, 1
        %s1013 = scalar_select %p1012, %s44, 1
        %s1014 = smul.addr %s1013, 8
        %s1015 = scalar_lea.vmem %s0, %s1014
        %p1016 = scmp.lt.s32.totalorder %s44, 1
        %s1017 = scalar_select %p1016, %s44, 1
        %s1018 = scalar_lea.vmem %s1, %s1017
        %p1019 = scmp.lt.s32.totalorder %s45, 1
        %s1020 = scalar_select %p1019, %s45, 1
        %s1021 = smul.addr %s1020, 8
        %s1022 = smul.addr %s1021, 4
        %s1023 = scalar_lea.vmem %s4, %s1022
        %p1024 = scmp.lt.s32.totalorder %s45, 1
        %s1025 = scalar_select %p1024, %s45, 1
        %s1026 = smul.addr %s1025, 8
        %s1027 = smul.addr %s1026, 4
        %s1028 = scalar_lea.vmem %s5, %s1027
        %p1029 = scmp.lt.s32.totalorder %s45, 1
        %s1030 = scalar_select %p1029, %s45, 1
        %s1031 = smul.addr %s1030, 8
        %s1032 = smul.addr %s1031, 4
        %s1033 = scalar_lea.vmem %s6, %s1032
        %p1034 = scmp.lt.s32.totalorder %s45, 1
        %s1035 = scalar_select %p1034, %s45, 1
        %s1036 = smul.addr %s1035, 2
        %s1037 = scalar_lea.vmem %s7, %s1036
        %p1038 = scmp.lt.s32.totalorder %s45, 1
        %s1039 = scalar_select %p1038, %s45, 1
        %s1040 = smul.addr %s1039, 2
        %s1041 = scalar_lea.vmem %s8, %s1040
        %p1042 = scmp.lt.s32.totalorder %s45, 1
        %s1043 = scalar_select %p1042, %s45, 1
        %s1044 = smul.addr %s1043, 2
        %s1045 = scalar_lea.vmem %s9, %s1044
        %p1046 = scmp.lt.s32.totalorder %s45, 1
        %s1047 = scalar_select %p1046, %s45, 1
        %s1048 = smul.addr %s1047, 4
        %s1049 = smul.addr %s1048, 4
        %s1050 = scalar_lea.vmem %s10, %s1049
        %p1051 = scmp.lt.s32.totalorder %s45, 1
        %s1052 = scalar_select %p1051, %s45, 1
        %s1053 = scalar_lea.vmem %s11, %s1052
        %p1054 = scmp.lt.s32.totalorder %s45, 1
        %s1055 = scalar_select %p1054, %s45, 1
        %s1056 = scalar_lea.vmem %s12, %s1055
        %p1057 = scmp.lt.s32.totalorder %s45, 1
        %s1058 = scalar_select %p1057, %s45, 1
        %s1059 = scalar_lea.vmem %s13, %s1058
        %p1060 = scmp.lt.s32.totalorder %s45, 1
        %s1061 = scalar_select %p1060, %s45, 1
        %s1062 = smul.addr %s1061, 4
        %s1063 = smul.addr %s1062, 4
        %s1064 = scalar_lea.vmem %s14, %s1063
        %p1065 = scmp.lt.s32.totalorder %s45, 1
        %s1066 = scalar_select %p1065, %s45, 1
        %s1067 = scalar_lea.vmem %s15, %s1066
        %p1068 = scmp.lt.s32.totalorder %s45, 1
        %s1069 = scalar_select %p1068, %s45, 1
        %s1070 = smul.addr %s1069, 8
        %s1071 = smul.addr %s1070, 4
        %s1072 = scalar_lea.vmem %s16, %s1071
        %p1073 = scmp.lt.s32.totalorder %s45, 1
        %s1074 = scalar_select %p1073, %s45, 1
        %s1075 = scalar_lea.vmem %s17, %s1074
        %p1076 = scmp.lt.s32.totalorder %s45, 1
        %s1077 = scalar_select %p1076, %s45, 1
        %s1078 = scalar_lea.vmem %s18, %s1077
        %p1079 = scmp.lt.s32.totalorder %s45, 1
        %s1080 = scalar_select %p1079, %s45, 1
        %s1081 = scalar_lea.vmem %s19, %s1080
        %p1083 = scmp.eq.s32.totalorder %s45, 0
        // Predicated region
        $region125: #{custom_conditional_bert_forward.3} parent=123 // pred_check
          %p1084 = pneg %p1083
        $region126: #{custom_conditional_bert_forward.3} parent=123 // pred_check_branch
          %1086 = sbr.rel (%p1084) target = $region128
        $region127: #{custom_conditional_bert_forward.3} parent=123 // pred_region
          %v1087 = vld [vmem:[%s1015] sm:$0xff]
          %v1088 = vld [vmem:[%s2] sm:$0x1]
          %v1089 = vld [vmem:[%s3] sm:$0x1]
          %vm1090 = vcmask 261120
          %v1091 = vsel %vm1090, %v1087, 0.0
          %1092 = vadd.xlane.f32.xlu0 %v1091
          %v1093 = vpop.xlane.xlu0 %1092
          %v1094 = vrcp.pop 32.0
          %v1095 = vmul.f32 %v1093, %v1094
          %v1096 = vsub.f32 %v1087, %v1095
          %v1097 = vmul.f32 %v1096, %v1096
          %v1098 = vsel %vm1090, %v1097, 0.0
          %1099 = vadd.xlane.f32.xlu0 %v1098
          %v1100 = vpop.xlane.xlu0 %1099
          %v1101 = vmul.f32 %v1100, %v1094
          %v1102 = vadd.f32 %v1101, 1e-12
          %v1103 = vrsqrt.pop %v1102
          %v1104 = vmul.f32 %v1096, %v1103
          %v1106 = vlaneseq
          %v1107 = vshrl.u32 %v1106, 7
          %v1108 = vsub.s32 0, %v1107
          %v1109 = vrot.slane %v1088, %v1108
          %v1111 = vmul.f32 %v1104, %v1109
          %v1113 = vlaneseq
          %v1114 = vshrl.u32 %v1113, 7
          %v1115 = vsub.s32 0, %v1114
          %v1116 = vrot.slane %v1089, %v1115
          %v1118 = vadd.f32 %v1111, %v1116
          %1119 = vst.msk [vmem:[#allocation2] sm:$0xff] %vm1090, %v1118
        $region128: #{custom_conditional_bert_forward.3} parent=123 // pred_fallthru
          _
        %v1120 = vld [vmem:[#allocation2] sm:$0xff]
        %v1121 = vld [vmem:[%s1018] sm:$0x1]
        %v1122 = vpack.c.bf16 %v1120, %v1120
        %v1123 = vld [vmem:[%s1023] sm:$0xf]
        %v1124 = vld [vmem:[%s1023 + $0x4] sm:$0xf]
        %v1125 = vld [vmem:[%s1023 + $0x8] sm:$0xf]
        %v1126 = vld [vmem:[%s1023 + $0xc] sm:$0xf]
        %v1127 = vld [vmem:[%s1037] sm:$0x1]
        %v1129 = vlaneseq
        %v1130 = vshrl.u32 %v1129, 7
        %v1131 = vsub.s32 0, %v1130
        %v1132 = vrot.slane %v1127, %v1131
        %v1138 = vunpack.c.l.b16 %v1123
        %v1139 = vunpack.c.l.b16 %v1124
        %v1140 = vunpack.c.l.b16 %v1125
        %v1141 = vunpack.c.l.b16 %v1126
        %v1142 = vpack.c.b16 %v1139, %v1138
        %v1143 = vpack.c.b16 %v1141, %v1140
        %vm1146 = vcmask 261120
        %v1148 = vsel %vm1146, %v1122, 0
        %1150 = vmatprep.subr.bf16.mxu0 0
        %1151 = vmatpush1.bf16.msra.mxu0 %v1142
        %1152 = vmatprep.subr.bf16.mxu0 0
        %1153 = vmatpush1.bf16.msra.mxu0 %v1143
        %1154 = vmatprep.subr.bf16.mxu0 0
        %1155 = vmatpush1.bf16.msra.mxu0 0
        %1156 = vmatprep.subr.bf16.mxu0 0
        %1157 = vmatpush1.bf16.msra.mxu0 0
        %1158 = vmatprep.subr.bf16.mxu0 0
        %1159 = vmatpush1.bf16.msra.mxu0 0
        %1160 = vmatprep.subr.bf16.mxu0 0
        %1161 = vmatpush1.bf16.msra.mxu0 0
        %1162 = vmatprep.subr.bf16.mxu0 0
        %1163 = vmatpush1.bf16.msra.mxu0 0
        %1164 = vmatprep.subr.bf16.mxu0 0
        %1165 = vmatpush1.bf16.msra.mxu0 0
        %1166 = vmatprep.subr.bf16.mxu0 0
        %1167 = vmatpush1.bf16.msra.mxu0 0
        %1168 = vmatprep.subr.bf16.mxu0 0
        %1169 = vmatpush1.bf16.msra.mxu0 0
        %1170 = vmatprep.subr.bf16.mxu0 0
        %1171 = vmatpush1.bf16.msra.mxu0 0
        %1172 = vmatprep.subr.bf16.mxu0 0
        %1173 = vmatpush1.bf16.msra.mxu0 0
        %1174 = vmatprep.subr.bf16.mxu0 0
        %1175 = vmatpush1.bf16.msra.mxu0 0
        %1176 = vmatprep.subr.bf16.mxu0 0
        %1177 = vmatpush1.bf16.msra.mxu0 0
        %1178 = vmatprep.subr.bf16.mxu0 0
        %1179 = vmatpush1.bf16.msra.mxu0 0
        %1180 = vmatprep.subr.bf16.mxu0 0
        %1181 = vmatpush1.bf16.msra.mxu0 0
        %1182 = vmatprep.mubr.bf16.mxu0 0
        %1183 = vmatmul.mubr.bf16.gmra.mrb[0].mxu0 %v1148
        %v1184 = vpop.f32.mrb[0].mxu0
        %v1185 = vadd.f32 %v1132, %v1184
        %v1186 = vpop.f32.mrb[0].mxu0
        %v1187 = vpop.f32.mrb[0].mxu0
        %v1188 = vpop.f32.mrb[0].mxu0
        %1189 = vdwg.mxu0
        %v1190 = vld [vmem:[%s1028] sm:$0xf]
        %v1191 = vld [vmem:[%s1028 + $0x4] sm:$0xf]
        %v1192 = vld [vmem:[%s1028 + $0x8] sm:$0xf]
        %v1193 = vld [vmem:[%s1028 + $0xc] sm:$0xf]
        %v1194 = vld [vmem:[%s1041] sm:$0x1]
        %v1196 = vlaneseq
        %v1197 = vshrl.u32 %v1196, 7
        %v1198 = vsub.s32 0, %v1197
        %v1199 = vrot.slane %v1194, %v1198
        %v1205 = vunpack.c.l.b16 %v1190
        %v1206 = vunpack.c.l.b16 %v1191
        %v1207 = vunpack.c.l.b16 %v1192
        %v1208 = vunpack.c.l.b16 %v1193
        %v1209 = vpack.c.b16 %v1206, %v1205
        %v1210 = vpack.c.b16 %v1208, %v1207
        %1213 = vmatprep.subr.bf16.mxu0 0
        %1214 = vmatpush1.bf16.msra.mxu0 %v1209
        %1215 = vmatprep.subr.bf16.mxu0 0
        %1216 = vmatpush1.bf16.msra.mxu0 %v1210
        %1217 = vmatprep.subr.bf16.mxu0 0
        %1218 = vmatpush1.bf16.msra.mxu0 0
        %1219 = vmatprep.subr.bf16.mxu0 0
        %1220 = vmatpush1.bf16.msra.mxu0 0
        %1221 = vmatprep.subr.bf16.mxu0 0
        %1222 = vmatpush1.bf16.msra.mxu0 0
        %1223 = vmatprep.subr.bf16.mxu0 0
        %1224 = vmatpush1.bf16.msra.mxu0 0
        %1225 = vmatprep.subr.bf16.mxu0 0
        %1226 = vmatpush1.bf16.msra.mxu0 0
        %1227 = vmatprep.subr.bf16.mxu0 0
        %1228 = vmatpush1.bf16.msra.mxu0 0
        %1229 = vmatprep.subr.bf16.mxu0 0
        %1230 = vmatpush1.bf16.msra.mxu0 0
        %1231 = vmatprep.subr.bf16.mxu0 0
        %1232 = vmatpush1.bf16.msra.mxu0 0
        %1233 = vmatprep.subr.bf16.mxu0 0
        %1234 = vmatpush1.bf16.msra.mxu0 0
        %1235 = vmatprep.subr.bf16.mxu0 0
        %1236 = vmatpush1.bf16.msra.mxu0 0
        %1237 = vmatprep.subr.bf16.mxu0 0
        %1238 = vmatpush1.bf16.msra.mxu0 0
        %1239 = vmatprep.subr.bf16.mxu0 0
        %1240 = vmatpush1.bf16.msra.mxu0 0
        %1241 = vmatprep.subr.bf16.mxu0 0
        %1242 = vmatpush1.bf16.msra.mxu0 0
        %1243 = vmatprep.subr.bf16.mxu0 0
        %1244 = vmatpush1.bf16.msra.mxu0 0
        %1245 = vmatprep.mubr.bf16.mxu0 0
        %1246 = vmatmul.mubr.bf16.gmra.mrb[0].mxu0 %v1148
        %v1247 = vpop.f32.mrb[0].mxu0
        %v1248 = vadd.f32 %v1199, %v1247
        %v1249 = vpop.f32.mrb[0].mxu0
        %v1250 = vpop.f32.mrb[0].mxu0
        %v1251 = vpop.f32.mrb[0].mxu0
        %1252 = vdwg.mxu0
        %v1253 = vld [vmem:[%s1033] sm:$0xf]
        %v1254 = vld [vmem:[%s1033 + $0x4] sm:$0xf]
        %v1255 = vld [vmem:[%s1033 + $0x8] sm:$0xf]
        %v1256 = vld [vmem:[%s1033 + $0xc] sm:$0xf]
        %v1257 = vld [vmem:[%s1045] sm:$0x1]
        %v1259 = vlaneseq
        %v1260 = vshrl.u32 %v1259, 7
        %v1261 = vsub.s32 0, %v1260
        %v1262 = vrot.slane %v1257, %v1261
        %v1268 = vunpack.c.l.b16 %v1253
        %v1269 = vunpack.c.l.b16 %v1254
        %v1270 = vunpack.c.l.b16 %v1255
        %v1271 = vunpack.c.l.b16 %v1256
        %v1272 = vpack.c.b16 %v1269, %v1268
        %v1273 = vpack.c.b16 %v1271, %v1270
        %1276 = vmatprep.subr.bf16.mxu0 0
        %1277 = vmatpush1.bf16.msra.mxu0 %v1272
        %1278 = vmatprep.subr.bf16.mxu0 0
        %1279 = vmatpush1.bf16.msra.mxu0 %v1273
        %1280 = vmatprep.subr.bf16.mxu0 0
        %1281 = vmatpush1.bf16.msra.mxu0 0
        %1282 = vmatprep.subr.bf16.mxu0 0
        %1283 = vmatpush1.bf16.msra.mxu0 0
        %1284 = vmatprep.subr.bf16.mxu0 0
        %1285 = vmatpush1.bf16.msra.mxu0 0
        %1286 = vmatprep.subr.bf16.mxu0 0
        %1287 = vmatpush1.bf16.msra.mxu0 0
        %1288 = vmatprep.subr.bf16.mxu0 0
        %1289 = vmatpush1.bf16.msra.mxu0 0
        %1290 = vmatprep.subr.bf16.mxu0 0
        %1291 = vmatpush1.bf16.msra.mxu0 0
        %1292 = vmatprep.subr.bf16.mxu0 0
        %1293 = vmatpush1.bf16.msra.mxu0 0
        %1294 = vmatprep.subr.bf16.mxu0 0
        %1295 = vmatpush1.bf16.msra.mxu0 0
        %1296 = vmatprep.subr.bf16.mxu0 0
        %1297 = vmatpush1.bf16.msra.mxu0 0
        %1298 = vmatprep.subr.bf16.mxu0 0
        %1299 = vmatpush1.bf16.msra.mxu0 0
        %1300 = vmatprep.subr.bf16.mxu0 0
        %1301 = vmatpush1.bf16.msra.mxu0 0
        %1302 = vmatprep.subr.bf16.mxu0 0
        %1303 = vmatpush1.bf16.msra.mxu0 0
        %1304 = vmatprep.subr.bf16.mxu0 0
        %1305 = vmatpush1.bf16.msra.mxu0 0
        %1306 = vmatprep.subr.bf16.mxu0 0
        %1307 = vmatpush1.bf16.msra.mxu0 0
        %1308 = vmatprep.mubr.bf16.mxu0 0
        %1309 = vmatmul.mubr.bf16.gmra.mrb[0].mxu0 %v1148
        %v1310 = vpop.f32.mrb[0].mxu0
        %v1311 = vadd.f32 %v1262, %v1310
        %v1312 = vpop.f32.mrb[0].mxu0
        %v1313 = vpop.f32.mrb[0].mxu0
        %v1314 = vpop.f32.mrb[0].mxu0
        %1315 = vdwg.mxu0
        %v1316 = vpack.c.bf16 %v1185, %v1185
        %v1317 = vpack.c.bf16 %v1248, %v1248
        %vm1318 = vcmask 130048
        %v1320 = vsel %vm1318, %v1316, 0
        %v1323 = vsel %vm1318, %v1317, 0
        %1325 = vmatprep.subr.bf16.mxu0 0
        %1326 = vmatpush1.bf16.xpose.msra.mxu0 %v1323
        %1327 = vmatprep.subr.bf16.mxu0 0
        %1328 = vmatpush1.bf16.xpose.msra.mxu0 0
        %1329 = vmatprep.subr.bf16.mxu0 0
        %1330 = vmatpush1.bf16.xpose.msra.mxu0 0
        %1331 = vmatprep.subr.bf16.mxu0 0
        %1332 = vmatpush1.bf16.xpose.msra.mxu0 0
        %1333 = vmatprep.subr.bf16.mxu0 0
        %1334 = vmatpush1.bf16.xpose.msra.mxu0 0
        %1335 = vmatprep.subr.bf16.mxu0 0
        %1336 = vmatpush1.bf16.xpose.msra.mxu0 0
        %1337 = vmatprep.subr.bf16.mxu0 0
        %1338 = vmatpush1.bf16.xpose.msra.mxu0 0
        %1339 = vmatprep.subr.bf16.mxu0 0
        %1340 = vmatpush1.bf16.xpose.msra.mxu0 0
        %1341 = vmatprep.subr.bf16.mxu0 0
        %1342 = vmatpush1.bf16.xpose.msra.mxu0 0
        %1343 = vmatprep.subr.bf16.mxu0 0
        %1344 = vmatpush1.bf16.xpose.msra.mxu0 0
        %1345 = vmatprep.subr.bf16.mxu0 0
        %1346 = vmatpush1.bf16.xpose.msra.mxu0 0
        %1347 = vmatprep.subr.bf16.mxu0 0
        %1348 = vmatpush1.bf16.xpose.msra.mxu0 0
        %1349 = vmatprep.subr.bf16.mxu0 0
        %1350 = vmatpush1.bf16.xpose.msra.mxu0 0
        %1351 = vmatprep.subr.bf16.mxu0 0
        %1352 = vmatpush1.bf16.xpose.msra.mxu0 0
        %1353 = vmatprep.subr.bf16.mxu0 0
        %1354 = vmatpush1.bf16.xpose.msra.mxu0 0
        %1355 = vmatprep.subr.bf16.mxu0 0
        %1356 = vmatpush1.bf16.xpose.msra.mxu0 0
        %1357 = vmatprep.mubr.bf16.mxu0 0
        %1358 = vmatmul.mubr.bf16.gmra.mrb[0].mxu0 %v1320
        %v1359 = vpop.f32.mrb[0].mxu0
        %v1360 = vadd.f32 0.0, %v1359
        %v1361 = vpop.f32.mrb[0].mxu0
        %v1362 = vpop.f32.mrb[0].mxu0
        %v1363 = vpop.f32.mrb[0].mxu0
        %1364 = vdwg.mxu0
        %v1365 = vmul.f32 %v1360, 0.25
        %v1367 = vlaneseq
        %v1368 = vshrl.u32 %v1367, 7
        %v1369 = vsub.s32 0, %v1368
        %v1370 = vrot.slane %v1121, %v1369
        %v1372 = vadd.f32 %v1365, %v1370
        %vm1373 = vcmask 64512
        %v1374 = vsel %vm1373, %v1372, -inf
        %1375 = vmax.xlane.f32.xlu0 %v1374
        %v1376 = vpop.xlane.xlu0 %1375
        %v1377 = vsub.f32 %v1372, %v1376
        %v1378 = vmul.f32 %v1377, 1.442695
        %v1379 = vpow.pop %v1378
        %v1380 = vsel %vm1373, %v1379, 0.0
        %1381 = vadd.xlane.f32.xlu0 %v1380
        %v1382 = vpop.xlane.xlu0 %1381
        %v1383 = vrcp.pop %v1382
        %v1384 = vmul.f32 %v1379, %v1383
        %v1385 = vpack.c.bf16 %v1384, %v1384
        %v1386 = vpack.c.bf16 %v1311, %v1311
        %v1388 = vsel %vm1373, %v1385, 0
        %vm1390 = vcmask 1043456
        %v1392 = vsel %vm1390, %v1386, 0
        %1394 = vmatprep.subr.bf16.mxu0 0
        %1395 = vmatpush1.bf16.msra.mxu0 %v1392
        %1396 = vmatprep.subr.bf16.mxu0 0
        %1397 = vmatpush1.bf16.msra.mxu0 0
        %1398 = vmatprep.subr.bf16.mxu0 0
        %1399 = vmatpush1.bf16.msra.mxu0 0
        %1400 = vmatprep.subr.bf16.mxu0 0
        %1401 = vmatpush1.bf16.msra.mxu0 0
        %1402 = vmatprep.subr.bf16.mxu0 0
        %1403 = vmatpush1.bf16.msra.mxu0 0
        %1404 = vmatprep.subr.bf16.mxu0 0
        %1405 = vmatpush1.bf16.msra.mxu0 0
        %1406 = vmatprep.subr.bf16.mxu0 0
        %1407 = vmatpush1.bf16.msra.mxu0 0
        %1408 = vmatprep.subr.bf16.mxu0 0
        %1409 = vmatpush1.bf16.msra.mxu0 0
        %1410 = vmatprep.subr.bf16.mxu0 0
        %1411 = vmatpush1.bf16.msra.mxu0 0
        %1412 = vmatprep.subr.bf16.mxu0 0
        %1413 = vmatpush1.bf16.msra.mxu0 0
        %1414 = vmatprep.subr.bf16.mxu0 0
        %1415 = vmatpush1.bf16.msra.mxu0 0
        %1416 = vmatprep.subr.bf16.mxu0 0
        %1417 = vmatpush1.bf16.msra.mxu0 0
        %1418 = vmatprep.subr.bf16.mxu0 0
        %1419 = vmatpush1.bf16.msra.mxu0 0
        %1420 = vmatprep.subr.bf16.mxu0 0
        %1421 = vmatpush1.bf16.msra.mxu0 0
        %1422 = vmatprep.subr.bf16.mxu0 0
        %1423 = vmatpush1.bf16.msra.mxu0 0
        %1424 = vmatprep.subr.bf16.mxu0 0
        %1425 = vmatpush1.bf16.msra.mxu0 0
        %1426 = vmatprep.mubr.bf16.mxu0 0
        %1427 = vmatmul.mubr.bf16.gmra.mrb[0].mxu0 %v1388
        %v1428 = vpop.f32.mrb[0].mxu0
        %v1429 = vadd.f32 0.0, %v1428
        %v1430 = vpop.f32.mrb[0].mxu0
        %v1431 = vpop.f32.mrb[0].mxu0
        %v1432 = vpop.f32.mrb[0].mxu0
        %1433 = vdwg.mxu0
        %s1434 = scalar_lea.vmem %s1023, 16
        %v1435 = vld [vmem:[%s1434] sm:$0xf]
        %v1436 = vld [vmem:[%s1434 + $0x4] sm:$0xf]
        %v1437 = vld [vmem:[%s1434 + $0x8] sm:$0xf]
        %v1438 = vld [vmem:[%s1434 + $0xc] sm:$0xf]
        %s1439 = scalar_lea.vmem %s1037, 1
        %v1440 = vld [vmem:[%s1439] sm:$0x1]
        %v1442 = vlaneseq
        %v1443 = vshrl.u32 %v1442, 7
        %v1444 = vsub.s32 0, %v1443
        %v1445 = vrot.slane %v1440, %v1444
        %v1451 = vunpack.c.l.b16 %v1435
        %v1452 = vunpack.c.l.b16 %v1436
        %v1453 = vunpack.c.l.b16 %v1437
        %v1454 = vunpack.c.l.b16 %v1438
        %v1455 = vpack.c.b16 %v1452, %v1451
        %v1456 = vpack.c.b16 %v1454, %v1453
        %1459 = vmatprep.subr.bf16.mxu0 0
        %1460 = vmatpush1.bf16.msra.mxu0 %v1455
        %1461 = vmatprep.subr.bf16.mxu0 0
        %1462 = vmatpush1.bf16.msra.mxu0 %v1456
        %1463 = vmatprep.subr.bf16.mxu0 0
        %1464 = vmatpush1.bf16.msra.mxu0 0
        %1465 = vmatprep.subr.bf16.mxu0 0
        %1466 = vmatpush1.bf16.msra.mxu0 0
        %1467 = vmatprep.subr.bf16.mxu0 0
        %1468 = vmatpush1.bf16.msra.mxu0 0
        %1469 = vmatprep.subr.bf16.mxu0 0
        %1470 = vmatpush1.bf16.msra.mxu0 0
        %1471 = vmatprep.subr.bf16.mxu0 0
        %1472 = vmatpush1.bf16.msra.mxu0 0
        %1473 = vmatprep.subr.bf16.mxu0 0
        %1474 = vmatpush1.bf16.msra.mxu0 0
        %1475 = vmatprep.subr.bf16.mxu0 0
        %1476 = vmatpush1.bf16.msra.mxu0 0
        %1477 = vmatprep.subr.bf16.mxu0 0
        %1478 = vmatpush1.bf16.msra.mxu0 0
        %1479 = vmatprep.subr.bf16.mxu0 0
        %1480 = vmatpush1.bf16.msra.mxu0 0
        %1481 = vmatprep.subr.bf16.mxu0 0
        %1482 = vmatpush1.bf16.msra.mxu0 0
        %1483 = vmatprep.subr.bf16.mxu0 0
        %1484 = vmatpush1.bf16.msra.mxu0 0
        %1485 = vmatprep.subr.bf16.mxu0 0
        %1486 = vmatpush1.bf16.msra.mxu0 0
        %1487 = vmatprep.subr.bf16.mxu0 0
        %1488 = vmatpush1.bf16.msra.mxu0 0
        %1489 = vmatprep.subr.bf16.mxu0 0
        %1490 = vmatpush1.bf16.msra.mxu0 0
        %1491 = vmatprep.mubr.bf16.mxu0 0
        %1492 = vmatmul.mubr.bf16.gmra.mrb[0].mxu0 %v1148
        %v1493 = vpop.f32.mrb[0].mxu0
        %v1494 = vadd.f32 %v1445, %v1493
        %v1495 = vpop.f32.mrb[0].mxu0
        %v1496 = vpop.f32.mrb[0].mxu0
        %v1497 = vpop.f32.mrb[0].mxu0
        %1498 = vdwg.mxu0
        %s1499 = scalar_lea.vmem %s1028, 16
        %v1500 = vld [vmem:[%s1499] sm:$0xf]
        %v1501 = vld [vmem:[%s1499 + $0x4] sm:$0xf]
        %v1502 = vld [vmem:[%s1499 + $0x8] sm:$0xf]
        %v1503 = vld [vmem:[%s1499 + $0xc] sm:$0xf]
        %s1504 = scalar_lea.vmem %s1041, 1
        %v1505 = vld [vmem:[%s1504] sm:$0x1]
        %v1507 = vlaneseq
        %v1508 = vshrl.u32 %v1507, 7
        %v1509 = vsub.s32 0, %v1508
        %v1510 = vrot.slane %v1505, %v1509
        %v1516 = vunpack.c.l.b16 %v1500
        %v1517 = vunpack.c.l.b16 %v1501
        %v1518 = vunpack.c.l.b16 %v1502
        %v1519 = vunpack.c.l.b16 %v1503
        %v1520 = vpack.c.b16 %v1517, %v1516
        %v1521 = vpack.c.b16 %v1519, %v1518
        %1524 = vmatprep.subr.bf16.mxu0 0
        %1525 = vmatpush1.bf16.msra.mxu0 %v1520
        %1526 = vmatprep.subr.bf16.mxu0 0
        %1527 = vmatpush1.bf16.msra.mxu0 %v1521
        %1528 = vmatprep.subr.bf16.mxu0 0
        %1529 = vmatpush1.bf16.msra.mxu0 0
        %1530 = vmatprep.subr.bf16.mxu0 0
        %1531 = vmatpush1.bf16.msra.mxu0 0
        %1532 = vmatprep.subr.bf16.mxu0 0
        %1533 = vmatpush1.bf16.msra.mxu0 0
        %1534 = vmatprep.subr.bf16.mxu0 0
        %1535 = vmatpush1.bf16.msra.mxu0 0
        %1536 = vmatprep.subr.bf16.mxu0 0
        %1537 = vmatpush1.bf16.msra.mxu0 0
        %1538 = vmatprep.subr.bf16.mxu0 0
        %1539 = vmatpush1.bf16.msra.mxu0 0
        %1540 = vmatprep.subr.bf16.mxu0 0
        %1541 = vmatpush1.bf16.msra.mxu0 0
        %1542 = vmatprep.subr.bf16.mxu0 0
        %1543 = vmatpush1.bf16.msra.mxu0 0
        %1544 = vmatprep.subr.bf16.mxu0 0
        %1545 = vmatpush1.bf16.msra.mxu0 0
        %1546 = vmatprep.subr.bf16.mxu0 0
        %1547 = vmatpush1.bf16.msra.mxu0 0
        %1548 = vmatprep.subr.bf16.mxu0 0
        %1549 = vmatpush1.bf16.msra.mxu0 0
        %1550 = vmatprep.subr.bf16.mxu0 0
        %1551 = vmatpush1.bf16.msra.mxu0 0
        %1552 = vmatprep.subr.bf16.mxu0 0
        %1553 = vmatpush1.bf16.msra.mxu0 0
        %1554 = vmatprep.subr.bf16.mxu0 0
        %1555 = vmatpush1.bf16.msra.mxu0 0
        %1556 = vmatprep.mubr.bf16.mxu0 0
        %1557 = vmatmul.mubr.bf16.gmra.mrb[0].mxu0 %v1148
        %v1558 = vpop.f32.mrb[0].mxu0
        %v1559 = vadd.f32 %v1510, %v1558
        %v1560 = vpop.f32.mrb[0].mxu0
        %v1561 = vpop.f32.mrb[0].mxu0
        %v1562 = vpop.f32.mrb[0].mxu0
        %1563 = vdwg.mxu0
        %s1564 = scalar_lea.vmem %s1033, 16
        %v1565 = vld [vmem:[%s1564] sm:$0xf]
        %v1566 = vld [vmem:[%s1564 + $0x4] sm:$0xf]
        %v1567 = vld [vmem:[%s1564 + $0x8] sm:$0xf]
        %v1568 = vld [vmem:[%s1564 + $0xc] sm:$0xf]
        %s1569 = scalar_lea.vmem %s1045, 1
        %v1570 = vld [vmem:[%s1569] sm:$0x1]
        %v1572 = vlaneseq
        %v1573 = vshrl.u32 %v1572, 7
        %v1574 = vsub.s32 0, %v1573
        %v1575 = vrot.slane %v1570, %v1574
        %v1581 = vunpack.c.l.b16 %v1565
        %v1582 = vunpack.c.l.b16 %v1566
        %v1583 = vunpack.c.l.b16 %v1567
        %v1584 = vunpack.c.l.b16 %v1568
        %v1585 = vpack.c.b16 %v1582, %v1581
        %v1586 = vpack.c.b16 %v1584, %v1583
        %1589 = vmatprep.subr.bf16.mxu0 0
        %1590 = vmatpush1.bf16.msra.mxu0 %v1585
        %1591 = vmatprep.subr.bf16.mxu0 0
        %1592 = vmatpush1.bf16.msra.mxu0 %v1586
        %1593 = vmatprep.subr.bf16.mxu0 0
        %1594 = vmatpush1.bf16.msra.mxu0 0
        %1595 = vmatprep.subr.bf16.mxu0 0
        %1596 = vmatpush1.bf16.msra.mxu0 0
        %1597 = vmatprep.subr.bf16.mxu0 0
        %1598 = vmatpush1.bf16.msra.mxu0 0
        %1599 = vmatprep.subr.bf16.mxu0 0
        %1600 = vmatpush1.bf16.msra.mxu0 0
        %1601 = vmatprep.subr.bf16.mxu0 0
        %1602 = vmatpush1.bf16.msra.mxu0 0
        %1603 = vmatprep.subr.bf16.mxu0 0
        %1604 = vmatpush1.bf16.msra.mxu0 0
        %1605 = vmatprep.subr.bf16.mxu0 0
        %1606 = vmatpush1.bf16.msra.mxu0 0
        %1607 = vmatprep.subr.bf16.mxu0 0
        %1608 = vmatpush1.bf16.msra.mxu0 0
        %1609 = vmatprep.subr.bf16.mxu0 0
        %1610 = vmatpush1.bf16.msra.mxu0 0
        %1611 = vmatprep.subr.bf16.mxu0 0
        %1612 = vmatpush1.bf16.msra.mxu0 0
        %1613 = vmatprep.subr.bf16.mxu0 0
        %1614 = vmatpush1.bf16.msra.mxu0 0
        %1615 = vmatprep.subr.bf16.mxu0 0
        %1616 = vmatpush1.bf16.msra.mxu0 0
        %1617 = vmatprep.subr.bf16.mxu0 0
        %1618 = vmatpush1.bf16.msra.mxu0 0
        %1619 = vmatprep.subr.bf16.mxu0 0
        %1620 = vmatpush1.bf16.msra.mxu0 0
        %1621 = vmatprep.mubr.bf16.mxu0 0
        %1622 = vmatmul.mubr.bf16.gmra.mrb[0].mxu0 %v1148
        %v1623 = vpop.f32.mrb[0].mxu0
        %v1624 = vadd.f32 %v1575, %v1623
        %v1625 = vpop.f32.mrb[0].mxu0
        %v1626 = vpop.f32.mrb[0].mxu0
        %v1627 = vpop.f32.mrb[0].mxu0
        %1628 = vdwg.mxu0
        %v1629 = vpack.c.bf16 %v1494, %v1494
        %v1630 = vpack.c.bf16 %v1559, %v1559
        %v1632 = vsel %vm1318, %v1629, 0
        %v1635 = vsel %vm1318, %v1630, 0
        %1637 = vmatprep.subr.bf16.mxu0 0
        %1638 = vmatpush1.bf16.xpose.msra.mxu0 %v1635
        %1639 = vmatprep.subr.bf16.mxu0 0
        %1640 = vmatpush1.bf16.xpose.msra.mxu0 0
        %1641 = vmatprep.subr.bf16.mxu0 0
        %1642 = vmatpush1.bf16.xpose.msra.mxu0 0
        %1643 = vmatprep.subr.bf16.mxu0 0
        %1644 = vmatpush1.bf16.xpose.msra.mxu0 0
        %1645 = vmatprep.subr.bf16.mxu0 0
        %1646 = vmatpush1.bf16.xpose.msra.mxu0 0
        %1647 = vmatprep.subr.bf16.mxu0 0
        %1648 = vmatpush1.bf16.xpose.msra.mxu0 0
        %1649 = vmatprep.subr.bf16.mxu0 0
        %1650 = vmatpush1.bf16.xpose.msra.mxu0 0
        %1651 = vmatprep.subr.bf16.mxu0 0
        %1652 = vmatpush1.bf16.xpose.msra.mxu0 0
        %1653 = vmatprep.subr.bf16.mxu0 0
        %1654 = vmatpush1.bf16.xpose.msra.mxu0 0
        %1655 = vmatprep.subr.bf16.mxu0 0
        %1656 = vmatpush1.bf16.xpose.msra.mxu0 0
        %1657 = vmatprep.subr.bf16.mxu0 0
        %1658 = vmatpush1.bf16.xpose.msra.mxu0 0
        %1659 = vmatprep.subr.bf16.mxu0 0
        %1660 = vmatpush1.bf16.xpose.msra.mxu0 0
        %1661 = vmatprep.subr.bf16.mxu0 0
        %1662 = vmatpush1.bf16.xpose.msra.mxu0 0
        %1663 = vmatprep.subr.bf16.mxu0 0
        %1664 = vmatpush1.bf16.xpose.msra.mxu0 0
        %1665 = vmatprep.subr.bf16.mxu0 0
        %1666 = vmatpush1.bf16.xpose.msra.mxu0 0
        %1667 = vmatprep.subr.bf16.mxu0 0
        %1668 = vmatpush1.bf16.xpose.msra.mxu0 0
        %1669 = vmatprep.mubr.bf16.mxu0 0
        %1670 = vmatmul.mubr.bf16.gmra.mrb[0].mxu0 %v1632
        %v1671 = vpop.f32.mrb[0].mxu0
        %v1672 = vadd.f32 0.0, %v1671
        %v1673 = vpop.f32.mrb[0].mxu0
        %v1674 = vpop.f32.mrb[0].mxu0
        %v1675 = vpop.f32.mrb[0].mxu0
        %1676 = vdwg.mxu0
        %v1677 = vmul.f32 %v1672, 0.25
        %v1678 = vadd.f32 %v1677, %v1370
        %v1679 = vsel %vm1373, %v1678, -inf
        %1680 = vmax.xlane.f32.xlu0 %v1679
        %v1681 = vpop.xlane.xlu0 %1680
        %v1682 = vsub.f32 %v1678, %v1681
        %v1683 = vmul.f32 %v1682, 1.442695
        %v1684 = vpow.pop %v1683
        %v1685 = vsel %vm1373, %v1684, 0.0
        %1686 = vadd.xlane.f32.xlu0 %v1685
        %v1687 = vpop.xlane.xlu0 %1686
        %v1688 = vrcp.pop %v1687
        %v1689 = vmul.f32 %v1684, %v1688
        %v1690 = vpack.c.bf16 %v1689, %v1689
        %v1691 = vpack.c.bf16 %v1624, %v1624
        %v1693 = vsel %vm1373, %v1690, 0
        %v1696 = vsel %vm1390, %v1691, 0
        %1698 = vmatprep.subr.bf16.mxu0 0
        %1699 = vmatpush1.bf16.msra.mxu0 %v1696
        %1700 = vmatprep.subr.bf16.mxu0 0
        %1701 = vmatpush1.bf16.msra.mxu0 0
        %1702 = vmatprep.subr.bf16.mxu0 0
        %1703 = vmatpush1.bf16.msra.mxu0 0
        %1704 = vmatprep.subr.bf16.mxu0 0
        %1705 = vmatpush1.bf16.msra.mxu0 0
        %1706 = vmatprep.subr.bf16.mxu0 0
        %1707 = vmatpush1.bf16.msra.mxu0 0
        %1708 = vmatprep.subr.bf16.mxu0 0
        %1709 = vmatpush1.bf16.msra.mxu0 0
        %1710 = vmatprep.subr.bf16.mxu0 0
        %1711 = vmatpush1.bf16.msra.mxu0 0
        %1712 = vmatprep.subr.bf16.mxu0 0
        %1713 = vmatpush1.bf16.msra.mxu0 0
        %1714 = vmatprep.subr.bf16.mxu0 0
        %1715 = vmatpush1.bf16.msra.mxu0 0
        %1716 = vmatprep.subr.bf16.mxu0 0
        %1717 = vmatpush1.bf16.msra.mxu0 0
        %1718 = vmatprep.subr.bf16.mxu0 0
        %1719 = vmatpush1.bf16.msra.mxu0 0
        %1720 = vmatprep.subr.bf16.mxu0 0
        %1721 = vmatpush1.bf16.msra.mxu0 0
        %1722 = vmatprep.subr.bf16.mxu0 0
        %1723 = vmatpush1.bf16.msra.mxu0 0
        %1724 = vmatprep.subr.bf16.mxu0 0
        %1725 = vmatpush1.bf16.msra.mxu0 0
        %1726 = vmatprep.subr.bf16.mxu0 0
        %1727 = vmatpush1.bf16.msra.mxu0 0
        %1728 = vmatprep.subr.bf16.mxu0 0
        %1729 = vmatpush1.bf16.msra.mxu0 0
        %1730 = vmatprep.mubr.bf16.mxu0 0
        %1731 = vmatmul.mubr.bf16.gmra.mrb[0].mxu0 %v1693
        %v1732 = vpop.f32.mrb[0].mxu0
        %v1733 = vadd.f32 0.0, %v1732
        %v1734 = vpop.f32.mrb[0].mxu0
        %v1735 = vpop.f32.mrb[0].mxu0
        %v1736 = vpop.f32.mrb[0].mxu0
        %1737 = vdwg.mxu0
        %1739 = vrot.lane.b32.xlu0 %v1733, 16
        %v1740 = vpop.permute.xlu0 %1739
        %v1742 = vsel %vm1318, %v1429, %v1740
        %v1743 = vpack.c.bf16 %v1742, %v1742
        %v1744 = vld [vmem:[%s1050] sm:$0xf]
        %v1745 = vld [vmem:[%s1050 + $0x4] sm:$0xf]
        %v1746 = vld [vmem:[%s1050 + $0x8] sm:$0xf]
        %v1747 = vld [vmem:[%s1050 + $0xc] sm:$0xf]
        %v1748 = vld [vmem:[%s1053] sm:$0x1]
        %v1750 = vlaneseq
        %v1751 = vshrl.u32 %v1750, 7
        %v1752 = vsub.s32 0, %v1751
        %v1753 = vrot.slane %v1748, %v1752
        %v1759 = vunpack.c.l.b16 %v1744
        %v1760 = vunpack.c.l.b16 %v1745
        %v1761 = vunpack.c.l.b16 %v1746
        %v1762 = vunpack.c.l.b16 %v1747
        %v1763 = vpack.c.b16 %v1760, %v1759
        %v1764 = vpack.c.b16 %v1762, %v1761
        %v1768 = vsel %vm1146, %v1743, 0
        %1770 = vmatprep.subr.bf16.mxu0 0
        %1771 = vmatpush1.bf16.msra.mxu0 %v1763
        %1772 = vmatprep.subr.bf16.mxu0 0
        %1773 = vmatpush1.bf16.msra.mxu0 %v1764
        %1774 = vmatprep.subr.bf16.mxu0 0
        %1775 = vmatpush1.bf16.msra.mxu0 0
        %1776 = vmatprep.subr.bf16.mxu0 0
        %1777 = vmatpush1.bf16.msra.mxu0 0
        %1778 = vmatprep.subr.bf16.mxu0 0
        %1779 = vmatpush1.bf16.msra.mxu0 0
        %1780 = vmatprep.subr.bf16.mxu0 0
        %1781 = vmatpush1.bf16.msra.mxu0 0
        %1782 = vmatprep.subr.bf16.mxu0 0
        %1783 = vmatpush1.bf16.msra.mxu0 0
        %1784 = vmatprep.subr.bf16.mxu0 0
        %1785 = vmatpush1.bf16.msra.mxu0 0
        %1786 = vmatprep.subr.bf16.mxu0 0
        %1787 = vmatpush1.bf16.msra.mxu0 0
        %1788 = vmatprep.subr.bf16.mxu0 0
        %1789 = vmatpush1.bf16.msra.mxu0 0
        %1790 = vmatprep.subr.bf16.mxu0 0
        %1791 = vmatpush1.bf16.msra.mxu0 0
        %1792 = vmatprep.subr.bf16.mxu0 0
        %1793 = vmatpush1.bf16.msra.mxu0 0
        %1794 = vmatprep.subr.bf16.mxu0 0
        %1795 = vmatpush1.bf16.msra.mxu0 0
        %1796 = vmatprep.subr.bf16.mxu0 0
        %1797 = vmatpush1.bf16.msra.mxu0 0
        %1798 = vmatprep.subr.bf16.mxu0 0
        %1799 = vmatpush1.bf16.msra.mxu0 0
        %1800 = vmatprep.subr.bf16.mxu0 0
        %1801 = vmatpush1.bf16.msra.mxu0 0
        %1802 = vmatprep.mubr.bf16.mxu0 0
        %1803 = vmatmul.mubr.bf16.gmra.mrb[0].mxu0 %v1768
        %v1804 = vpop.f32.mrb[0].mxu0
        %v1805 = vadd.f32 %v1753, %v1804
        %v1806 = vpop.f32.mrb[0].mxu0
        %v1807 = vpop.f32.mrb[0].mxu0
        %v1808 = vpop.f32.mrb[0].mxu0
        %1809 = vdwg.mxu0
        %v1810 = vadd.f32 %v1805, %v1120
        %v1811 = vld [vmem:[%s1056] sm:$0x1]
        %v1812 = vld [vmem:[%s1059] sm:$0x1]
        %v1813 = vsel %vm1146, %v1810, 0.0
        %1814 = vadd.xlane.f32.xlu0 %v1813
        %v1815 = vpop.xlane.xlu0 %1814
        %v1816 = vrcp.pop 32.0
        %v1817 = vmul.f32 %v1815, %v1816
        %v1818 = vsub.f32 %v1810, %v1817
        %v1819 = vmul.f32 %v1818, %v1818
        %v1820 = vsel %vm1146, %v1819, 0.0
        %1821 = vadd.xlane.f32.xlu0 %v1820
        %v1822 = vpop.xlane.xlu0 %1821
        %v1823 = vmul.f32 %v1822, %v1816
        %v1824 = vadd.f32 %v1823, 1e-12
        %v1825 = vrsqrt.pop %v1824
        %v1826 = vmul.f32 %v1818, %v1825
        %v1828 = vlaneseq
        %v1829 = vshrl.u32 %v1828, 7
        %v1830 = vsub.s32 0, %v1829
        %v1831 = vrot.slane %v1811, %v1830
        %v1833 = vmul.f32 %v1826, %v1831
        %v1835 = vlaneseq
        %v1836 = vshrl.u32 %v1835, 7
        %v1837 = vsub.s32 0, %v1836
        %v1838 = vrot.slane %v1812, %v1837
        %v1840 = vadd.f32 %v1833, %v1838
        %v1841 = vpack.c.bf16 %v1840, %v1840
        %v1842 = vld [vmem:[%s1064] sm:$0xf]
        %v1843 = vld [vmem:[%s1064 + $0x4] sm:$0xf]
        %v1844 = vld [vmem:[%s1064 + $0x8] sm:$0xf]
        %v1845 = vld [vmem:[%s1064 + $0xc] sm:$0xf]
        %v1846 = vld [vmem:[%s1067] sm:$0x1]
        %v1848 = vlaneseq
        %v1849 = vshrl.u32 %v1848, 7
        %v1850 = vsub.s32 0, %v1849
        %v1851 = vrot.slane %v1846, %v1850
        %v1857 = vunpack.c.l.b16 %v1842
        %v1858 = vunpack.c.l.b16 %v1843
        %v1859 = vunpack.c.l.b16 %v1844
        %v1860 = vunpack.c.l.b16 %v1845
        %v1861 = vpack.c.b16 %v1858, %v1857
        %v1862 = vpack.c.b16 %v1860, %v1859
        %v1866 = vsel %vm1146, %v1841, 0
        %1868 = vmatprep.subr.bf16.mxu0 0
        %1869 = vmatpush1.bf16.msra.mxu0 %v1861
        %1870 = vmatprep.subr.bf16.mxu0 0
        %1871 = vmatpush1.bf16.msra.mxu0 %v1862
        %1872 = vmatprep.subr.bf16.mxu0 0
        %1873 = vmatpush1.bf16.msra.mxu0 0
        %1874 = vmatprep.subr.bf16.mxu0 0
        %1875 = vmatpush1.bf16.msra.mxu0 0
        %1876 = vmatprep.subr.bf16.mxu0 0
        %1877 = vmatpush1.bf16.msra.mxu0 0
        %1878 = vmatprep.subr.bf16.mxu0 0
        %1879 = vmatpush1.bf16.msra.mxu0 0
        %1880 = vmatprep.subr.bf16.mxu0 0
        %1881 = vmatpush1.bf16.msra.mxu0 0
        %1882 = vmatprep.subr.bf16.mxu0 0
        %1883 = vmatpush1.bf16.msra.mxu0 0
        %1884 = vmatprep.subr.bf16.mxu0 0
        %1885 = vmatpush1.bf16.msra.mxu0 0
        %1886 = vmatprep.subr.bf16.mxu0 0
        %1887 = vmatpush1.bf16.msra.mxu0 0
        %1888 = vmatprep.subr.bf16.mxu0 0
        %1889 = vmatpush1.bf16.msra.mxu0 0
        %1890 = vmatprep.subr.bf16.mxu0 0
        %1891 = vmatpush1.bf16.msra.mxu0 0
        %1892 = vmatprep.subr.bf16.mxu0 0
        %1893 = vmatpush1.bf16.msra.mxu0 0
        %1894 = vmatprep.subr.bf16.mxu0 0
        %1895 = vmatpush1.bf16.msra.mxu0 0
        %1896 = vmatprep.subr.bf16.mxu0 0
        %1897 = vmatpush1.bf16.msra.mxu0 0
        %1898 = vmatprep.subr.bf16.mxu0 0
        %1899 = vmatpush1.bf16.msra.mxu0 0
        %1900 = vmatprep.mubr.bf16.mxu0 0
        %1901 = vmatmul.mubr.bf16.gmra.mrb[0].mxu0 %v1866
        %v1902 = vpop.f32.mrb[0].mxu0
        %v1903 = vadd.f32 %v1851, %v1902
        %v1904 = vpop.f32.mrb[0].mxu0
        %v1905 = vpop.f32.mrb[0].mxu0
        %v1906 = vpop.f32.mrb[0].mxu0
        %1907 = vdwg.mxu0
        %v1908 = vmul.f32 %v1903, %v1903
        %v1909 = vmul.f32 %v1903, %v1908
        %v1910 = vmul.f32 %v1909, 0.044715
        %v1911 = vadd.f32 %v1903, %v1910
        %v1912 = vmul.f32 %v1911, 0.7978846
        %v1913 = vtanh.pop %v1912
        %v1914 = vadd.f32 %v1913, 1.0
        %v1915 = vmul.f32 %v1914, 0.5
        %v1916 = vmul.f32 %v1903, %v1915
        %v1917 = vpack.c.bf16 %v1916, %v1916
        %v1918 = vld [vmem:[%s1072] sm:$0xf]
        %v1919 = vld [vmem:[%s1072 + $0x4] sm:$0xf]
        %v1920 = vld [vmem:[%s1072 + $0x8] sm:$0xf]
        %v1921 = vld [vmem:[%s1072 + $0xc] sm:$0xf]
        %v1922 = vld [vmem:[%s1072 + $0x10] sm:$0xf]
        %v1923 = vld [vmem:[%s1072 + $0x14] sm:$0xf]
        %v1924 = vld [vmem:[%s1072 + $0x18] sm:$0xf]
        %v1925 = vld [vmem:[%s1072 + $0x1c] sm:$0xf]
        %v1926 = vld [vmem:[%s1075] sm:$0x1]
        %v1928 = vlaneseq
        %v1929 = vshrl.u32 %v1928, 7
        %v1930 = vsub.s32 0, %v1929
        %v1931 = vrot.slane %v1926, %v1930
        %v1941 = vunpack.c.l.b16 %v1918
        %v1942 = vunpack.c.l.b16 %v1919
        %v1943 = vunpack.c.l.b16 %v1920
        %v1944 = vunpack.c.l.b16 %v1921
        %v1945 = vunpack.c.l.b16 %v1922
        %v1946 = vunpack.c.l.b16 %v1923
        %v1947 = vunpack.c.l.b16 %v1924
        %v1948 = vunpack.c.l.b16 %v1925
        %v1949 = vpack.c.b16 %v1942, %v1941
        %v1950 = vpack.c.b16 %v1944, %v1943
        %v1951 = vpack.c.b16 %v1946, %v1945
        %v1952 = vpack.c.b16 %v1948, %v1947
        %vm1957 = vcmask 523264
        %v1959 = vsel %vm1957, %v1917, 0
        %1961 = vmatprep.subr.bf16.mxu0 0
        %1962 = vmatpush1.bf16.msra.mxu0 %v1949
        %1963 = vmatprep.subr.bf16.mxu0 0
        %1964 = vmatpush1.bf16.msra.mxu0 %v1950
        %1965 = vmatprep.subr.bf16.mxu0 0
        %1966 = vmatpush1.bf16.msra.mxu0 %v1951
        %1967 = vmatprep.subr.bf16.mxu0 0
        %1968 = vmatpush1.bf16.msra.mxu0 %v1952
        %1969 = vmatprep.subr.bf16.mxu0 0
        %1970 = vmatpush1.bf16.msra.mxu0 0
        %1971 = vmatprep.subr.bf16.mxu0 0
        %1972 = vmatpush1.bf16.msra.mxu0 0
        %1973 = vmatprep.subr.bf16.mxu0 0
        %1974 = vmatpush1.bf16.msra.mxu0 0
        %1975 = vmatprep.subr.bf16.mxu0 0
        %1976 = vmatpush1.bf16.msra.mxu0 0
        %1977 = vmatprep.subr.bf16.mxu0 0
        %1978 = vmatpush1.bf16.msra.mxu0 0
        %1979 = vmatprep.subr.bf16.mxu0 0
        %1980 = vmatpush1.bf16.msra.mxu0 0
        %1981 = vmatprep.subr.bf16.mxu0 0
        %1982 = vmatpush1.bf16.msra.mxu0 0
        %1983 = vmatprep.subr.bf16.mxu0 0
        %1984 = vmatpush1.bf16.msra.mxu0 0
        %1985 = vmatprep.subr.bf16.mxu0 0
        %1986 = vmatpush1.bf16.msra.mxu0 0
        %1987 = vmatprep.subr.bf16.mxu0 0
        %1988 = vmatpush1.bf16.msra.mxu0 0
        %1989 = vmatprep.subr.bf16.mxu0 0
        %1990 = vmatpush1.bf16.msra.mxu0 0
        %1991 = vmatprep.subr.bf16.mxu0 0
        %1992 = vmatpush1.bf16.msra.mxu0 0
        %1993 = vmatprep.mubr.bf16.mxu0 0
        %1994 = vmatmul.mubr.bf16.gmra.mrb[0].mxu0 %v1959
        %v1995 = vpop.f32.mrb[0].mxu0
        %v1996 = vadd.f32 %v1931, %v1995
        %v1997 = vpop.f32.mrb[0].mxu0
        %v1998 = vpop.f32.mrb[0].mxu0
        %v1999 = vpop.f32.mrb[0].mxu0
        %2000 = vdwg.mxu0
        %v2001 = vadd.f32 %v1996, %v1840
        %v2002 = vld [vmem:[%s1078] sm:$0x1]
        %v2003 = vld [vmem:[%s1081] sm:$0x1]
        %v2004 = vsel %vm1146, %v2001, 0.0
        %2005 = vadd.xlane.f32.xlu0 %v2004
        %v2006 = vpop.xlane.xlu0 %2005
        %v2007 = vmul.f32 %v2006, %v1816
        %v2008 = vsub.f32 %v2001, %v2007
        %v2009 = vmul.f32 %v2008, %v2008
        %v2010 = vsel %vm1146, %v2009, 0.0
        %2011 = vadd.xlane.f32.xlu0 %v2010
        %v2012 = vpop.xlane.xlu0 %2011
        %v2013 = vmul.f32 %v2012, %v1816
        %v2014 = vadd.f32 %v2013, 1e-12
        %v2015 = vrsqrt.pop %v2014
        %v2016 = vmul.f32 %v2008, %v2015
        %v2018 = vlaneseq
        %v2019 = vshrl.u32 %v2018, 7
        %v2020 = vsub.s32 0, %v2019
        %v2021 = vrot.slane %v2002, %v2020
        %v2023 = vmul.f32 %v2016, %v2021
        %v2025 = vlaneseq
        %v2026 = vshrl.u32 %v2025, 7
        %v2027 = vsub.s32 0, %v2026
        %v2028 = vrot.slane %v2003, %v2027
        %v2030 = vadd.f32 %v2023, %v2028
        %2031 = vst.msk [vmem:[#allocation2] sm:$0xff] %vm1146, %v2030
        %p2032 = scmp.eq.s32.totalorder %s45, 1
        // Predicated region
        $region129: #{custom_conditional_bert_forward.3} parent=123 // pred_check
          %p2033 = pneg %p2032
        $region130: #{custom_conditional_bert_forward.3} parent=123 // pred_check_branch
          %2035 = sbr.rel (%p2033) target = $region132
        $region131: #{custom_conditional_bert_forward.3} parent=123 // pred_region
          %v2036 = vpack.c.bf16 %v2030, %v2030
          %v2037 = vld [vmem:[%s20] sm:$0xf]
          %v2038 = vld [vmem:[%s20 + $0x4] sm:$0xf]
          %v2039 = vld [vmem:[%s20 + $0x8] sm:$0xf]
          %v2040 = vld [vmem:[%s20 + $0xc] sm:$0xf]
          %v2041 = vld [vmem:[%s21] sm:$0x1]
          %v2043 = vlaneseq
          %v2044 = vshrl.u32 %v2043, 7
          %v2045 = vsub.s32 0, %v2044
          %v2046 = vrot.slane %v2041, %v2045
          %v2052 = vunpack.c.l.b16 %v2037
          %v2053 = vunpack.c.l.b16 %v2038
          %v2054 = vunpack.c.l.b16 %v2039
          %v2055 = vunpack.c.l.b16 %v2040
          %v2056 = vpack.c.b16 %v2053, %v2052
          %v2057 = vpack.c.b16 %v2055, %v2054
          %v2061 = vsel %vm1146, %v2036, 0
          %2063 = vmatprep.subr.bf16.mxu0 0
          %2064 = vmatpush1.bf16.msra.mxu0 %v2056
          %2065 = vmatprep.subr.bf16.mxu0 0
          %2066 = vmatpush1.bf16.msra.mxu0 %v2057
          %2067 = vmatprep.subr.bf16.mxu0 0
          %2068 = vmatpush1.bf16.msra.mxu0 0
          %2069 = vmatprep.subr.bf16.mxu0 0
          %2070 = vmatpush1.bf16.msra.mxu0 0
          %2071 = vmatprep.subr.bf16.mxu0 0
          %2072 = vmatpush1.bf16.msra.mxu0 0
          %2073 = vmatprep.subr.bf16.mxu0 0
          %2074 = vmatpush1.bf16.msra.mxu0 0
          %2075 = vmatprep.subr.bf16.mxu0 0
          %2076 = vmatpush1.bf16.msra.mxu0 0
          %2077 = vmatprep.subr.bf16.mxu0 0
          %2078 = vmatpush1.bf16.msra.mxu0 0
          %2079 = vmatprep.subr.bf16.mxu0 0
          %2080 = vmatpush1.bf16.msra.mxu0 0
          %2081 = vmatprep.subr.bf16.mxu0 0
          %2082 = vmatpush1.bf16.msra.mxu0 0
          %2083 = vmatprep.subr.bf16.mxu0 0
          %2084 = vmatpush1.bf16.msra.mxu0 0
          %2085 = vmatprep.subr.bf16.mxu0 0
          %2086 = vmatpush1.bf16.msra.mxu0 0
          %2087 = vmatprep.subr.bf16.mxu0 0
          %2088 = vmatpush1.bf16.msra.mxu0 0
          %2089 = vmatprep.subr.bf16.mxu0 0
          %2090 = vmatpush1.bf16.msra.mxu0 0
          %2091 = vmatprep.subr.bf16.mxu0 0
          %2092 = vmatpush1.bf16.msra.mxu0 0
          %2093 = vmatprep.subr.bf16.mxu0 0
          %2094 = vmatpush1.bf16.msra.mxu0 0
          %2095 = vmatprep.mubr.bf16.mxu0 0
          %2096 = vmatmul.mubr.bf16.gmra.mrb[0].mxu0 %v2061
          %v2097 = vpop.f32.mrb[0].mxu0
          %v2098 = vadd.f32 %v2046, %v2097
          %v2099 = vpop.f32.mrb[0].mxu0
          %v2100 = vpop.f32.mrb[0].mxu0
          %v2101 = vpop.f32.mrb[0].mxu0
          %2102 = vdwg.mxu0
          %v2103 = vmul.f32 %v2098, %v2098
          %v2104 = vmul.f32 %v2098, %v2103
          %v2105 = vmul.f32 %v2104, 0.044715
          %v2106 = vadd.f32 %v2098, %v2105
          %v2107 = vmul.f32 %v2106, 0.7978846
          %v2108 = vtanh.pop %v2107
          %v2109 = vadd.f32 %v2108, 1.0
          %v2110 = vmul.f32 %v2109, 0.5
          %v2111 = vmul.f32 %v2098, %v2110
          %v2112 = vld [vmem:[%s22] sm:$0x1]
          %v2113 = vld [vmem:[%s23] sm:$0x1]
          %v2114 = vsel %vm1146, %v2111, 0.0
          %2115 = vadd.xlane.f32.xlu0 %v2114
          %v2116 = vpop.xlane.xlu0 %2115
          %v2117 = vmul.f32 %v2116, %v1816
          %v2118 = vsub.f32 %v2111, %v2117
          %v2119 = vmul.f32 %v2118, %v2118
          %v2120 = vsel %vm1146, %v2119, 0.0
          %2121 = vadd.xlane.f32.xlu0 %v2120
          %v2122 = vpop.xlane.xlu0 %2121
          %v2123 = vmul.f32 %v2122, %v1816
          %v2124 = vadd.f32 %v2123, 1e-12
          %v2125 = vrsqrt.pop %v2124
          %v2126 = vmul.f32 %v2118, %v2125
          %v2128 = vlaneseq
          %v2129 = vshrl.u32 %v2128, 7
          %v2130 = vsub.s32 0, %v2129
          %v2131 = vrot.slane %v2112, %v2130
          %v2133 = vmul.f32 %v2126, %v2131
          %v2135 = vlaneseq
          %v2136 = vshrl.u32 %v2135, 7
          %v2137 = vsub.s32 0, %v2136
          %v2138 = vrot.slane %v2113, %v2137
          %v2140 = vadd.f32 %v2133, %v2138
          %v2141 = vpack.c.bf16 %v2140, %v2140
          %v2142 = vld [vmem:[%s24] sm:$0xf]
          %v2143 = vld [vmem:[%s24 + $0x4] sm:$0xf]
          %v2144 = vld [vmem:[%s24 + $0x8] sm:$0xf]
          %v2145 = vld [vmem:[%s24 + $0xc] sm:$0xf]
          %v2146 = vld [vmem:[%s25] sm:$0x1]
          %v2148 = vlaneseq
          %v2149 = vshrl.u32 %v2148, 7
          %v2150 = vsub.s32 0, %v2149
          %v2151 = vrot.slane %v2146, %v2150
          %v2157 = vunpack.c.l.b16 %v2142
          %v2158 = vunpack.c.l.b16 %v2143
          %v2159 = vunpack.c.l.b16 %v2144
          %v2160 = vunpack.c.l.b16 %v2145
          %v2161 = vpack.c.b16 %v2158, %v2157
          %v2162 = vpack.c.b16 %v2160, %v2159
          %v2166 = vsel %vm1146, %v2141, 0
          %2168 = vmatprep.subr.bf16.mxu0 0
          %2169 = vmatpush1.bf16.msra.mxu0 %v2161
          %2170 = vmatprep.subr.bf16.mxu0 0
          %2171 = vmatpush1.bf16.msra.mxu0 %v2162
          %2172 = vmatprep.subr.bf16.mxu0 0
          %2173 = vmatpush1.bf16.msra.mxu0 0
          %2174 = vmatprep.subr.bf16.mxu0 0
          %2175 = vmatpush1.bf16.msra.mxu0 0
          %2176 = vmatprep.subr.bf16.mxu0 0
          %2177 = vmatpush1.bf16.msra.mxu0 0
          %2178 = vmatprep.subr.bf16.mxu0 0
          %2179 = vmatpush1.bf16.msra.mxu0 0
          %2180 = vmatprep.subr.bf16.mxu0 0
          %2181 = vmatpush1.bf16.msra.mxu0 0
          %2182 = vmatprep.subr.bf16.mxu0 0
          %2183 = vmatpush1.bf16.msra.mxu0 0
          %2184 = vmatprep.subr.bf16.mxu0 0
          %2185 = vmatpush1.bf16.msra.mxu0 0
          %2186 = vmatprep.subr.bf16.mxu0 0
          %2187 = vmatpush1.bf16.msra.mxu0 0
          %2188 = vmatprep.subr.bf16.mxu0 0
          %2189 = vmatpush1.bf16.msra.mxu0 0
          %2190 = vmatprep.subr.bf16.mxu0 0
          %2191 = vmatpush1.bf16.msra.mxu0 0
          %2192 = vmatprep.subr.bf16.mxu0 0
          %2193 = vmatpush1.bf16.msra.mxu0 0
          %2194 = vmatprep.subr.bf16.mxu0 0
          %2195 = vmatpush1.bf16.msra.mxu0 0
          %2196 = vmatprep.subr.bf16.mxu0 0
          %2197 = vmatpush1.bf16.msra.mxu0 0
          %2198 = vmatprep.subr.bf16.mxu0 0
          %2199 = vmatpush1.bf16.msra.mxu0 0
          %2200 = vmatprep.mubr.bf16.mxu0 0
          %2201 = vmatmul.mubr.bf16.gmra.mrb[0].mxu0 %v2166
          %v2202 = vpop.f32.mrb[0].mxu0
          %v2203 = vadd.f32 %v2151, %v2202
          %v2204 = vpop.f32.mrb[0].mxu0
          %v2205 = vpop.f32.mrb[0].mxu0
          %v2206 = vpop.f32.mrb[0].mxu0
          %2207 = vdwg.mxu0
          %2208 = vst [vmem:[%s1011] sm:$0xff] %v2203
        $region132: #{custom_conditional_bert_forward.3} parent=123 // pred_fallthru
          _
        %s2209 = sand.u32 %s696, 1
        %s2210 = scalar_lea.sflag [#allocation4], %s2209
        %s2211 = sand.u32 %s696, 1
        %s2212 = smul.addr %s2211, 8
        %s2213 = scalar_lea.vmem [#allocation3], %s2212
        // Predicated region
        $region133: #{custom_conditional_bert_forward.3} parent=123 // pred_check
          %p2214 = pneg %p706
        $region134: #{custom_conditional_bert_forward.3} parent=123 // pred_check_branch
          %2216 = sbr.rel (%p2214) target = $region136
        $region135: #{custom_conditional_bert_forward.3} parent=123 // pred_region
          %s2218 = ssub.s32 128, 128
          %2219 = vsyncadd %s2210, %s2218
          %s2220 = smul.addr %s44, 128
          %s2221 = scalar_lea.hbm %s26, %s2220
          %s2223 = sshll.u32 %s2213, 4
          %s2224 = int_to_ptr.vmem [resolvable:$true] %s2223
          %2226 = dma.vmem_to_hbm [thread:$0]  %s2224, 128, %s2221, %s2210
        $region136: #{custom_conditional_bert_forward.3} parent=123 // pred_fallthru
          _
      $region124: #{custom_conditional_bert_forward.3} parent=5 // pred_fallthru
        _
      %p2227 = scmp.le.s32.totalorder 2, %s35
      // Predicated region
      $region137: #{custom_conditional_bert_forward.3} parent=5 // pred_check
        %p2228 = pneg %p2227
      $region138: #{custom_conditional_bert_forward.3} parent=5 // pred_check_branch
        %2230 = sbr.rel (%p2228) target = $region140
      $region139: #{custom_conditional_bert_forward.3} parent=5 // pred_region
        %s2231 = ssub.s32 %s35, 2
        // Predicated region
        $region141: #{custom_conditional_bert_forward.3} parent=139 // pred_check
          %p2232 = pneg %p712
        $region142: #{custom_conditional_bert_forward.3} parent=139 // pred_check_branch
          %2234 = sbr.rel (%p2232) target = $region144
        $region143: #{custom_conditional_bert_forward.3} parent=139 // pred_region
          %s2235 = sand.u32 %s697, 1
          %s2236 = scalar_lea.sflag [#allocation4], %s2235
          %s2237 = sand.u32 %s697, 1
          %s2238 = smul.addr %s2237, 8
          %s2239 = scalar_lea.vmem [#allocation3], %s2238
          %2240 = dma.done %s2236, 128
        $region144: #{custom_conditional_bert_forward.3} parent=139 // pred_fallthru
          _
      $region140: #{custom_conditional_bert_forward.3} parent=5 // pred_fallthru
        _
    $region6: #{custom_conditional_bert_forward.3} parent=1 // loop_footer
      %s39 = sadd.s32 1, %s35
    $region7: #{custom_conditional_bert_forward.3} parent=1 // loop_footer_branch
      %34 = sbr.rel target = $region3
    $region8: #{custom_conditional_bert_forward.3} parent=1 // loop_exit
      _
    %2241 = vsyncpa [#allocation4], 1
    %s2242 = scalar_lea.sflag [#allocation4], 1
    %2243 = vsyncpa %s2242, 1

</llo_original>
